<compile_context>
chip_gen: v7x
topology: tpu7x:2x2x1
jax: 0.10.0
libtpu: 0.0.40
codegen_flags: <defaults>
</compile_context>

<pallas_src>
import functools

import jax
import jax.numpy as jnp
from jax.experimental import pallas as pl
from jax.experimental.pallas import tpu as pltpu


# --------------------------------------------------------------------------- #
# In-kernel helpers
# --------------------------------------------------------------------------- #
def _ln(x, g, b, eps=1e-5):
    """x: (R, D) f32; g/b: (1, D) f32.  PyTorch nn.LayerNorm over last dim."""
    mean = jnp.mean(x, axis=-1, keepdims=True)
    var = jnp.mean((x - mean) ** 2, axis=-1, keepdims=True)
    return (x - mean) * jax.lax.rsqrt(var + eps) * g + b


def _bf16(x):
    return x.astype(jnp.bfloat16)


# --------------------------------------------------------------------------- #
# The single fused kernel: patch-embed -> cls/pos -> transformer -> head
# --------------------------------------------------------------------------- #
def _vit_kernel(p_ref, cls_ref, pos_ref,
                pe1g, pe1b, pew, peb, pe2g, pe2b,
                aln_g, aln_b, wqkv, wo, bo,
                fln_g, fln_b, w1, b1, w2, b2,
                ng, nb, hg, hb, hw, hbias,
                o_ref, *, depth, heads, dim_head, n_tok, bb, pool):
    inner = heads * dim_head
    n1 = n_tok + 1
    pd = p_ref.shape[-1]

    # ---- patch embedding: LN -> Linear -> LN  (batch folded into the M axis) ----
    pt = p_ref[...].reshape(bb * n_tok, pd).astype(jnp.float32)
    pt = _ln(pt, pe1g[...], pe1b[...])
    emb = jnp.dot(_bf16(pt), pew[...], preferred_element_type=jnp.float32) + peb[...]
    emb = _ln(emb, pe2g[...], pe2b[...])                    # (bb*n_tok, dim) f32

    # ---- cls token prepend + positional embedding (all in VMEM, no HBM trip) ----
    cls_row = cls_ref[...].astype(jnp.float32)               # (1, dim)
    pos = pos_ref[...].astype(jnp.float32)                   # (n1, dim)
    xs = []
    for b in range(bb):
        xb = jnp.concatenate([cls_row, emb[b * n_tok:(b + 1) * n_tok]], axis=0) + pos
        xs.append(xb)
    x = xs[0] if bb == 1 else jnp.concatenate(xs, axis=0)    # (bb*n1, dim) f32 residual

    # ---- transformer stack (weights resident; static unroll over depth) ----
    for l in range(depth):
        # attention: LN -> fused QKV matmul -> per-(head, batch) softmax -> one out-proj
        xn16 = _bf16(_ln(x, aln_g[l], aln_b[l]))
        # single (M, dim) @ (dim, 3*inner); attention scale is pre-folded into Q cols.
        qkv = _bf16(jnp.dot(xn16, wqkv[l], preferred_element_type=jnp.float32))
        head_parts = []
        for h in range(heads):
            q = qkv[:, h * dim_head:(h + 1) * dim_head]
            k = qkv[:, inner + h * dim_head:inner + (h + 1) * dim_head]
            v = qkv[:, 2 * inner + h * dim_head:2 * inner + (h + 1) * dim_head]
            obs = []
            for b in range(bb):
                r0, r1 = b * n1, (b + 1) * n1
                s = jax.lax.dot_general(q[r0:r1], k[r0:r1], (((1,), (1,)), ((), ())),
                                        preferred_element_type=jnp.float32)
                mx = jnp.max(s, axis=-1, keepdims=True)
                pr = jnp.exp(s - mx)
                pr = pr * pl.reciprocal(jnp.sum(pr, axis=-1, keepdims=True), approx=True)
                obs.append(jnp.dot(_bf16(pr), v[r0:r1],
                                   preferred_element_type=jnp.float32))   # (n1, dh) f32
            head_parts.append(obs[0] if bb == 1 else jnp.concatenate(obs, axis=0))
        oh = jnp.concatenate(head_parts, axis=-1)             # (M, inner), (head, dh) order
        proj = jnp.dot(_bf16(oh), wo[l], preferred_element_type=jnp.float32) + bo[l]
        x = x + proj

        # feed-forward: LN -> Linear -> GELU(tanh, EUP) -> Linear + residual
        xn = _ln(x, fln_g[l], fln_b[l])
        h1 = jnp.dot(_bf16(xn), w1[l], preferred_element_type=jnp.float32) + b1[l]
        # tanh-GELU: transcendental goes to the otherwise-idle EUP slot; small numeric
        # deviation from nn.GELU()'s exact erf (covered by the reference tolerance).
        h1 = jax.nn.gelu(h1, approximate=True)
        h2 = jnp.dot(_bf16(h1), w2[l], preferred_element_type=jnp.float32) + b2[l]
        x = x + h2

    # ---- final LN, pooling, mlp_head (lane-padded output -> unmasked stores) ----
    x = _ln(x, ng[...], nb[...])
    pooled = []
    for b in range(bb):
        xb = x[b * n1:(b + 1) * n1]
        pooled.append(jnp.mean(xb, axis=0, keepdims=True) if pool == "mean" else xb[0:1])
    pooled = pooled[0] if bb == 1 else jnp.concatenate(pooled, axis=0)   # (bb, dim)
    pooled = _ln(pooled, hg[...], hb[...])
    logits = jnp.dot(_bf16(pooled), hw[...], preferred_element_type=jnp.float32) + hbias[...]
    o_ref[...] = logits.reshape(o_ref.shape).astype(o_ref.dtype)


_W_KEYS = ("pe_ln1_g", "pe_ln1_b", "pe_w", "pe_b", "pe_ln2_g", "pe_ln2_b",
           "aln_g", "aln_b", "w_qkv", "w_o", "b_o",
           "fln_g", "fln_b", "w1", "b1", "w2", "b2",
           "norm_g", "norm_b", "h_g", "h_b", "head_w", "head_b")


def _multi_tensorcore():
    """True when the chip has >1 TensorCore (v7x) -> keep a parallel batch grid."""
    try:
        kind = jax.devices()[0].device_kind.lower()
    except Exception:
        return False
    return ("v7" in kind) or ("7x" in kind)


# --------------------------------------------------------------------------- #
# Parameter construction (deterministic, synthetic) + kernel-friendly repack
# --------------------------------------------------------------------------- #
def make_vit_params(key, *, patch_dim, dim, depth, heads, dim_head, mlp_dim,
                    num_patches, num_classes):
    inner = heads * dim_head
    state = [key]

    def nk():
        state[0], sub = jax.random.split(state[0])
        return sub

    def rand(shape, scale=0.02):
        return (jax.random.normal(nk(), shape) * scale).astype(jnp.float32)

    p = {
        "pe_ln1_g": jnp.ones((patch_dim,), jnp.float32),
        "pe_ln1_b": jnp.zeros((patch_dim,), jnp.float32),
        "pe_w": rand((patch_dim, dim)),
        "pe_b": jnp.zeros((dim,), jnp.float32),
        "pe_ln2_g": jnp.ones((dim,), jnp.float32),
        "pe_ln2_b": jnp.zeros((dim,), jnp.float32),
        "pos": rand((1, num_patches + 1, dim), 1.0),      # torch.randn
        "cls": rand((1, 1, dim), 1.0),                    # torch.randn
        "norm_g": jnp.ones((dim,), jnp.float32),
        "norm_b": jnp.zeros((dim,), jnp.float32),
        "head_ln_g": jnp.ones((dim,), jnp.float32),
        "head_ln_b": jnp.zeros((dim,), jnp.float32),
        "head_w": rand((dim, num_classes)),
        "head_b": jnp.zeros((num_classes,), jnp.float32),
        "layers": [],
    }
    for _ in range(depth):
        p["layers"].append({
            "attn_ln_g": jnp.ones((dim,), jnp.float32),
            "attn_ln_b": jnp.zeros((dim,), jnp.float32),
            "w_qkv": rand((dim, 3 * inner)),              # to_qkv has no bias
            "w_o": rand((inner, dim)),
            "b_o": jnp.zeros((dim,), jnp.float32),
            "ff_ln_g": jnp.ones((dim,), jnp.float32),
            "ff_ln_b": jnp.zeros((dim,), jnp.float32),
            "w1": rand((dim, mlp_dim)),
            "b1": jnp.zeros((mlp_dim,), jnp.float32),
            "w2": rand((mlp_dim, dim)),
            "b2": jnp.zeros((dim,), jnp.float32),
        })
    return p


def prepare_params(p, *, depth, heads, dim_head, num_classes, lane=128):
    """One-time repack: stack layers over depth, keep QKV fused (scale folded into
    the Q columns), cast matmul weights to bf16 (f32 accumulation in-kernel), and
    lane-pad the classification head so the kernel store is lane-dense."""
    dim = p["pe_w"].shape[1]
    inner = heads * dim_head
    mlp_dim = p["layers"][0]["w1"].shape[1]
    out_pad = -(-num_classes // lane) * lane
    scale = dim_head ** -0.5

    def stack(key):
        return jnp.stack([lp[key] for lp in p["layers"]], axis=0)

    # to_qkv columns are ordered [q | k | v], each chunk ordered (head, dim_head);
    # fold the attention scale into the Q columns (free at prepare time).
    w_qkv = stack("w_qkv")
    w_qkv = w_qkv.at[:, :, :inner].multiply(scale)

    hw = jnp.zeros((dim, out_pad), jnp.float32).at[:, :num_classes].set(p["head_w"])
    hb = jnp.zeros((1, out_pad), jnp.float32).at[:, :num_classes].set(
        p["head_b"].reshape(1, -1))

    return {
        # patch embedding
        "pe_ln1_g": p["pe_ln1_g"].reshape(1, -1),
        "pe_ln1_b": p["pe_ln1_b"].reshape(1, -1),
        "pe_w": p["pe_w"].astype(jnp.bfloat16),
        "pe_b": p["pe_b"].reshape(1, -1),
        "pe_ln2_g": p["pe_ln2_g"].reshape(1, -1),
        "pe_ln2_b": p["pe_ln2_b"].reshape(1, -1),
        "cls": p["cls"].reshape(1, dim),
        "pos": p["pos"][0],                               # (num_patches+1, dim)
        # transformer layers (stacked over depth)
        "aln_g": stack("attn_ln_g").reshape(depth, 1, dim),
        "aln_b": stack("attn_ln_b").reshape(depth, 1, dim),
        "w_qkv": w_qkv.astype(jnp.bfloat16),              # (depth, dim, 3*inner)
        "w_o": stack("w_o").astype(jnp.bfloat16),         # (depth, inner, dim)
        "b_o": stack("b_o").reshape(depth, 1, dim),
        "fln_g": stack("ff_ln_g").reshape(depth, 1, dim),
        "fln_b": stack("ff_ln_b").reshape(depth, 1, dim),
        "w1": stack("w1").astype(jnp.bfloat16),
        "b1": stack("b1").reshape(depth, 1, mlp_dim),
        "w2": stack("w2").astype(jnp.bfloat16),
        "b2": stack("b2").reshape(depth, 1, dim),
        # final norm + mlp head (lane-padded)
        "norm_g": p["norm_g"].reshape(1, dim),
        "norm_b": p["norm_b"].reshape(1, dim),
        "h_g": p["head_ln_g"].reshape(1, dim),
        "h_b": p["head_ln_b"].reshape(1, dim),
        "head_w": hw.astype(jnp.bfloat16),
        "head_b": hb,
    }


# --------------------------------------------------------------------------- #
# Forward pass (single pallas_call)
# --------------------------------------------------------------------------- #
def vit_forward(video, prep, *, patch_h, patch_w, frame_ps, depth, heads,
                dim_head, num_classes, pool="cls", batch_block=None):
    B, C, X, Y, Fr = video.shape
    dim = prep["pe_w"].shape[1]
    out_pad = prep["head_w"].shape[1]

    # video.permute(0, 1, 4, 2, 3): [B,C,X,Y,F] -> [B,C,F,X,Y]
    v = jnp.transpose(video, (0, 1, 4, 2, 3))
    # Rearrange 'b c (f pf) (h p1) (w p2) -> b (f h w) (p1 p2 pf c)'
    f, h, w = Fr // frame_ps, X // patch_h, Y // patch_w
    v = v.reshape(B, C, f, frame_ps, h, patch_h, w, patch_w)
    v = jnp.transpose(v, (0, 2, 4, 6, 5, 7, 3, 1))        # b f h w p1 p2 pf c
    n = f * h * w
    patch_dim = patch_h * patch_w * frame_ps * C
    patches = v.reshape(B, n, patch_dim)
    n1 = n + 1

    # Batch blocking: fold the batch into the M axis on single-TC chips (grid of 1
    # step, fuller sublanes/MXU); one batch element per "parallel" grid step on
    # multi-TC chips (v7x) so both TensorCores are used.
    if batch_block is None:
        batch_block = 1 if (_multi_tensorcore() and B > 1) else B
    bb = batch_block
    assert B % bb == 0, "batch must be divisible by the batch block"

    cls2d = prep["cls"]                                    # (1, dim)
    pos2d = prep["pos"][:n1]                               # (n1, dim)
    weights = tuple(prep[k] for k in _W_KEYS)

    def _full(a):
        nd = a.ndim
        return pl.BlockSpec(a.shape, lambda g, _n=nd: (0,) * _n)

    kern = functools.partial(_vit_kernel, depth=depth, heads=heads,
                             dim_head=dim_head, n_tok=n, bb=bb, pool=pool)

    out = pl.pallas_call(
        kern,
        out_shape=jax.ShapeDtypeStruct((B, 1, out_pad), jnp.float32),
        grid=(B // bb,),
        in_specs=[pl.BlockSpec((bb, n, patch_dim), lambda g: (g, 0, 0)),
                  _full(cls2d), _full(pos2d)]
                 + [_full(a) for a in weights],
        out_specs=pl.BlockSpec((bb, 1, out_pad), lambda g: (g, 0, 0)),
        compiler_params=pltpu.CompilerParams(dimension_semantics=("parallel",)),
    )(patches, cls2d, pos2d, *weights)
    return out[:, 0, :num_classes]


# --------------------------------------------------------------------------- #
# Pure-JAX f32 reference (PyTorch semantics) for a loose parity check
# --------------------------------------------------------------------------- #
def vit_reference(video, p, *, patch_h, patch_w, frame_ps, heads, dim_head,
                  num_classes, pool="cls"):
    def ln(x, g, b, eps=1e-5):
        m = jnp.mean(x, axis=-1, keepdims=True)
        v = jnp.mean((x - m) ** 2, axis=-1, keepdims=True)
        return (x - m) * jax.lax.rsqrt(v + eps) * g + b

    B, C, X, Y, Fr = video.shape
    v = jnp.transpose(video, (0, 1, 4, 2, 3))
    f, h, w = Fr // frame_ps, X // patch_h, Y // patch_w
    v = v.reshape(B, C, f, frame_ps, h, patch_h, w, patch_w)
    v = jnp.transpose(v, (0, 2, 4, 6, 5, 7, 3, 1))
    n = f * h * w
    patches = v.reshape(B, n, -1)

    x = ln(patches, p["pe_ln1_g"], p["pe_ln1_b"])
    x = x @ p["pe_w"] + p["pe_b"]
    x = ln(x, p["pe_ln2_g"], p["pe_ln2_b"])

    cls = jnp.broadcast_to(p["cls"], (B, 1, x.shape[-1]))
    x = jnp.concatenate([cls, x], axis=1) + p["pos"][:, :n + 1]

    scale = dim_head ** -0.5
    inner = heads * dim_head
    for lp in p["layers"]:
        xn = ln(x, lp["attn_ln_g"], lp["attn_ln_b"])
        qkv = xn @ lp["w_qkv"]
        q, k, vv = jnp.split(qkv, 3, axis=-1)

        def hs(t):
            return jnp.transpose(t.reshape(B, -1, heads, dim_head), (0, 2, 1, 3))

        q, k, vv = hs(q), hs(k), hs(vv)
        s = jnp.einsum("bhid,bhjd->bhij", q, k) * scale
        a = jax.nn.softmax(s, axis=-1)
        o = jnp.einsum("bhij,bhjd->bhid", a, vv)
        o = jnp.transpose(o, (0, 2, 1, 3)).reshape(B, -1, inner)
        x = x + o @ lp["w_o"] + lp["b_o"]
        xn = ln(x, lp["ff_ln_g"], lp["ff_ln_b"])
        hdn = jax.nn.gelu(xn @ lp["w1"] + lp["b1"], approximate=False)
        x = x + hdn @ lp["w2"] + lp["b2"]

    x = ln(x, p["norm_g"], p["norm_b"])
    pooled = jnp.mean(x, axis=1) if pool == "mean" else x[:, 0]
    pooled = ln(pooled, p["head_ln_g"], p["head_ln_b"])
    return pooled @ p["head_w"] + p["head_b"]


# --------------------------------------------------------------------------- #
# Main
# --------------------------------------------------------------------------- #
if __name__ == "__main__":
    # Small config consistent with the module's __init__.
    image_size = 16
    image_patch_size = 8
    frames = 4
    frame_patch_size = 2
    channels = 3
    num_classes = 10
    dim = 32
    depth = 2
    heads = 2
    dim_head = 16
    mlp_dim = 64
    pool = "cls"

    num_patches = (image_size // image_patch_size) ** 2 * (frames // frame_patch_size)
    patch_dim = channels * image_patch_size * image_patch_size * frame_patch_size

    key = jax.random.PRNGKey(0)
    k_inp, k_par = jax.random.split(key)

    # Input: [batch, channels, x, y, z_depth]  (as the PyTorch forward expects)
    B = 2
    video = jax.random.normal(
        k_inp, (B, channels, image_size, image_size, frames), dtype=jnp.float32
    )

    params = make_vit_params(
        k_par,
        patch_dim=patch_dim,
        dim=dim,
        depth=depth,
        heads=heads,
        dim_head=dim_head,
        mlp_dim=mlp_dim,
        num_patches=num_patches,
        num_classes=num_classes,
    )
    prep = prepare_params(params, depth=depth, heads=heads, dim_head=dim_head,
                          num_classes=num_classes)

    fwd = functools.partial(
        vit_forward,
        patch_h=image_patch_size,
        patch_w=image_patch_size,
        frame_ps=frame_patch_size,
        depth=depth,
        heads=heads,
        dim_head=dim_head,
        num_classes=num_classes,
        pool=pool,
    )

    logits = jax.jit(fwd)(video, prep)
    logits = jax.block_until_ready(logits)
    assert logits.shape == (B, num_classes)
    assert bool(jnp.all(jnp.isfinite(logits)))

    # Loose-tolerance parity check vs the pure-JAX f32 reference (kernel uses bf16
    # MXU operands, approx reciprocal in softmax and tanh-GELU).
    ref = vit_reference(video, params, patch_h=image_patch_size,
                        patch_w=image_patch_size, frame_ps=frame_patch_size,
                        heads=heads, dim_head=dim_head, num_classes=num_classes,
                        pool=pool)
    err = float(jnp.max(jnp.abs(logits - ref)))
    assert err < 3e-2, f"max |kernel - reference| = {err}"

    print("KERNEL_OK")
</pallas_src>

<mosaic_0001>
module attributes {stable_mosaic.version = 11 : i64} {
  func.func @_vit_kernel(%arg0: i32, %arg1: memref<2x8x384xf32, #tpu.memory_space<vmem>>, %arg2: memref<1x32xf32, #tpu.memory_space<vmem>>, %arg3: memref<9x32xf32, #tpu.memory_space<vmem>>, %arg4: memref<1x384xf32, #tpu.memory_space<vmem>>, %arg5: memref<1x384xf32, #tpu.memory_space<vmem>>, %arg6: memref<384x32xbf16, #tpu.memory_space<vmem>>, %arg7: memref<1x32xf32, #tpu.memory_space<vmem>>, %arg8: memref<1x32xf32, #tpu.memory_space<vmem>>, %arg9: memref<1x32xf32, #tpu.memory_space<vmem>>, %arg10: memref<2x1x32xf32, #tpu.memory_space<vmem>>, %arg11: memref<2x1x32xf32, #tpu.memory_space<vmem>>, %arg12: memref<2x32x96xbf16, #tpu.memory_space<vmem>>, %arg13: memref<2x32x32xbf16, #tpu.memory_space<vmem>>, %arg14: memref<2x1x32xf32, #tpu.memory_space<vmem>>, %arg15: memref<2x1x32xf32, #tpu.memory_space<vmem>>, %arg16: memref<2x1x32xf32, #tpu.memory_space<vmem>>, %arg17: memref<2x32x64xbf16, #tpu.memory_space<vmem>>, %arg18: memref<2x1x64xf32, #tpu.memory_space<vmem>>, %arg19: memref<2x64x32xbf16, #tpu.memory_space<vmem>>, %arg20: memref<2x1x32xf32, #tpu.memory_space<vmem>>, %arg21: memref<1x32xf32, #tpu.memory_space<vmem>>, %arg22: memref<1x32xf32, #tpu.memory_space<vmem>>, %arg23: memref<1x32xf32, #tpu.memory_space<vmem>>, %arg24: memref<1x32xf32, #tpu.memory_space<vmem>>, %arg25: memref<32x128xbf16, #tpu.memory_space<vmem>>, %arg26: memref<1x128xf32, #tpu.memory_space<vmem>>, %arg27: memref<2x1x128xf32, #tpu.memory_space<vmem>>) attributes {dimension_semantics = [#tpu.dimension_semantics<parallel>], iteration_bounds = array<i64: 1>, scalar_prefetch = 0 : i64, scratch_operands = 0 : i64, tpu.core_type = #tpu.core_type<tc>, window_params = [{transform_indices = @transform_0, window_bounds = array<i64: 2, 8, 384>}, {pipeline_mode = #tpu.pipeline_mode<synchronous>, transform_indices = @transform_1, window_bounds = array<i64: 1, 32>}, {pipeline_mode = #tpu.pipeline_mode<synchronous>, transform_indices = @transform_2, window_bounds = array<i64: 9, 32>}, {pipeline_mode = #tpu.pipeline_mode<synchronous>, transform_indices = @transform_3, window_bounds = array<i64: 1, 384>}, {pipeline_mode = #tpu.pipeline_mode<synchronous>, transform_indices = @transform_4, window_bounds = array<i64: 1, 384>}, {pipeline_mode = #tpu.pipeline_mode<synchronous>, transform_indices = @transform_5, window_bounds = array<i64: 384, 32>}, {pipeline_mode = #tpu.pipeline_mode<synchronous>, transform_indices = @transform_6, window_bounds = array<i64: 1, 32>}, {pipeline_mode = #tpu.pipeline_mode<synchronous>, transform_indices = @transform_7, window_bounds = array<i64: 1, 32>}, {pipeline_mode = #tpu.pipeline_mode<synchronous>, transform_indices = @transform_8, window_bounds = array<i64: 1, 32>}, {pipeline_mode = #tpu.pipeline_mode<synchronous>, transform_indices = @transform_9, window_bounds = array<i64: 2, 1, 32>}, {pipeline_mode = #tpu.pipeline_mode<synchronous>, transform_indices = @transform_10, window_bounds = array<i64: 2, 1, 32>}, {pipeline_mode = #tpu.pipeline_mode<synchronous>, transform_indices = @transform_11, window_bounds = array<i64: 2, 32, 96>}, {pipeline_mode = #tpu.pipeline_mode<synchronous>, transform_indices = @transform_12, window_bounds = array<i64: 2, 32, 32>}, {pipeline_mode = #tpu.pipeline_mode<synchronous>, transform_indices = @transform_13, window_bounds = array<i64: 2, 1, 32>}, {pipeline_mode = #tpu.pipeline_mode<synchronous>, transform_indices = @transform_14, window_bounds = array<i64: 2, 1, 32>}, {pipeline_mode = #tpu.pipeline_mode<synchronous>, transform_indices = @transform_15, window_bounds = array<i64: 2, 1, 32>}, {pipeline_mode = #tpu.pipeline_mode<synchronous>, transform_indices = @transform_16, window_bounds = array<i64: 2, 32, 64>}, {pipeline_mode = #tpu.pipeline_mode<synchronous>, transform_indices = @transform_17, window_bounds = array<i64: 2, 1, 64>}, {pipeline_mode = #tpu.pipeline_mode<synchronous>, transform_indices = @transform_18, window_bounds = array<i64: 2, 64, 32>}, {pipeline_mode = #tpu.pipeline_mode<synchronous>, transform_indices = @transform_19, window_bounds = array<i64: 2, 1, 32>}, {pipeline_mode = #tpu.pipeline_mode<synchronous>, transform_indices = @transform_20, window_bounds = array<i64: 1, 32>}, {pipeline_mode = #tpu.pipeline_mode<synchronous>, transform_indices = @transform_21, window_bounds = array<i64: 1, 32>}, {pipeline_mode = #tpu.pipeline_mode<synchronous>, transform_indices = @transform_22, window_bounds = array<i64: 1, 32>}, {pipeline_mode = #tpu.pipeline_mode<synchronous>, transform_indices = @transform_23, window_bounds = array<i64: 1, 32>}, {pipeline_mode = #tpu.pipeline_mode<synchronous>, transform_indices = @transform_24, window_bounds = array<i64: 32, 128>}, {pipeline_mode = #tpu.pipeline_mode<synchronous>, transform_indices = @transform_25, window_bounds = array<i64: 1, 128>}, {transform_indices = @transform_26, window_bounds = array<i64: 2, 1, 128>}]} {
    %c0 = arith.constant 0 : index
    %c0_0 = arith.constant 0 : index
    %c0_1 = arith.constant 0 : index
    %0 = vector.load %arg1[%c0, %c0_0, %c0_1] : memref<2x8x384xf32, #tpu.memory_space<vmem>>, vector<2x8x384xf32>
    %1 = vector.shape_cast %0 : vector<2x8x384xf32> to vector<16x384xf32>
    %c0_2 = arith.constant 0 : index
    %c0_3 = arith.constant 0 : index
    %2 = vector.load %arg4[%c0_2, %c0_3] : memref<1x384xf32, #tpu.memory_space<vmem>>, vector<1x384xf32>
    %c0_4 = arith.constant 0 : index
    %c0_5 = arith.constant 0 : index
    %3 = vector.load %arg5[%c0_4, %c0_5] : memref<1x384xf32, #tpu.memory_space<vmem>>, vector<1x384xf32>
    %cst = arith.constant dense<0.000000e+00> : vector<16xf32>
    %4 = vector.multi_reduction <add>, %1, %cst [1] : vector<16x384xf32> to vector<16xf32>
    %5 = vector.shape_cast %4 : vector<16xf32> to vector<16x1xf32>
    %cst_6 = arith.constant 3.840000e+02 : f32
    %6 = vector.broadcast %cst_6 : f32 to vector<16x1xf32>
    %7 = arith.divf %5, %6 : vector<16x1xf32>
    %8 = vector.broadcast %7 : vector<16x1xf32> to vector<16x384xf32>
    %9 = arith.subf %1, %8 : vector<16x384xf32>
    %10 = arith.mulf %9, %9 : vector<16x384xf32>
    %cst_7 = arith.constant dense<0.000000e+00> : vector<16xf32>
    %11 = vector.multi_reduction <add>, %10, %cst_7 [1] : vector<16x384xf32> to vector<16xf32>
    %12 = vector.shape_cast %11 : vector<16xf32> to vector<16x1xf32>
    %cst_8 = arith.constant 3.840000e+02 : f32
    %13 = vector.broadcast %cst_8 : f32 to vector<16x1xf32>
    %14 = arith.divf %12, %13 : vector<16x1xf32>
    %15 = vector.broadcast %7 : vector<16x1xf32> to vector<16x384xf32>
    %16 = arith.subf %1, %15 : vector<16x384xf32>
    %cst_9 = arith.constant 9.99999974E-6 : f32
    %17 = vector.broadcast %cst_9 : f32 to vector<16x1xf32>
    %18 = arith.addf %14, %17 : vector<16x1xf32>
    %19 = math.rsqrt %18 : vector<16x1xf32>
    %20 = vector.broadcast %19 : vector<16x1xf32> to vector<16x384xf32>
    %21 = arith.mulf %16, %20 : vector<16x384xf32>
    %22 = vector.broadcast %2 : vector<1x384xf32> to vector<16x384xf32>
    %23 = arith.mulf %21, %22 : vector<16x384xf32>
    %24 = vector.broadcast %3 : vector<1x384xf32> to vector<16x384xf32>
    %25 = arith.addf %23, %24 : vector<16x384xf32>
    %26 = arith.truncf %25 : vector<16x384xf32> to vector<16x384xbf16>
    %c0_10 = arith.constant 0 : index
    %c0_11 = arith.constant 0 : index
    %27 = vector.load %arg6[%c0_10, %c0_11] : memref<384x32xbf16, #tpu.memory_space<vmem>>, vector<384x32xbf16>
    %cst_12 = arith.constant dense<0.000000e+00> : vector<16x32xf32>
    %28 = tpu.matmul %26, %27, %cst_12 {dimension_numbers = #tpu.dot_dimension_numbers<[1], [0], [0], [1], [0, 0, 1, 1], [], []>} : vector<16x384xbf16>, vector<384x32xbf16>, vector<16x32xf32> -> vector<16x32xf32>
    %c0_13 = arith.constant 0 : index
    %c0_14 = arith.constant 0 : index
    %29 = vector.load %arg7[%c0_13, %c0_14] : memref<1x32xf32, #tpu.memory_space<vmem>>, vector<1x32xf32>
    %30 = vector.broadcast %29 : vector<1x32xf32> to vector<16x32xf32>
    %31 = arith.addf %28, %30 : vector<16x32xf32>
    %c0_15 = arith.constant 0 : index
    %c0_16 = arith.constant 0 : index
    %32 = vector.load %arg8[%c0_15, %c0_16] : memref<1x32xf32, #tpu.memory_space<vmem>>, vector<1x32xf32>
    %c0_17 = arith.constant 0 : index
    %c0_18 = arith.constant 0 : index
    %33 = vector.load %arg9[%c0_17, %c0_18] : memref<1x32xf32, #tpu.memory_space<vmem>>, vector<1x32xf32>
    %cst_19 = arith.constant dense<0.000000e+00> : vector<16xf32>
    %34 = vector.multi_reduction <add>, %31, %cst_19 [1] : vector<16x32xf32> to vector<16xf32>
    %35 = vector.shape_cast %34 : vector<16xf32> to vector<16x1xf32>
    %cst_20 = arith.constant 3.200000e+01 : f32
    %36 = vector.broadcast %cst_20 : f32 to vector<16x1xf32>
    %37 = arith.divf %35, %36 : vector<16x1xf32>
    %38 = vector.broadcast %37 : vector<16x1xf32> to vector<16x32xf32>
    %39 = arith.subf %31, %38 : vector<16x32xf32>
    %40 = arith.mulf %39, %39 : vector<16x32xf32>
    %cst_21 = arith.constant dense<0.000000e+00> : vector<16xf32>
    %41 = vector.multi_reduction <add>, %40, %cst_21 [1] : vector<16x32xf32> to vector<16xf32>
    %42 = vector.shape_cast %41 : vector<16xf32> to vector<16x1xf32>
    %cst_22 = arith.constant 3.200000e+01 : f32
    %43 = vector.broadcast %cst_22 : f32 to vector<16x1xf32>
    %44 = arith.divf %42, %43 : vector<16x1xf32>
    %45 = vector.broadcast %37 : vector<16x1xf32> to vector<16x32xf32>
    %46 = arith.subf %31, %45 : vector<16x32xf32>
    %cst_23 = arith.constant 9.99999974E-6 : f32
    %47 = vector.broadcast %cst_23 : f32 to vector<16x1xf32>
    %48 = arith.addf %44, %47 : vector<16x1xf32>
    %49 = math.rsqrt %48 : vector<16x1xf32>
    %50 = vector.broadcast %49 : vector<16x1xf32> to vector<16x32xf32>
    %51 = arith.mulf %46, %50 : vector<16x32xf32>
    %52 = vector.broadcast %32 : vector<1x32xf32> to vector<16x32xf32>
    %53 = arith.mulf %51, %52 : vector<16x32xf32>
    %54 = vector.broadcast %33 : vector<1x32xf32> to vector<16x32xf32>
    %55 = arith.addf %53, %54 : vector<16x32xf32>
    %c0_24 = arith.constant 0 : index
    %c0_25 = arith.constant 0 : index
    %56 = vector.load %arg2[%c0_24, %c0_25] : memref<1x32xf32, #tpu.memory_space<vmem>>, vector<1x32xf32>
    %c0_26 = arith.constant 0 : index
    %c0_27 = arith.constant 0 : index
    %57 = vector.load %arg3[%c0_26, %c0_27] : memref<9x32xf32, #tpu.memory_space<vmem>>, vector<9x32xf32>
    %58 = vector.extract_strided_slice %55 {offsets = [0, 0], sizes = [8, 32], strides = [1, 1]} : vector<16x32xf32> to vector<8x32xf32>
    %59 = tpu.concatenate %56, %58 in 0 : vector<1x32xf32>, vector<8x32xf32> -> vector<9x32xf32>
    %60 = arith.addf %59, %57 : vector<9x32xf32>
    %61 = vector.extract_strided_slice %55 {offsets = [8, 0], sizes = [8, 32], strides = [1, 1]} : vector<16x32xf32> to vector<8x32xf32>
    %62 = tpu.concatenate %56, %61 in 0 : vector<1x32xf32>, vector<8x32xf32> -> vector<9x32xf32>
    %63 = arith.addf %62, %57 : vector<9x32xf32>
    %64 = tpu.concatenate %60, %63 in 0 : vector<9x32xf32>, vector<9x32xf32> -> vector<18x32xf32>
    %c0_28 = arith.constant 0 : index
    %c0_29 = arith.constant 0 : index
    %c0_30 = arith.constant 0 : index
    %65 = vector.load %arg10[%c0_28, %c0_29, %c0_30] : memref<2x1x32xf32, #tpu.memory_space<vmem>>, vector<1x1x32xf32>
    %66 = vector.shape_cast %65 : vector<1x1x32xf32> to vector<1x32xf32>
    %c0_31 = arith.constant 0 : index
    %c0_32 = arith.constant 0 : index
    %c0_33 = arith.constant 0 : index
    %67 = vector.load %arg11[%c0_31, %c0_32, %c0_33] : memref<2x1x32xf32, #tpu.memory_space<vmem>>, vector<1x1x32xf32>
    %68 = vector.shape_cast %67 : vector<1x1x32xf32> to vector<1x32xf32>
    %cst_34 = arith.constant dense<0.000000e+00> : vector<18xf32>
    %69 = vector.multi_reduction <add>, %64, %cst_34 [1] : vector<18x32xf32> to vector<18xf32>
    %70 = vector.shape_cast %69 : vector<18xf32> to vector<18x1xf32>
    %cst_35 = arith.constant 3.200000e+01 : f32
    %71 = vector.broadcast %cst_35 : f32 to vector<18x1xf32>
    %72 = arith.divf %70, %71 : vector<18x1xf32>
    %73 = vector.broadcast %72 : vector<18x1xf32> to vector<18x32xf32>
    %74 = arith.subf %64, %73 : vector<18x32xf32>
    %75 = arith.mulf %74, %74 : vector<18x32xf32>
    %cst_36 = arith.constant dense<0.000000e+00> : vector<18xf32>
    %76 = vector.multi_reduction <add>, %75, %cst_36 [1] : vector<18x32xf32> to vector<18xf32>
    %77 = vector.shape_cast %76 : vector<18xf32> to vector<18x1xf32>
    %cst_37 = arith.constant 3.200000e+01 : f32
    %78 = vector.broadcast %cst_37 : f32 to vector<18x1xf32>
    %79 = arith.divf %77, %78 : vector<18x1xf32>
    %80 = vector.broadcast %72 : vector<18x1xf32> to vector<18x32xf32>
    %81 = arith.subf %64, %80 : vector<18x32xf32>
    %cst_38 = arith.constant 9.99999974E-6 : f32
    %82 = vector.broadcast %cst_38 : f32 to vector<18x1xf32>
    %83 = arith.addf %79, %82 : vector<18x1xf32>
    %84 = math.rsqrt %83 : vector<18x1xf32>
    %85 = vector.broadcast %84 : vector<18x1xf32> to vector<18x32xf32>
    %86 = arith.mulf %81, %85 : vector<18x32xf32>
    %87 = vector.broadcast %66 : vector<1x32xf32> to vector<18x32xf32>
    %88 = arith.mulf %86, %87 : vector<18x32xf32>
    %89 = vector.broadcast %68 : vector<1x32xf32> to vector<18x32xf32>
    %90 = arith.addf %88, %89 : vector<18x32xf32>
    %91 = arith.truncf %90 : vector<18x32xf32> to vector<18x32xbf16>
    %c0_39 = arith.constant 0 : index
    %c0_40 = arith.constant 0 : index
    %c0_41 = arith.constant 0 : index
    %92 = vector.load %arg12[%c0_39, %c0_40, %c0_41] : memref<2x32x96xbf16, #tpu.memory_space<vmem>>, vector<1x32x96xbf16>
    %93 = vector.shape_cast %92 : vector<1x32x96xbf16> to vector<32x96xbf16>
    %cst_42 = arith.constant dense<0.000000e+00> : vector<18x96xf32>
    %94 = tpu.matmul %91, %93, %cst_42 {dimension_numbers = #tpu.dot_dimension_numbers<[1], [0], [0], [1], [0, 0, 1, 1], [], []>} : vector<18x32xbf16>, vector<32x96xbf16>, vector<18x96xf32> -> vector<18x96xf32>
    %95 = arith.truncf %94 : vector<18x96xf32> to vector<18x96xbf16>
    %96 = vector.extract_strided_slice %95 {offsets = [0, 0], sizes = [18, 16], strides = [1, 1]} : vector<18x96xbf16> to vector<18x16xbf16>
    %97 = vector.extract_strided_slice %95 {offsets = [0, 32], sizes = [18, 16], strides = [1, 1]} : vector<18x96xbf16> to vector<18x16xbf16>
    %98 = vector.extract_strided_slice %95 {offsets = [0, 64], sizes = [18, 16], strides = [1, 1]} : vector<18x96xbf16> to vector<18x16xbf16>
    %99 = vector.extract_strided_slice %96 {offsets = [0, 0], sizes = [9, 16], strides = [1, 1]} : vector<18x16xbf16> to vector<9x16xbf16>
    %100 = vector.extract_strided_slice %97 {offsets = [0, 0], sizes = [9, 16], strides = [1, 1]} : vector<18x16xbf16> to vector<9x16xbf16>
    %cst_43 = arith.constant dense<0.000000e+00> : vector<9x9xf32>
    %101 = tpu.matmul %99, %100, %cst_43 {dimension_numbers = #tpu.dot_dimension_numbers<[1], [1], [0], [0], [0, 0, 1, 0], [], []>} : vector<9x16xbf16>, vector<9x16xbf16>, vector<9x9xf32> -> vector<9x9xf32>
    %cst_44 = arith.constant dense<0xFF800000> : vector<9xf32>
    %102 = vector.multi_reduction <maximumf>, %101, %cst_44 [1] : vector<9x9xf32> to vector<9xf32>
    %103 = vector.shape_cast %102 : vector<9xf32> to vector<9x1xf32>
    %104 = vector.broadcast %103 : vector<9x1xf32> to vector<9x9xf32>
    %105 = arith.subf %101, %104 : vector<9x9xf32>
    %106 = math.exp %105 : vector<9x9xf32>
    %cst_45 = arith.constant dense<0.000000e+00> : vector<9xf32>
    %107 = vector.multi_reduction <add>, %106, %cst_45 [1] : vector<9x9xf32> to vector<9xf32>
    %108 = vector.shape_cast %107 : vector<9xf32> to vector<9x1xf32>
    %109 = tpu.reciprocal %108 {approx = true} : vector<9x1xf32> -> vector<9x1xf32>
    %110 = vector.broadcast %109 : vector<9x1xf32> to vector<9x9xf32>
    %111 = arith.mulf %106, %110 : vector<9x9xf32>
    %112 = arith.truncf %111 : vector<9x9xf32> to vector<9x9xbf16>
    %113 = vector.extract_strided_slice %98 {offsets = [0, 0], sizes = [9, 16], strides = [1, 1]} : vector<18x16xbf16> to vector<9x16xbf16>
    %cst_46 = arith.constant dense<0.000000e+00> : vector<9x16xf32>
    %114 = tpu.matmul %112, %113, %cst_46 {dimension_numbers = #tpu.dot_dimension_numbers<[1], [0], [0], [1], [0, 0, 1, 1], [], []>} : vector<9x9xbf16>, vector<9x16xbf16>, vector<9x16xf32> -> vector<9x16xf32>
    %115 = vector.extract_strided_slice %96 {offsets = [9, 0], sizes = [9, 16], strides = [1, 1]} : vector<18x16xbf16> to vector<9x16xbf16>
    %116 = vector.extract_strided_slice %97 {offsets = [9, 0], sizes = [9, 16], strides = [1, 1]} : vector<18x16xbf16> to vector<9x16xbf16>
    %cst_47 = arith.constant dense<0.000000e+00> : vector<9x9xf32>
    %117 = tpu.matmul %115, %116, %cst_47 {dimension_numbers = #tpu.dot_dimension_numbers<[1], [1], [0], [0], [0, 0, 1, 0], [], []>} : vector<9x16xbf16>, vector<9x16xbf16>, vector<9x9xf32> -> vector<9x9xf32>
    %cst_48 = arith.constant dense<0xFF800000> : vector<9xf32>
    %118 = vector.multi_reduction <maximumf>, %117, %cst_48 [1] : vector<9x9xf32> to vector<9xf32>
    %119 = vector.shape_cast %118 : vector<9xf32> to vector<9x1xf32>
    %120 = vector.broadcast %119 : vector<9x1xf32> to vector<9x9xf32>
    %121 = arith.subf %117, %120 : vector<9x9xf32>
    %122 = math.exp %121 : vector<9x9xf32>
    %cst_49 = arith.constant dense<0.000000e+00> : vector<9xf32>
    %123 = vector.multi_reduction <add>, %122, %cst_49 [1] : vector<9x9xf32> to vector<9xf32>
    %124 = vector.shape_cast %123 : vector<9xf32> to vector<9x1xf32>
    %125 = tpu.reciprocal %124 {approx = true} : vector<9x1xf32> -> vector<9x1xf32>
    %126 = vector.broadcast %125 : vector<9x1xf32> to vector<9x9xf32>
    %127 = arith.mulf %122, %126 : vector<9x9xf32>
    %128 = arith.truncf %127 : vector<9x9xf32> to vector<9x9xbf16>
    %129 = vector.extract_strided_slice %98 {offsets = [9, 0], sizes = [9, 16], strides = [1, 1]} : vector<18x16xbf16> to vector<9x16xbf16>
    %cst_50 = arith.constant dense<0.000000e+00> : vector<9x16xf32>
    %130 = tpu.matmul %128, %129, %cst_50 {dimension_numbers = #tpu.dot_dimension_numbers<[1], [0], [0], [1], [0, 0, 1, 1], [], []>} : vector<9x9xbf16>, vector<9x16xbf16>, vector<9x16xf32> -> vector<9x16xf32>
    %131 = tpu.concatenate %114, %130 in 0 : vector<9x16xf32>, vector<9x16xf32> -> vector<18x16xf32>
    %132 = vector.extract_strided_slice %95 {offsets = [0, 16], sizes = [18, 16], strides = [1, 1]} : vector<18x96xbf16> to vector<18x16xbf16>
    %133 = vector.extract_strided_slice %95 {offsets = [0, 48], sizes = [18, 16], strides = [1, 1]} : vector<18x96xbf16> to vector<18x16xbf16>
    %134 = vector.extract_strided_slice %95 {offsets = [0, 80], sizes = [18, 16], strides = [1, 1]} : vector<18x96xbf16> to vector<18x16xbf16>
    %135 = vector.extract_strided_slice %132 {offsets = [0, 0], sizes = [9, 16], strides = [1, 1]} : vector<18x16xbf16> to vector<9x16xbf16>
    %136 = vector.extract_strided_slice %133 {offsets = [0, 0], sizes = [9, 16], strides = [1, 1]} : vector<18x16xbf16> to vector<9x16xbf16>
    %cst_51 = arith.constant dense<0.000000e+00> : vector<9x9xf32>
    %137 = tpu.matmul %135, %136, %cst_51 {dimension_numbers = #tpu.dot_dimension_numbers<[1], [1], [0], [0], [0, 0, 1, 0], [], []>} : vector<9x16xbf16>, vector<9x16xbf16>, vector<9x9xf32> -> vector<9x9xf32>
    %cst_52 = arith.constant dense<0xFF800000> : vector<9xf32>
    %138 = vector.multi_reduction <maximumf>, %137, %cst_52 [1] : vector<9x9xf32> to vector<9xf32>
    %139 = vector.shape_cast %138 : vector<9xf32> to vector<9x1xf32>
    %140 = vector.broadcast %139 : vector<9x1xf32> to vector<9x9xf32>
    %141 = arith.subf %137, %140 : vector<9x9xf32>
    %142 = math.exp %141 : vector<9x9xf32>
    %cst_53 = arith.constant dense<0.000000e+00> : vector<9xf32>
    %143 = vector.multi_reduction <add>, %142, %cst_53 [1] : vector<9x9xf32> to vector<9xf32>
    %144 = vector.shape_cast %143 : vector<9xf32> to vector<9x1xf32>
    %145 = tpu.reciprocal %144 {approx = true} : vector<9x1xf32> -> vector<9x1xf32>
    %146 = vector.broadcast %145 : vector<9x1xf32> to vector<9x9xf32>
    %147 = arith.mulf %142, %146 : vector<9x9xf32>
    %148 = arith.truncf %147 : vector<9x9xf32> to vector<9x9xbf16>
    %149 = vector.extract_strided_slice %134 {offsets = [0, 0], sizes = [9, 16], strides = [1, 1]} : vector<18x16xbf16> to vector<9x16xbf16>
    %cst_54 = arith.constant dense<0.000000e+00> : vector<9x16xf32>
    %150 = tpu.matmul %148, %149, %cst_54 {dimension_numbers = #tpu.dot_dimension_numbers<[1], [0], [0], [1], [0, 0, 1, 1], [], []>} : vector<9x9xbf16>, vector<9x16xbf16>, vector<9x16xf32> -> vector<9x16xf32>
    %151 = vector.extract_strided_slice %132 {offsets = [9, 0], sizes = [9, 16], strides = [1, 1]} : vector<18x16xbf16> to vector<9x16xbf16>
    %152 = vector.extract_strided_slice %133 {offsets = [9, 0], sizes = [9, 16], strides = [1, 1]} : vector<18x16xbf16> to vector<9x16xbf16>
    %cst_55 = arith.constant dense<0.000000e+00> : vector<9x9xf32>
    %153 = tpu.matmul %151, %152, %cst_55 {dimension_numbers = #tpu.dot_dimension_numbers<[1], [1], [0], [0], [0, 0, 1, 0], [], []>} : vector<9x16xbf16>, vector<9x16xbf16>, vector<9x9xf32> -> vector<9x9xf32>
    %cst_56 = arith.constant dense<0xFF800000> : vector<9xf32>
    %154 = vector.multi_reduction <maximumf>, %153, %cst_56 [1] : vector<9x9xf32> to vector<9xf32>
    %155 = vector.shape_cast %154 : vector<9xf32> to vector<9x1xf32>
    %156 = vector.broadcast %155 : vector<9x1xf32> to vector<9x9xf32>
    %157 = arith.subf %153, %156 : vector<9x9xf32>
    %158 = math.exp %157 : vector<9x9xf32>
    %cst_57 = arith.constant dense<0.000000e+00> : vector<9xf32>
    %159 = vector.multi_reduction <add>, %158, %cst_57 [1] : vector<9x9xf32> to vector<9xf32>
    %160 = vector.shape_cast %159 : vector<9xf32> to vector<9x1xf32>
    %161 = tpu.reciprocal %160 {approx = true} : vector<9x1xf32> -> vector<9x1xf32>
    %162 = vector.broadcast %161 : vector<9x1xf32> to vector<9x9xf32>
    %163 = arith.mulf %158, %162 : vector<9x9xf32>
    %164 = arith.truncf %163 : vector<9x9xf32> to vector<9x9xbf16>
    %165 = vector.extract_strided_slice %134 {offsets = [9, 0], sizes = [9, 16], strides = [1, 1]} : vector<18x16xbf16> to vector<9x16xbf16>
    %cst_58 = arith.constant dense<0.000000e+00> : vector<9x16xf32>
    %166 = tpu.matmul %164, %165, %cst_58 {dimension_numbers = #tpu.dot_dimension_numbers<[1], [0], [0], [1], [0, 0, 1, 1], [], []>} : vector<9x9xbf16>, vector<9x16xbf16>, vector<9x16xf32> -> vector<9x16xf32>
    %167 = tpu.concatenate %150, %166 in 0 : vector<9x16xf32>, vector<9x16xf32> -> vector<18x16xf32>
    %168 = tpu.concatenate %131, %167 in 1 : vector<18x16xf32>, vector<18x16xf32> -> vector<18x32xf32>
    %169 = arith.truncf %168 : vector<18x32xf32> to vector<18x32xbf16>
    %c0_59 = arith.constant 0 : index
    %c0_60 = arith.constant 0 : index
    %c0_61 = arith.constant 0 : index
    %170 = vector.load %arg13[%c0_59, %c0_60, %c0_61] : memref<2x32x32xbf16, #tpu.memory_space<vmem>>, vector<1x32x32xbf16>
    %171 = vector.shape_cast %170 : vector<1x32x32xbf16> to vector<32x32xbf16>
    %cst_62 = arith.constant dense<0.000000e+00> : vector<18x32xf32>
    %172 = tpu.matmul %169, %171, %cst_62 {dimension_numbers = #tpu.dot_dimension_numbers<[1], [0], [0], [1], [0, 0, 1, 1], [], []>} : vector<18x32xbf16>, vector<32x32xbf16>, vector<18x32xf32> -> vector<18x32xf32>
    %c0_63 = arith.constant 0 : index
    %c0_64 = arith.constant 0 : index
    %c0_65 = arith.constant 0 : index
    %173 = vector.load %arg14[%c0_63, %c0_64, %c0_65] : memref<2x1x32xf32, #tpu.memory_space<vmem>>, vector<1x1x32xf32>
    %174 = vector.shape_cast %173 : vector<1x1x32xf32> to vector<1x32xf32>
    %175 = vector.broadcast %174 : vector<1x32xf32> to vector<18x32xf32>
    %176 = arith.addf %172, %175 : vector<18x32xf32>
    %177 = arith.addf %64, %176 : vector<18x32xf32>
    %c0_66 = arith.constant 0 : index
    %c0_67 = arith.constant 0 : index
    %c0_68 = arith.constant 0 : index
    %178 = vector.load %arg15[%c0_66, %c0_67, %c0_68] : memref<2x1x32xf32, #tpu.memory_space<vmem>>, vector<1x1x32xf32>
    %179 = vector.shape_cast %178 : vector<1x1x32xf32> to vector<1x32xf32>
    %c0_69 = arith.constant 0 : index
    %c0_70 = arith.constant 0 : index
    %c0_71 = arith.constant 0 : index
    %180 = vector.load %arg16[%c0_69, %c0_70, %c0_71] : memref<2x1x32xf32, #tpu.memory_space<vmem>>, vector<1x1x32xf32>
    %181 = vector.shape_cast %180 : vector<1x1x32xf32> to vector<1x32xf32>
    %cst_72 = arith.constant dense<0.000000e+00> : vector<18xf32>
    %182 = vector.multi_reduction <add>, %177, %cst_72 [1] : vector<18x32xf32> to vector<18xf32>
    %183 = vector.shape_cast %182 : vector<18xf32> to vector<18x1xf32>
    %cst_73 = arith.constant 3.200000e+01 : f32
    %184 = vector.broadcast %cst_73 : f32 to vector<18x1xf32>
    %185 = arith.divf %183, %184 : vector<18x1xf32>
    %186 = vector.broadcast %185 : vector<18x1xf32> to vector<18x32xf32>
    %187 = arith.subf %177, %186 : vector<18x32xf32>
    %188 = arith.mulf %187, %187 : vector<18x32xf32>
    %cst_74 = arith.constant dense<0.000000e+00> : vector<18xf32>
    %189 = vector.multi_reduction <add>, %188, %cst_74 [1] : vector<18x32xf32> to vector<18xf32>
    %190 = vector.shape_cast %189 : vector<18xf32> to vector<18x1xf32>
    %cst_75 = arith.constant 3.200000e+01 : f32
    %191 = vector.broadcast %cst_75 : f32 to vector<18x1xf32>
    %192 = arith.divf %190, %191 : vector<18x1xf32>
    %193 = vector.broadcast %185 : vector<18x1xf32> to vector<18x32xf32>
    %194 = arith.subf %177, %193 : vector<18x32xf32>
    %cst_76 = arith.constant 9.99999974E-6 : f32
    %195 = vector.broadcast %cst_76 : f32 to vector<18x1xf32>
    %196 = arith.addf %192, %195 : vector<18x1xf32>
    %197 = math.rsqrt %196 : vector<18x1xf32>
    %198 = vector.broadcast %197 : vector<18x1xf32> to vector<18x32xf32>
    %199 = arith.mulf %194, %198 : vector<18x32xf32>
    %200 = vector.broadcast %179 : vector<1x32xf32> to vector<18x32xf32>
    %201 = arith.mulf %199, %200 : vector<18x32xf32>
    %202 = vector.broadcast %181 : vector<1x32xf32> to vector<18x32xf32>
    %203 = arith.addf %201, %202 : vector<18x32xf32>
    %204 = arith.truncf %203 : vector<18x32xf32> to vector<18x32xbf16>
    %c0_77 = arith.constant 0 : index
    %c0_78 = arith.constant 0 : index
    %c0_79 = arith.constant 0 : index
    %205 = vector.load %arg17[%c0_77, %c0_78, %c0_79] : memref<2x32x64xbf16, #tpu.memory_space<vmem>>, vector<1x32x64xbf16>
    %206 = vector.shape_cast %205 : vector<1x32x64xbf16> to vector<32x64xbf16>
    %cst_80 = arith.constant dense<0.000000e+00> : vector<18x64xf32>
    %207 = tpu.matmul %204, %206, %cst_80 {dimension_numbers = #tpu.dot_dimension_numbers<[1], [0], [0], [1], [0, 0, 1, 1], [], []>} : vector<18x32xbf16>, vector<32x64xbf16>, vector<18x64xf32> -> vector<18x64xf32>
    %c0_81 = arith.constant 0 : index
    %c0_82 = arith.constant 0 : index
    %c0_83 = arith.constant 0 : index
    %208 = vector.load %arg18[%c0_81, %c0_82, %c0_83] : memref<2x1x64xf32, #tpu.memory_space<vmem>>, vector<1x1x64xf32>
    %209 = vector.shape_cast %208 : vector<1x1x64xf32> to vector<1x64xf32>
    %210 = vector.broadcast %209 : vector<1x64xf32> to vector<18x64xf32>
    %211 = arith.addf %207, %210 : vector<18x64xf32>
    %212 = arith.mulf %211, %211 : vector<18x64xf32>
    %213 = arith.mulf %211, %212 : vector<18x64xf32>
    %cst_84 = arith.constant 4.471500e-02 : f32
    %214 = vector.broadcast %cst_84 : f32 to vector<18x64xf32>
    %215 = arith.mulf %214, %213 : vector<18x64xf32>
    %216 = arith.addf %211, %215 : vector<18x64xf32>
    %cst_85 = arith.constant 0.797884583 : f32
    %217 = vector.broadcast %cst_85 : f32 to vector<18x64xf32>
    %218 = arith.mulf %217, %216 : vector<18x64xf32>
    %219 = math.tanh %218 : vector<18x64xf32>
    %cst_86 = arith.constant 1.000000e+00 : f32
    %220 = vector.broadcast %cst_86 : f32 to vector<18x64xf32>
    %221 = arith.addf %220, %219 : vector<18x64xf32>
    %cst_87 = arith.constant 5.000000e-01 : f32
    %222 = vector.broadcast %cst_87 : f32 to vector<18x64xf32>
    %223 = arith.mulf %222, %221 : vector<18x64xf32>
    %224 = arith.mulf %211, %223 : vector<18x64xf32>
    %225 = arith.truncf %224 : vector<18x64xf32> to vector<18x64xbf16>
    %c0_88 = arith.constant 0 : index
    %c0_89 = arith.constant 0 : index
    %c0_90 = arith.constant 0 : index
    %226 = vector.load %arg19[%c0_88, %c0_89, %c0_90] : memref<2x64x32xbf16, #tpu.memory_space<vmem>>, vector<1x64x32xbf16>
    %227 = vector.shape_cast %226 : vector<1x64x32xbf16> to vector<64x32xbf16>
    %cst_91 = arith.constant dense<0.000000e+00> : vector<18x32xf32>
    %228 = tpu.matmul %225, %227, %cst_91 {dimension_numbers = #tpu.dot_dimension_numbers<[1], [0], [0], [1], [0, 0, 1, 1], [], []>} : vector<18x64xbf16>, vector<64x32xbf16>, vector<18x32xf32> -> vector<18x32xf32>
    %c0_92 = arith.constant 0 : index
    %c0_93 = arith.constant 0 : index
    %c0_94 = arith.constant 0 : index
    %229 = vector.load %arg20[%c0_92, %c0_93, %c0_94] : memref<2x1x32xf32, #tpu.memory_space<vmem>>, vector<1x1x32xf32>
    %230 = vector.shape_cast %229 : vector<1x1x32xf32> to vector<1x32xf32>
    %231 = vector.broadcast %230 : vector<1x32xf32> to vector<18x32xf32>
    %232 = arith.addf %228, %231 : vector<18x32xf32>
    %233 = arith.addf %177, %232 : vector<18x32xf32>
    %c1 = arith.constant 1 : index
    %c0_95 = arith.constant 0 : index
    %c0_96 = arith.constant 0 : index
    %234 = vector.load %arg10[%c1, %c0_95, %c0_96] : memref<2x1x32xf32, #tpu.memory_space<vmem>>, vector<1x1x32xf32>
    %235 = vector.shape_cast %234 : vector<1x1x32xf32> to vector<1x32xf32>
    %c1_97 = arith.constant 1 : index
    %c0_98 = arith.constant 0 : index
    %c0_99 = arith.constant 0 : index
    %236 = vector.load %arg11[%c1_97, %c0_98, %c0_99] : memref<2x1x32xf32, #tpu.memory_space<vmem>>, vector<1x1x32xf32>
    %237 = vector.shape_cast %236 : vector<1x1x32xf32> to vector<1x32xf32>
    %cst_100 = arith.constant dense<0.000000e+00> : vector<18xf32>
    %238 = vector.multi_reduction <add>, %233, %cst_100 [1] : vector<18x32xf32> to vector<18xf32>
    %239 = vector.shape_cast %238 : vector<18xf32> to vector<18x1xf32>
    %cst_101 = arith.constant 3.200000e+01 : f32
    %240 = vector.broadcast %cst_101 : f32 to vector<18x1xf32>
    %241 = arith.divf %239, %240 : vector<18x1xf32>
    %242 = vector.broadcast %241 : vector<18x1xf32> to vector<18x32xf32>
    %243 = arith.subf %233, %242 : vector<18x32xf32>
    %244 = arith.mulf %243, %243 : vector<18x32xf32>
    %cst_102 = arith.constant dense<0.000000e+00> : vector<18xf32>
    %245 = vector.multi_reduction <add>, %244, %cst_102 [1] : vector<18x32xf32> to vector<18xf32>
    %246 = vector.shape_cast %245 : vector<18xf32> to vector<18x1xf32>
    %cst_103 = arith.constant 3.200000e+01 : f32
    %247 = vector.broadcast %cst_103 : f32 to vector<18x1xf32>
    %248 = arith.divf %246, %247 : vector<18x1xf32>
    %249 = vector.broadcast %241 : vector<18x1xf32> to vector<18x32xf32>
    %250 = arith.subf %233, %249 : vector<18x32xf32>
    %cst_104 = arith.constant 9.99999974E-6 : f32
    %251 = vector.broadcast %cst_104 : f32 to vector<18x1xf32>
    %252 = arith.addf %248, %251 : vector<18x1xf32>
    %253 = math.rsqrt %252 : vector<18x1xf32>
    %254 = vector.broadcast %253 : vector<18x1xf32> to vector<18x32xf32>
    %255 = arith.mulf %250, %254 : vector<18x32xf32>
    %256 = vector.broadcast %235 : vector<1x32xf32> to vector<18x32xf32>
    %257 = arith.mulf %255, %256 : vector<18x32xf32>
    %258 = vector.broadcast %237 : vector<1x32xf32> to vector<18x32xf32>
    %259 = arith.addf %257, %258 : vector<18x32xf32>
    %260 = arith.truncf %259 : vector<18x32xf32> to vector<18x32xbf16>
    %c1_105 = arith.constant 1 : index
    %c0_106 = arith.constant 0 : index
    %c0_107 = arith.constant 0 : index
    %261 = vector.load %arg12[%c1_105, %c0_106, %c0_107] : memref<2x32x96xbf16, #tpu.memory_space<vmem>>, vector<1x32x96xbf16>
    %262 = vector.shape_cast %261 : vector<1x32x96xbf16> to vector<32x96xbf16>
    %cst_108 = arith.constant dense<0.000000e+00> : vector<18x96xf32>
    %263 = tpu.matmul %260, %262, %cst_108 {dimension_numbers = #tpu.dot_dimension_numbers<[1], [0], [0], [1], [0, 0, 1, 1], [], []>} : vector<18x32xbf16>, vector<32x96xbf16>, vector<18x96xf32> -> vector<18x96xf32>
    %264 = arith.truncf %263 : vector<18x96xf32> to vector<18x96xbf16>
    %265 = vector.extract_strided_slice %264 {offsets = [0, 0], sizes = [18, 16], strides = [1, 1]} : vector<18x96xbf16> to vector<18x16xbf16>
    %266 = vector.extract_strided_slice %264 {offsets = [0, 32], sizes = [18, 16], strides = [1, 1]} : vector<18x96xbf16> to vector<18x16xbf16>
    %267 = vector.extract_strided_slice %264 {offsets = [0, 64], sizes = [18, 16], strides = [1, 1]} : vector<18x96xbf16> to vector<18x16xbf16>
    %268 = vector.extract_strided_slice %265 {offsets = [0, 0], sizes = [9, 16], strides = [1, 1]} : vector<18x16xbf16> to vector<9x16xbf16>
    %269 = vector.extract_strided_slice %266 {offsets = [0, 0], sizes = [9, 16], strides = [1, 1]} : vector<18x16xbf16> to vector<9x16xbf16>
    %cst_109 = arith.constant dense<0.000000e+00> : vector<9x9xf32>
    %270 = tpu.matmul %268, %269, %cst_109 {dimension_numbers = #tpu.dot_dimension_numbers<[1], [1], [0], [0], [0, 0, 1, 0], [], []>} : vector<9x16xbf16>, vector<9x16xbf16>, vector<9x9xf32> -> vector<9x9xf32>
    %cst_110 = arith.constant dense<0xFF800000> : vector<9xf32>
    %271 = vector.multi_reduction <maximumf>, %270, %cst_110 [1] : vector<9x9xf32> to vector<9xf32>
    %272 = vector.shape_cast %271 : vector<9xf32> to vector<9x1xf32>
    %273 = vector.broadcast %272 : vector<9x1xf32> to vector<9x9xf32>
    %274 = arith.subf %270, %273 : vector<9x9xf32>
    %275 = math.exp %274 : vector<9x9xf32>
    %cst_111 = arith.constant dense<0.000000e+00> : vector<9xf32>
    %276 = vector.multi_reduction <add>, %275, %cst_111 [1] : vector<9x9xf32> to vector<9xf32>
    %277 = vector.shape_cast %276 : vector<9xf32> to vector<9x1xf32>
    %278 = tpu.reciprocal %277 {approx = true} : vector<9x1xf32> -> vector<9x1xf32>
    %279 = vector.broadcast %278 : vector<9x1xf32> to vector<9x9xf32>
    %280 = arith.mulf %275, %279 : vector<9x9xf32>
    %281 = arith.truncf %280 : vector<9x9xf32> to vector<9x9xbf16>
    %282 = vector.extract_strided_slice %267 {offsets = [0, 0], sizes = [9, 16], strides = [1, 1]} : vector<18x16xbf16> to vector<9x16xbf16>
    %cst_112 = arith.constant dense<0.000000e+00> : vector<9x16xf32>
    %283 = tpu.matmul %281, %282, %cst_112 {dimension_numbers = #tpu.dot_dimension_numbers<[1], [0], [0], [1], [0, 0, 1, 1], [], []>} : vector<9x9xbf16>, vector<9x16xbf16>, vector<9x16xf32> -> vector<9x16xf32>
    %284 = vector.extract_strided_slice %265 {offsets = [9, 0], sizes = [9, 16], strides = [1, 1]} : vector<18x16xbf16> to vector<9x16xbf16>
    %285 = vector.extract_strided_slice %266 {offsets = [9, 0], sizes = [9, 16], strides = [1, 1]} : vector<18x16xbf16> to vector<9x16xbf16>
    %cst_113 = arith.constant dense<0.000000e+00> : vector<9x9xf32>
    %286 = tpu.matmul %284, %285, %cst_113 {dimension_numbers = #tpu.dot_dimension_numbers<[1], [1], [0], [0], [0, 0, 1, 0], [], []>} : vector<9x16xbf16>, vector<9x16xbf16>, vector<9x9xf32> -> vector<9x9xf32>
    %cst_114 = arith.constant dense<0xFF800000> : vector<9xf32>
    %287 = vector.multi_reduction <maximumf>, %286, %cst_114 [1] : vector<9x9xf32> to vector<9xf32>
    %288 = vector.shape_cast %287 : vector<9xf32> to vector<9x1xf32>
    %289 = vector.broadcast %288 : vector<9x1xf32> to vector<9x9xf32>
    %290 = arith.subf %286, %289 : vector<9x9xf32>
    %291 = math.exp %290 : vector<9x9xf32>
    %cst_115 = arith.constant dense<0.000000e+00> : vector<9xf32>
    %292 = vector.multi_reduction <add>, %291, %cst_115 [1] : vector<9x9xf32> to vector<9xf32>
    %293 = vector.shape_cast %292 : vector<9xf32> to vector<9x1xf32>
    %294 = tpu.reciprocal %293 {approx = true} : vector<9x1xf32> -> vector<9x1xf32>
    %295 = vector.broadcast %294 : vector<9x1xf32> to vector<9x9xf32>
    %296 = arith.mulf %291, %295 : vector<9x9xf32>
    %297 = arith.truncf %296 : vector<9x9xf32> to vector<9x9xbf16>
    %298 = vector.extract_strided_slice %267 {offsets = [9, 0], sizes = [9, 16], strides = [1, 1]} : vector<18x16xbf16> to vector<9x16xbf16>
    %cst_116 = arith.constant dense<0.000000e+00> : vector<9x16xf32>
    %299 = tpu.matmul %297, %298, %cst_116 {dimension_numbers = #tpu.dot_dimension_numbers<[1], [0], [0], [1], [0, 0, 1, 1], [], []>} : vector<9x9xbf16>, vector<9x16xbf16>, vector<9x16xf32> -> vector<9x16xf32>
    %300 = tpu.concatenate %283, %299 in 0 : vector<9x16xf32>, vector<9x16xf32> -> vector<18x16xf32>
    %301 = vector.extract_strided_slice %264 {offsets = [0, 16], sizes = [18, 16], strides = [1, 1]} : vector<18x96xbf16> to vector<18x16xbf16>
    %302 = vector.extract_strided_slice %264 {offsets = [0, 48], sizes = [18, 16], strides = [1, 1]} : vector<18x96xbf16> to vector<18x16xbf16>
    %303 = vector.extract_strided_slice %264 {offsets = [0, 80], sizes = [18, 16], strides = [1, 1]} : vector<18x96xbf16> to vector<18x16xbf16>
    %304 = vector.extract_strided_slice %301 {offsets = [0, 0], sizes = [9, 16], strides = [1, 1]} : vector<18x16xbf16> to vector<9x16xbf16>
    %305 = vector.extract_strided_slice %302 {offsets = [0, 0], sizes = [9, 16], strides = [1, 1]} : vector<18x16xbf16> to vector<9x16xbf16>
    %cst_117 = arith.constant dense<0.000000e+00> : vector<9x9xf32>
    %306 = tpu.matmul %304, %305, %cst_117 {dimension_numbers = #tpu.dot_dimension_numbers<[1], [1], [0], [0], [0, 0, 1, 0], [], []>} : vector<9x16xbf16>, vector<9x16xbf16>, vector<9x9xf32> -> vector<9x9xf32>
    %cst_118 = arith.constant dense<0xFF800000> : vector<9xf32>
    %307 = vector.multi_reduction <maximumf>, %306, %cst_118 [1] : vector<9x9xf32> to vector<9xf32>
    %308 = vector.shape_cast %307 : vector<9xf32> to vector<9x1xf32>
    %309 = vector.broadcast %308 : vector<9x1xf32> to vector<9x9xf32>
    %310 = arith.subf %306, %309 : vector<9x9xf32>
    %311 = math.exp %310 : vector<9x9xf32>
    %cst_119 = arith.constant dense<0.000000e+00> : vector<9xf32>
    %312 = vector.multi_reduction <add>, %311, %cst_119 [1] : vector<9x9xf32> to vector<9xf32>
    %313 = vector.shape_cast %312 : vector<9xf32> to vector<9x1xf32>
    %314 = tpu.reciprocal %313 {approx = true} : vector<9x1xf32> -> vector<9x1xf32>
    %315 = vector.broadcast %314 : vector<9x1xf32> to vector<9x9xf32>
    %316 = arith.mulf %311, %315 : vector<9x9xf32>
    %317 = arith.truncf %316 : vector<9x9xf32> to vector<9x9xbf16>
    %318 = vector.extract_strided_slice %303 {offsets = [0, 0], sizes = [9, 16], strides = [1, 1]} : vector<18x16xbf16> to vector<9x16xbf16>
    %cst_120 = arith.constant dense<0.000000e+00> : vector<9x16xf32>
    %319 = tpu.matmul %317, %318, %cst_120 {dimension_numbers = #tpu.dot_dimension_numbers<[1], [0], [0], [1], [0, 0, 1, 1], [], []>} : vector<9x9xbf16>, vector<9x16xbf16>, vector<9x16xf32> -> vector<9x16xf32>
    %320 = vector.extract_strided_slice %301 {offsets = [9, 0], sizes = [9, 16], strides = [1, 1]} : vector<18x16xbf16> to vector<9x16xbf16>
    %321 = vector.extract_strided_slice %302 {offsets = [9, 0], sizes = [9, 16], strides = [1, 1]} : vector<18x16xbf16> to vector<9x16xbf16>
    %cst_121 = arith.constant dense<0.000000e+00> : vector<9x9xf32>
    %322 = tpu.matmul %320, %321, %cst_121 {dimension_numbers = #tpu.dot_dimension_numbers<[1], [1], [0], [0], [0, 0, 1, 0], [], []>} : vector<9x16xbf16>, vector<9x16xbf16>, vector<9x9xf32> -> vector<9x9xf32>
    %cst_122 = arith.constant dense<0xFF800000> : vector<9xf32>
    %323 = vector.multi_reduction <maximumf>, %322, %cst_122 [1] : vector<9x9xf32> to vector<9xf32>
    %324 = vector.shape_cast %323 : vector<9xf32> to vector<9x1xf32>
    %325 = vector.broadcast %324 : vector<9x1xf32> to vector<9x9xf32>
    %326 = arith.subf %322, %325 : vector<9x9xf32>
    %327 = math.exp %326 : vector<9x9xf32>
    %cst_123 = arith.constant dense<0.000000e+00> : vector<9xf32>
    %328 = vector.multi_reduction <add>, %327, %cst_123 [1] : vector<9x9xf32> to vector<9xf32>
    %329 = vector.shape_cast %328 : vector<9xf32> to vector<9x1xf32>
    %330 = tpu.reciprocal %329 {approx = true} : vector<9x1xf32> -> vector<9x1xf32>
    %331 = vector.broadcast %330 : vector<9x1xf32> to vector<9x9xf32>
    %332 = arith.mulf %327, %331 : vector<9x9xf32>
    %333 = arith.truncf %332 : vector<9x9xf32> to vector<9x9xbf16>
    %334 = vector.extract_strided_slice %303 {offsets = [9, 0], sizes = [9, 16], strides = [1, 1]} : vector<18x16xbf16> to vector<9x16xbf16>
    %cst_124 = arith.constant dense<0.000000e+00> : vector<9x16xf32>
    %335 = tpu.matmul %333, %334, %cst_124 {dimension_numbers = #tpu.dot_dimension_numbers<[1], [0], [0], [1], [0, 0, 1, 1], [], []>} : vector<9x9xbf16>, vector<9x16xbf16>, vector<9x16xf32> -> vector<9x16xf32>
    %336 = tpu.concatenate %319, %335 in 0 : vector<9x16xf32>, vector<9x16xf32> -> vector<18x16xf32>
    %337 = tpu.concatenate %300, %336 in 1 : vector<18x16xf32>, vector<18x16xf32> -> vector<18x32xf32>
    %338 = arith.truncf %337 : vector<18x32xf32> to vector<18x32xbf16>
    %c1_125 = arith.constant 1 : index
    %c0_126 = arith.constant 0 : index
    %c0_127 = arith.constant 0 : index
    %339 = vector.load %arg13[%c1_125, %c0_126, %c0_127] : memref<2x32x32xbf16, #tpu.memory_space<vmem>>, vector<1x32x32xbf16>
    %340 = vector.shape_cast %339 : vector<1x32x32xbf16> to vector<32x32xbf16>
    %cst_128 = arith.constant dense<0.000000e+00> : vector<18x32xf32>
    %341 = tpu.matmul %338, %340, %cst_128 {dimension_numbers = #tpu.dot_dimension_numbers<[1], [0], [0], [1], [0, 0, 1, 1], [], []>} : vector<18x32xbf16>, vector<32x32xbf16>, vector<18x32xf32> -> vector<18x32xf32>
    %c1_129 = arith.constant 1 : index
    %c0_130 = arith.constant 0 : index
    %c0_131 = arith.constant 0 : index
    %342 = vector.load %arg14[%c1_129, %c0_130, %c0_131] : memref<2x1x32xf32, #tpu.memory_space<vmem>>, vector<1x1x32xf32>
    %343 = vector.shape_cast %342 : vector<1x1x32xf32> to vector<1x32xf32>
    %344 = vector.broadcast %343 : vector<1x32xf32> to vector<18x32xf32>
    %345 = arith.addf %341, %344 : vector<18x32xf32>
    %346 = arith.addf %233, %345 : vector<18x32xf32>
    %c1_132 = arith.constant 1 : index
    %c0_133 = arith.constant 0 : index
    %c0_134 = arith.constant 0 : index
    %347 = vector.load %arg15[%c1_132, %c0_133, %c0_134] : memref<2x1x32xf32, #tpu.memory_space<vmem>>, vector<1x1x32xf32>
    %348 = vector.shape_cast %347 : vector<1x1x32xf32> to vector<1x32xf32>
    %c1_135 = arith.constant 1 : index
    %c0_136 = arith.constant 0 : index
    %c0_137 = arith.constant 0 : index
    %349 = vector.load %arg16[%c1_135, %c0_136, %c0_137] : memref<2x1x32xf32, #tpu.memory_space<vmem>>, vector<1x1x32xf32>
    %350 = vector.shape_cast %349 : vector<1x1x32xf32> to vector<1x32xf32>
    %cst_138 = arith.constant dense<0.000000e+00> : vector<18xf32>
    %351 = vector.multi_reduction <add>, %346, %cst_138 [1] : vector<18x32xf32> to vector<18xf32>
    %352 = vector.shape_cast %351 : vector<18xf32> to vector<18x1xf32>
    %cst_139 = arith.constant 3.200000e+01 : f32
    %353 = vector.broadcast %cst_139 : f32 to vector<18x1xf32>
    %354 = arith.divf %352, %353 : vector<18x1xf32>
    %355 = vector.broadcast %354 : vector<18x1xf32> to vector<18x32xf32>
    %356 = arith.subf %346, %355 : vector<18x32xf32>
    %357 = arith.mulf %356, %356 : vector<18x32xf32>
    %cst_140 = arith.constant dense<0.000000e+00> : vector<18xf32>
    %358 = vector.multi_reduction <add>, %357, %cst_140 [1] : vector<18x32xf32> to vector<18xf32>
    %359 = vector.shape_cast %358 : vector<18xf32> to vector<18x1xf32>
    %cst_141 = arith.constant 3.200000e+01 : f32
    %360 = vector.broadcast %cst_141 : f32 to vector<18x1xf32>
    %361 = arith.divf %359, %360 : vector<18x1xf32>
    %362 = vector.broadcast %354 : vector<18x1xf32> to vector<18x32xf32>
    %363 = arith.subf %346, %362 : vector<18x32xf32>
    %cst_142 = arith.constant 9.99999974E-6 : f32
    %364 = vector.broadcast %cst_142 : f32 to vector<18x1xf32>
    %365 = arith.addf %361, %364 : vector<18x1xf32>
    %366 = math.rsqrt %365 : vector<18x1xf32>
    %367 = vector.broadcast %366 : vector<18x1xf32> to vector<18x32xf32>
    %368 = arith.mulf %363, %367 : vector<18x32xf32>
    %369 = vector.broadcast %348 : vector<1x32xf32> to vector<18x32xf32>
    %370 = arith.mulf %368, %369 : vector<18x32xf32>
    %371 = vector.broadcast %350 : vector<1x32xf32> to vector<18x32xf32>
    %372 = arith.addf %370, %371 : vector<18x32xf32>
    %373 = arith.truncf %372 : vector<18x32xf32> to vector<18x32xbf16>
    %c1_143 = arith.constant 1 : index
    %c0_144 = arith.constant 0 : index
    %c0_145 = arith.constant 0 : index
    %374 = vector.load %arg17[%c1_143, %c0_144, %c0_145] : memref<2x32x64xbf16, #tpu.memory_space<vmem>>, vector<1x32x64xbf16>
    %375 = vector.shape_cast %374 : vector<1x32x64xbf16> to vector<32x64xbf16>
    %cst_146 = arith.constant dense<0.000000e+00> : vector<18x64xf32>
    %376 = tpu.matmul %373, %375, %cst_146 {dimension_numbers = #tpu.dot_dimension_numbers<[1], [0], [0], [1], [0, 0, 1, 1], [], []>} : vector<18x32xbf16>, vector<32x64xbf16>, vector<18x64xf32> -> vector<18x64xf32>
    %c1_147 = arith.constant 1 : index
    %c0_148 = arith.constant 0 : index
    %c0_149 = arith.constant 0 : index
    %377 = vector.load %arg18[%c1_147, %c0_148, %c0_149] : memref<2x1x64xf32, #tpu.memory_space<vmem>>, vector<1x1x64xf32>
    %378 = vector.shape_cast %377 : vector<1x1x64xf32> to vector<1x64xf32>
    %379 = vector.broadcast %378 : vector<1x64xf32> to vector<18x64xf32>
    %380 = arith.addf %376, %379 : vector<18x64xf32>
    %381 = arith.mulf %380, %380 : vector<18x64xf32>
    %382 = arith.mulf %380, %381 : vector<18x64xf32>
    %cst_150 = arith.constant 4.471500e-02 : f32
    %383 = vector.broadcast %cst_150 : f32 to vector<18x64xf32>
    %384 = arith.mulf %383, %382 : vector<18x64xf32>
    %385 = arith.addf %380, %384 : vector<18x64xf32>
    %cst_151 = arith.constant 0.797884583 : f32
    %386 = vector.broadcast %cst_151 : f32 to vector<18x64xf32>
    %387 = arith.mulf %386, %385 : vector<18x64xf32>
    %388 = math.tanh %387 : vector<18x64xf32>
    %cst_152 = arith.constant 1.000000e+00 : f32
    %389 = vector.broadcast %cst_152 : f32 to vector<18x64xf32>
    %390 = arith.addf %389, %388 : vector<18x64xf32>
    %cst_153 = arith.constant 5.000000e-01 : f32
    %391 = vector.broadcast %cst_153 : f32 to vector<18x64xf32>
    %392 = arith.mulf %391, %390 : vector<18x64xf32>
    %393 = arith.mulf %380, %392 : vector<18x64xf32>
    %394 = arith.truncf %393 : vector<18x64xf32> to vector<18x64xbf16>
    %c1_154 = arith.constant 1 : index
    %c0_155 = arith.constant 0 : index
    %c0_156 = arith.constant 0 : index
    %395 = vector.load %arg19[%c1_154, %c0_155, %c0_156] : memref<2x64x32xbf16, #tpu.memory_space<vmem>>, vector<1x64x32xbf16>
    %396 = vector.shape_cast %395 : vector<1x64x32xbf16> to vector<64x32xbf16>
    %cst_157 = arith.constant dense<0.000000e+00> : vector<18x32xf32>
    %397 = tpu.matmul %394, %396, %cst_157 {dimension_numbers = #tpu.dot_dimension_numbers<[1], [0], [0], [1], [0, 0, 1, 1], [], []>} : vector<18x64xbf16>, vector<64x32xbf16>, vector<18x32xf32> -> vector<18x32xf32>
    %c1_158 = arith.constant 1 : index
    %c0_159 = arith.constant 0 : index
    %c0_160 = arith.constant 0 : index
    %398 = vector.load %arg20[%c1_158, %c0_159, %c0_160] : memref<2x1x32xf32, #tpu.memory_space<vmem>>, vector<1x1x32xf32>
    %399 = vector.shape_cast %398 : vector<1x1x32xf32> to vector<1x32xf32>
    %400 = vector.broadcast %399 : vector<1x32xf32> to vector<18x32xf32>
    %401 = arith.addf %397, %400 : vector<18x32xf32>
    %402 = arith.addf %346, %401 : vector<18x32xf32>
    %c0_161 = arith.constant 0 : index
    %c0_162 = arith.constant 0 : index
    %403 = vector.load %arg21[%c0_161, %c0_162] : memref<1x32xf32, #tpu.memory_space<vmem>>, vector<1x32xf32>
    %c0_163 = arith.constant 0 : index
    %c0_164 = arith.constant 0 : index
    %404 = vector.load %arg22[%c0_163, %c0_164] : memref<1x32xf32, #tpu.memory_space<vmem>>, vector<1x32xf32>
    %cst_165 = arith.constant dense<0.000000e+00> : vector<18xf32>
    %405 = vector.multi_reduction <add>, %402, %cst_165 [1] : vector<18x32xf32> to vector<18xf32>
    %406 = vector.shape_cast %405 : vector<18xf32> to vector<18x1xf32>
    %cst_166 = arith.constant 3.200000e+01 : f32
    %407 = vector.broadcast %cst_166 : f32 to vector<18x1xf32>
    %408 = arith.divf %406, %407 : vector<18x1xf32>
    %409 = vector.broadcast %408 : vector<18x1xf32> to vector<18x32xf32>
    %410 = arith.subf %402, %409 : vector<18x32xf32>
    %411 = arith.mulf %410, %410 : vector<18x32xf32>
    %cst_167 = arith.constant dense<0.000000e+00> : vector<18xf32>
    %412 = vector.multi_reduction <add>, %411, %cst_167 [1] : vector<18x32xf32> to vector<18xf32>
    %413 = vector.shape_cast %412 : vector<18xf32> to vector<18x1xf32>
    %cst_168 = arith.constant 3.200000e+01 : f32
    %414 = vector.broadcast %cst_168 : f32 to vector<18x1xf32>
    %415 = arith.divf %413, %414 : vector<18x1xf32>
    %416 = vector.broadcast %408 : vector<18x1xf32> to vector<18x32xf32>
    %417 = arith.subf %402, %416 : vector<18x32xf32>
    %cst_169 = arith.constant 9.99999974E-6 : f32
    %418 = vector.broadcast %cst_169 : f32 to vector<18x1xf32>
    %419 = arith.addf %415, %418 : vector<18x1xf32>
    %420 = math.rsqrt %419 : vector<18x1xf32>
    %421 = vector.broadcast %420 : vector<18x1xf32> to vector<18x32xf32>
    %422 = arith.mulf %417, %421 : vector<18x32xf32>
    %423 = vector.broadcast %403 : vector<1x32xf32> to vector<18x32xf32>
    %424 = arith.mulf %422, %423 : vector<18x32xf32>
    %425 = vector.broadcast %404 : vector<1x32xf32> to vector<18x32xf32>
    %426 = arith.addf %424, %425 : vector<18x32xf32>
    %427 = vector.extract_strided_slice %426 {offsets = [0, 0], sizes = [9, 32], strides = [1, 1]} : vector<18x32xf32> to vector<9x32xf32>
    %428 = vector.extract_strided_slice %427 {offsets = [0, 0], sizes = [1, 32], strides = [1, 1]} : vector<9x32xf32> to vector<1x32xf32>
    %429 = vector.extract_strided_slice %426 {offsets = [9, 0], sizes = [9, 32], strides = [1, 1]} : vector<18x32xf32> to vector<9x32xf32>
    %430 = vector.extract_strided_slice %429 {offsets = [0, 0], sizes = [1, 32], strides = [1, 1]} : vector<9x32xf32> to vector<1x32xf32>
    %431 = tpu.concatenate %428, %430 in 0 : vector<1x32xf32>, vector<1x32xf32> -> vector<2x32xf32>
    %c0_170 = arith.constant 0 : index
    %c0_171 = arith.constant 0 : index
    %432 = vector.load %arg23[%c0_170, %c0_171] : memref<1x32xf32, #tpu.memory_space<vmem>>, vector<1x32xf32>
    %c0_172 = arith.constant 0 : index
    %c0_173 = arith.constant 0 : index
    %433 = vector.load %arg24[%c0_172, %c0_173] : memref<1x32xf32, #tpu.memory_space<vmem>>, vector<1x32xf32>
    %cst_174 = arith.constant dense<0.000000e+00> : vector<2xf32>
    %434 = vector.multi_reduction <add>, %431, %cst_174 [1] : vector<2x32xf32> to vector<2xf32>
    %435 = vector.shape_cast %434 : vector<2xf32> to vector<2x1xf32>
    %cst_175 = arith.constant 3.200000e+01 : f32
    %436 = vector.broadcast %cst_175 : f32 to vector<2x1xf32>
    %437 = arith.divf %435, %436 : vector<2x1xf32>
    %438 = vector.broadcast %437 : vector<2x1xf32> to vector<2x32xf32>
    %439 = arith.subf %431, %438 : vector<2x32xf32>
    %440 = arith.mulf %439, %439 : vector<2x32xf32>
    %cst_176 = arith.constant dense<0.000000e+00> : vector<2xf32>
    %441 = vector.multi_reduction <add>, %440, %cst_176 [1] : vector<2x32xf32> to vector<2xf32>
    %442 = vector.shape_cast %441 : vector<2xf32> to vector<2x1xf32>
    %cst_177 = arith.constant 3.200000e+01 : f32
    %443 = vector.broadcast %cst_177 : f32 to vector<2x1xf32>
    %444 = arith.divf %442, %443 : vector<2x1xf32>
    %445 = vector.broadcast %437 : vector<2x1xf32> to vector<2x32xf32>
    %446 = arith.subf %431, %445 : vector<2x32xf32>
    %cst_178 = arith.constant 9.99999974E-6 : f32
    %447 = vector.broadcast %cst_178 : f32 to vector<2x1xf32>
    %448 = arith.addf %444, %447 : vector<2x1xf32>
    %449 = math.rsqrt %448 : vector<2x1xf32>
    %450 = vector.broadcast %449 : vector<2x1xf32> to vector<2x32xf32>
    %451 = arith.mulf %446, %450 : vector<2x32xf32>
    %452 = vector.broadcast %432 : vector<1x32xf32> to vector<2x32xf32>
    %453 = arith.mulf %451, %452 : vector<2x32xf32>
    %454 = vector.broadcast %433 : vector<1x32xf32> to vector<2x32xf32>
    %455 = arith.addf %453, %454 : vector<2x32xf32>
    %456 = arith.truncf %455 : vector<2x32xf32> to vector<2x32xbf16>
    %c0_179 = arith.constant 0 : index
    %c0_180 = arith.constant 0 : index
    %457 = vector.load %arg25[%c0_179, %c0_180] : memref<32x128xbf16, #tpu.memory_space<vmem>>, vector<32x128xbf16>
    %cst_181 = arith.constant dense<0.000000e+00> : vector<2x128xf32>
    %458 = tpu.matmul %456, %457, %cst_181 {dimension_numbers = #tpu.dot_dimension_numbers<[1], [0], [0], [1], [0, 0, 1, 1], [], []>} : vector<2x32xbf16>, vector<32x128xbf16>, vector<2x128xf32> -> vector<2x128xf32>
    %c0_182 = arith.constant 0 : index
    %c0_183 = arith.constant 0 : index
    %459 = vector.load %arg26[%c0_182, %c0_183] : memref<1x128xf32, #tpu.memory_space<vmem>>, vector<1x128xf32>
    %460 = vector.broadcast %459 : vector<1x128xf32> to vector<2x128xf32>
    %461 = arith.addf %458, %460 : vector<2x128xf32>
    %462 = vector.shape_cast %461 : vector<2x128xf32> to vector<2x1x128xf32>
    %c0_184 = arith.constant 0 : index
    %c0_185 = arith.constant 0 : index
    %c0_186 = arith.constant 0 : index
    %463 = vector.load %arg27[%c0_184, %c0_185, %c0_186] : memref<2x1x128xf32, #tpu.memory_space<vmem>>, vector<2x1x128xf32>
    tpu.vector_store %arg27[%c0_184, %c0_185, %c0_186], %462 {strides = array<i32>} : memref<2x1x128xf32, #tpu.memory_space<vmem>>, vector<2x1x128xf32>,
    return
  }
  func.func @transform_0(%arg0: i32) -> (i32, i32, i32) {
    %c0_i32 = arith.constant 0 : i32
    %c0_i32_0 = arith.constant 0 : i32
    %c0_i32_1 = arith.constant 0 : i32
    return %arg0, %c0_i32, %c0_i32_0 : i32, i32, i32
  }
  func.func @transform_1(%arg0: i32) -> (i32, i32) {
    %c0_i32 = arith.constant 0 : i32
    %c0_i32_0 = arith.constant 0 : i32
    %c0_i32_1 = arith.constant 0 : i32
    return %c0_i32, %c0_i32_0 : i32, i32
  }
  func.func @transform_2(%arg0: i32) -> (i32, i32) {
    %c0_i32 = arith.constant 0 : i32
    %c0_i32_0 = arith.constant 0 : i32
    %c0_i32_1 = arith.constant 0 : i32
    return %c0_i32, %c0_i32_0 : i32, i32
  }
  func.func @transform_3(%arg0: i32) -> (i32, i32) {
    %c0_i32 = arith.constant 0 : i32
    %c0_i32_0 = arith.constant 0 : i32
    %c0_i32_1 = arith.constant 0 : i32
    return %c0_i32, %c0_i32_0 : i32, i32
  }
  func.func @transform_4(%arg0: i32) -> (i32, i32) {
    %c0_i32 = arith.constant 0 : i32
    %c0_i32_0 = arith.constant 0 : i32
    %c0_i32_1 = arith.constant 0 : i32
    return %c0_i32, %c0_i32_0 : i32, i32
  }
  func.func @transform_5(%arg0: i32) -> (i32, i32) {
    %c0_i32 = arith.constant 0 : i32
    %c0_i32_0 = arith.constant 0 : i32
    %c0_i32_1 = arith.constant 0 : i32
    return %c0_i32, %c0_i32_0 : i32, i32
  }
  func.func @transform_6(%arg0: i32) -> (i32, i32) {
    %c0_i32 = arith.constant 0 : i32
    %c0_i32_0 = arith.constant 0 : i32
    %c0_i32_1 = arith.constant 0 : i32
    return %c0_i32, %c0_i32_0 : i32, i32
  }
  func.func @transform_7(%arg0: i32) -> (i32, i32) {
    %c0_i32 = arith.constant 0 : i32
    %c0_i32_0 = arith.constant 0 : i32
    %c0_i32_1 = arith.constant 0 : i32
    return %c0_i32, %c0_i32_0 : i32, i32
  }
  func.func @transform_8(%arg0: i32) -> (i32, i32) {
    %c0_i32 = arith.constant 0 : i32
    %c0_i32_0 = arith.constant 0 : i32
    %c0_i32_1 = arith.constant 0 : i32
    return %c0_i32, %c0_i32_0 : i32, i32
  }
  func.func @transform_9(%arg0: i32) -> (i32, i32, i32) {
    %c0_i32 = arith.constant 0 : i32
    %c0_i32_0 = arith.constant 0 : i32
    %c0_i32_1 = arith.constant 0 : i32
    %c0_i32_2 = arith.constant 0 : i32
    return %c0_i32, %c0_i32_0, %c0_i32_1 : i32, i32, i32
  }
  func.func @transform_10(%arg0: i32) -> (i32, i32, i32) {
    %c0_i32 = arith.constant 0 : i32
    %c0_i32_0 = arith.constant 0 : i32
    %c0_i32_1 = arith.constant 0 : i32
    %c0_i32_2 = arith.constant 0 : i32
    return %c0_i32, %c0_i32_0, %c0_i32_1 : i32, i32, i32
  }
  func.func @transform_11(%arg0: i32) -> (i32, i32, i32) {
    %c0_i32 = arith.constant 0 : i32
    %c0_i32_0 = arith.constant 0 : i32
    %c0_i32_1 = arith.constant 0 : i32
    %c0_i32_2 = arith.constant 0 : i32
    return %c0_i32, %c0_i32_0, %c0_i32_1 : i32, i32, i32
  }
  func.func @transform_12(%arg0: i32) -> (i32, i32, i32) {
    %c0_i32 = arith.constant 0 : i32
    %c0_i32_0 = arith.constant 0 : i32
    %c0_i32_1 = arith.constant 0 : i32
    %c0_i32_2 = arith.constant 0 : i32
    return %c0_i32, %c0_i32_0, %c0_i32_1 : i32, i32, i32
  }
  func.func @transform_13(%arg0: i32) -> (i32, i32, i32) {
    %c0_i32 = arith.constant 0 : i32
    %c0_i32_0 = arith.constant 0 : i32
    %c0_i32_1 = arith.constant 0 : i32
    %c0_i32_2 = arith.constant 0 : i32
    return %c0_i32, %c0_i32_0, %c0_i32_1 : i32, i32, i32
  }
  func.func @transform_14(%arg0: i32) -> (i32, i32, i32) {
    %c0_i32 = arith.constant 0 : i32
    %c0_i32_0 = arith.constant 0 : i32
    %c0_i32_1 = arith.constant 0 : i32
    %c0_i32_2 = arith.constant 0 : i32
    return %c0_i32, %c0_i32_0, %c0_i32_1 : i32, i32, i32
  }
  func.func @transform_15(%arg0: i32) -> (i32, i32, i32) {
    %c0_i32 = arith.constant 0 : i32
    %c0_i32_0 = arith.constant 0 : i32
    %c0_i32_1 = arith.constant 0 : i32
    %c0_i32_2 = arith.constant 0 : i32
    return %c0_i32, %c0_i32_0, %c0_i32_1 : i32, i32, i32
  }
  func.func @transform_16(%arg0: i32) -> (i32, i32, i32) {
    %c0_i32 = arith.constant 0 : i32
    %c0_i32_0 = arith.constant 0 : i32
    %c0_i32_1 = arith.constant 0 : i32
    %c0_i32_2 = arith.constant 0 : i32
    return %c0_i32, %c0_i32_0, %c0_i32_1 : i32, i32, i32
  }
  func.func @transform_17(%arg0: i32) -> (i32, i32, i32) {
    %c0_i32 = arith.constant 0 : i32
    %c0_i32_0 = arith.constant 0 : i32
    %c0_i32_1 = arith.constant 0 : i32
    %c0_i32_2 = arith.constant 0 : i32
    return %c0_i32, %c0_i32_0, %c0_i32_1 : i32, i32, i32
  }
  func.func @transform_18(%arg0: i32) -> (i32, i32, i32) {
    %c0_i32 = arith.constant 0 : i32
    %c0_i32_0 = arith.constant 0 : i32
    %c0_i32_1 = arith.constant 0 : i32
    %c0_i32_2 = arith.constant 0 : i32
    return %c0_i32, %c0_i32_0, %c0_i32_1 : i32, i32, i32
  }
  func.func @transform_19(%arg0: i32) -> (i32, i32, i32) {
    %c0_i32 = arith.constant 0 : i32
    %c0_i32_0 = arith.constant 0 : i32
    %c0_i32_1 = arith.constant 0 : i32
    %c0_i32_2 = arith.constant 0 : i32
    return %c0_i32, %c0_i32_0, %c0_i32_1 : i32, i32, i32
  }
  func.func @transform_20(%arg0: i32) -> (i32, i32) {
    %c0_i32 = arith.constant 0 : i32
    %c0_i32_0 = arith.constant 0 : i32
    %c0_i32_1 = arith.constant 0 : i32
    return %c0_i32, %c0_i32_0 : i32, i32
  }
  func.func @transform_21(%arg0: i32) -> (i32, i32) {
    %c0_i32 = arith.constant 0 : i32
    %c0_i32_0 = arith.constant 0 : i32
    %c0_i32_1 = arith.constant 0 : i32
    return %c0_i32, %c0_i32_0 : i32, i32
  }
  func.func @transform_22(%arg0: i32) -> (i32, i32) {
    %c0_i32 = arith.constant 0 : i32
    %c0_i32_0 = arith.constant 0 : i32
    %c0_i32_1 = arith.constant 0 : i32
    return %c0_i32, %c0_i32_0 : i32, i32
  }
  func.func @transform_23(%arg0: i32) -> (i32, i32) {
    %c0_i32 = arith.constant 0 : i32
    %c0_i32_0 = arith.constant 0 : i32
    %c0_i32_1 = arith.constant 0 : i32
    return %c0_i32, %c0_i32_0 : i32, i32
  }
  func.func @transform_24(%arg0: i32) -> (i32, i32) {
    %c0_i32 = arith.constant 0 : i32
    %c0_i32_0 = arith.constant 0 : i32
    %c0_i32_1 = arith.constant 0 : i32
    return %c0_i32, %c0_i32_0 : i32, i32
  }
  func.func @transform_25(%arg0: i32) -> (i32, i32) {
    %c0_i32 = arith.constant 0 : i32
    %c0_i32_0 = arith.constant 0 : i32
    %c0_i32_1 = arith.constant 0 : i32
    return %c0_i32, %c0_i32_0 : i32, i32
  }
  func.func @transform_26(%arg0: i32) -> (i32, i32, i32) {
    %c0_i32 = arith.constant 0 : i32
    %c0_i32_0 = arith.constant 0 : i32
    %c0_i32_1 = arith.constant 0 : i32
    return %arg0, %c0_i32, %c0_i32_0 : i32, i32, i32
  }
}

</mosaic_0001>

<llo_original>
// kernel: vit_forward.1
$region0: #{vit_forward.1}
  #allocation0 [shape = 'u32[]', space=smem, size = 0x4, offset = 0x4, fixed_abs, tag = 'smem constant byte address 0x4 - core index']
  #allocation1 [shape = 'u32[144,128]{1,0:T(1,128)}', space=vmem, size = 0x12000, scoped, tag = 'internal scratch']
  %s0 = inlined_call_operand.vmem [shape: f32[2,8,384], index: 0, kind: input, shape index: {}]
  %s1 = inlined_call_operand.vmem [shape: f32[1,32], index: 1, kind: input, shape index: {}]
  %s2 = inlined_call_operand.vmem [shape: f32[9,32], index: 2, kind: input, shape index: {}]
  %s3 = inlined_call_operand.vmem [shape: f32[1,384], index: 3, kind: input, shape index: {}]
  %s4 = inlined_call_operand.vmem [shape: f32[1,384], index: 4, kind: input, shape index: {}]
  %s5 = inlined_call_operand.vmem [shape: bf16[384,32], index: 5, kind: input, shape index: {}]
  %s6 = inlined_call_operand.vmem [shape: f32[1,32], index: 6, kind: input, shape index: {}]
  %s7 = inlined_call_operand.vmem [shape: f32[1,32], index: 7, kind: input, shape index: {}]
  %s8 = inlined_call_operand.vmem [shape: f32[1,32], index: 8, kind: input, shape index: {}]
  %s9 = inlined_call_operand.vmem [shape: f32[2,1,32], index: 9, kind: input, shape index: {}]
  %s10 = inlined_call_operand.vmem [shape: f32[2,1,32], index: 10, kind: input, shape index: {}]
  %s11 = inlined_call_operand.vmem [shape: bf16[2,32,96], index: 11, kind: input, shape index: {}]
  %s12 = inlined_call_operand.vmem [shape: bf16[2,32,32], index: 12, kind: input, shape index: {}]
  %s13 = inlined_call_operand.vmem [shape: f32[2,1,32], index: 13, kind: input, shape index: {}]
  %s14 = inlined_call_operand.vmem [shape: f32[2,1,32], index: 14, kind: input, shape index: {}]
  %s15 = inlined_call_operand.vmem [shape: f32[2,1,32], index: 15, kind: input, shape index: {}]
  %s16 = inlined_call_operand.vmem [shape: bf16[2,32,64], index: 16, kind: input, shape index: {}]
  %s17 = inlined_call_operand.vmem [shape: f32[2,1,64], index: 17, kind: input, shape index: {}]
  %s18 = inlined_call_operand.vmem [shape: bf16[2,64,32], index: 18, kind: input, shape index: {}]
  %s19 = inlined_call_operand.vmem [shape: f32[2,1,32], index: 19, kind: input, shape index: {}]
  %s20 = inlined_call_operand.vmem [shape: f32[1,32], index: 20, kind: input, shape index: {}]
  %s21 = inlined_call_operand.vmem [shape: f32[1,32], index: 21, kind: input, shape index: {}]
  %s22 = inlined_call_operand.vmem [shape: f32[1,32], index: 22, kind: input, shape index: {}]
  %s23 = inlined_call_operand.vmem [shape: f32[1,32], index: 23, kind: input, shape index: {}]
  %s24 = inlined_call_operand.vmem [shape: bf16[32,128], index: 24, kind: input, shape index: {}]
  %s25 = inlined_call_operand.vmem [shape: f32[1,128], index: 25, kind: input, shape index: {}]
  %s26 = inlined_call_operand.hbm [shape: f32[2,1,128], index: 26, kind: output, shape index: {}]
  %s27 = sld [smem:[#allocation0]]
  $region114: #{vit_forward.1} parent=0
    _
  %s29 = ssub.s32 1, %s27
  %s30 = scalar_select 0, %s29, %s27
  $region1: #{vit_forward.1} parent=0
    #allocation2 [shape = 'u8[1024]{0}', space=vmem, size = 0x400, scoped, tag = 'output window, operand 0, single buffered']
    #allocation3 [shape = 's32[1]{0}', space=sflag, size = 0x4, scoped, tag = 'scoped memory for vit_forward.1']
    %31 = vsyncpa [#allocation3], 0
    // Predicated region
    $region2: #{vit_forward.1} parent=1 // pred_check
      _
    $region3: #{vit_forward.1} parent=1 // pred_check_branch
      %33 = sbr.rel (0) target = $region5
    $region4: #{vit_forward.1} parent=1 // pred_region
      _
    $region5: #{vit_forward.1} parent=1 // pred_fallthru
      _
    // Predicated region
    $region6: #{vit_forward.1} parent=1 // pred_check
      _
    $region7: #{vit_forward.1} parent=1 // pred_check_branch
      %35 = sbr.rel (0) target = $region9
    $region8: #{vit_forward.1} parent=1 // pred_region
      _
    $region9: #{vit_forward.1} parent=1 // pred_fallthru
      _
    // Predicated region
    $region10: #{vit_forward.1} parent=1 // pred_check
      _
    $region11: #{vit_forward.1} parent=1 // pred_check_branch
      %37 = sbr.rel (0) target = $region13
    $region12: #{vit_forward.1} parent=1 // pred_region
      _
    $region13: #{vit_forward.1} parent=1 // pred_fallthru
      _
    // Predicated region
    $region14: #{vit_forward.1} parent=1 // pred_check
      _
    $region15: #{vit_forward.1} parent=1 // pred_check_branch
      %39 = sbr.rel (0) target = $region17
    $region16: #{vit_forward.1} parent=1 // pred_region
      _
    $region17: #{vit_forward.1} parent=1 // pred_fallthru
      _
    // Predicated region
    $region18: #{vit_forward.1} parent=1 // pred_check
      _
    $region19: #{vit_forward.1} parent=1 // pred_check_branch
      %41 = sbr.rel (0) target = $region21
    $region20: #{vit_forward.1} parent=1 // pred_region
      _
    $region21: #{vit_forward.1} parent=1 // pred_fallthru
      _
    // Predicated region
    $region22: #{vit_forward.1} parent=1 // pred_check
      _
    $region23: #{vit_forward.1} parent=1 // pred_check_branch
      %43 = sbr.rel (0) target = $region25
    $region24: #{vit_forward.1} parent=1 // pred_region
      _
    $region25: #{vit_forward.1} parent=1 // pred_fallthru
      _
    // Predicated region
    $region26: #{vit_forward.1} parent=1 // pred_check
      _
    $region27: #{vit_forward.1} parent=1 // pred_check_branch
      %45 = sbr.rel (0) target = $region29
    $region28: #{vit_forward.1} parent=1 // pred_region
      _
    $region29: #{vit_forward.1} parent=1 // pred_fallthru
      _
    // Predicated region
    $region30: #{vit_forward.1} parent=1 // pred_check
      _
    $region31: #{vit_forward.1} parent=1 // pred_check_branch
      %47 = sbr.rel (0) target = $region33
    $region32: #{vit_forward.1} parent=1 // pred_region
      _
    $region33: #{vit_forward.1} parent=1 // pred_fallthru
      _
    // Predicated region
    $region34: #{vit_forward.1} parent=1 // pred_check
      _
    $region35: #{vit_forward.1} parent=1 // pred_check_branch
      %49 = sbr.rel (0) target = $region37
    $region36: #{vit_forward.1} parent=1 // pred_region
      _
    $region37: #{vit_forward.1} parent=1 // pred_fallthru
      _
    // Predicated region
    $region38: #{vit_forward.1} parent=1 // pred_check
      _
    $region39: #{vit_forward.1} parent=1 // pred_check_branch
      %51 = sbr.rel (0) target = $region41
    $region40: #{vit_forward.1} parent=1 // pred_region
      _
    $region41: #{vit_forward.1} parent=1 // pred_fallthru
      _
    // Predicated region
    $region42: #{vit_forward.1} parent=1 // pred_check
      _
    $region43: #{vit_forward.1} parent=1 // pred_check_branch
      %53 = sbr.rel (0) target = $region45
    $region44: #{vit_forward.1} parent=1 // pred_region
      _
    $region45: #{vit_forward.1} parent=1 // pred_fallthru
      _
    // Predicated region
    $region46: #{vit_forward.1} parent=1 // pred_check
      _
    $region47: #{vit_forward.1} parent=1 // pred_check_branch
      %55 = sbr.rel (0) target = $region49
    $region48: #{vit_forward.1} parent=1 // pred_region
      _
    $region49: #{vit_forward.1} parent=1 // pred_fallthru
      _
    // Predicated region
    $region50: #{vit_forward.1} parent=1 // pred_check
      _
    $region51: #{vit_forward.1} parent=1 // pred_check_branch
      %57 = sbr.rel (0) target = $region53
    $region52: #{vit_forward.1} parent=1 // pred_region
      _
    $region53: #{vit_forward.1} parent=1 // pred_fallthru
      _
    // Predicated region
    $region54: #{vit_forward.1} parent=1 // pred_check
      _
    $region55: #{vit_forward.1} parent=1 // pred_check_branch
      %59 = sbr.rel (0) target = $region57
    $region56: #{vit_forward.1} parent=1 // pred_region
      _
    $region57: #{vit_forward.1} parent=1 // pred_fallthru
      _
    // Predicated region
    $region58: #{vit_forward.1} parent=1 // pred_check
      _
    $region59: #{vit_forward.1} parent=1 // pred_check_branch
      %61 = sbr.rel (0) target = $region61
    $region60: #{vit_forward.1} parent=1 // pred_region
      _
    $region61: #{vit_forward.1} parent=1 // pred_fallthru
      _
    // Predicated region
    $region62: #{vit_forward.1} parent=1 // pred_check
      _
    $region63: #{vit_forward.1} parent=1 // pred_check_branch
      %63 = sbr.rel (0) target = $region65
    $region64: #{vit_forward.1} parent=1 // pred_region
      _
    $region65: #{vit_forward.1} parent=1 // pred_fallthru
      _
    // Predicated region
    $region66: #{vit_forward.1} parent=1 // pred_check
      _
    $region67: #{vit_forward.1} parent=1 // pred_check_branch
      %65 = sbr.rel (0) target = $region69
    $region68: #{vit_forward.1} parent=1 // pred_region
      _
    $region69: #{vit_forward.1} parent=1 // pred_fallthru
      _
    // Predicated region
    $region70: #{vit_forward.1} parent=1 // pred_check
      _
    $region71: #{vit_forward.1} parent=1 // pred_check_branch
      %67 = sbr.rel (0) target = $region73
    $region72: #{vit_forward.1} parent=1 // pred_region
      _
    $region73: #{vit_forward.1} parent=1 // pred_fallthru
      _
    // Predicated region
    $region74: #{vit_forward.1} parent=1 // pred_check
      _
    $region75: #{vit_forward.1} parent=1 // pred_check_branch
      %69 = sbr.rel (0) target = $region77
    $region76: #{vit_forward.1} parent=1 // pred_region
      _
    $region77: #{vit_forward.1} parent=1 // pred_fallthru
      _
    // Predicated region
    $region78: #{vit_forward.1} parent=1 // pred_check
      _
    $region79: #{vit_forward.1} parent=1 // pred_check_branch
      %71 = sbr.rel (0) target = $region81
    $region80: #{vit_forward.1} parent=1 // pred_region
      _
    $region81: #{vit_forward.1} parent=1 // pred_fallthru
      _
    // Predicated region
    $region82: #{vit_forward.1} parent=1 // pred_check
      _
    $region83: #{vit_forward.1} parent=1 // pred_check_branch
      %73 = sbr.rel (0) target = $region85
    $region84: #{vit_forward.1} parent=1 // pred_region
      _
    $region85: #{vit_forward.1} parent=1 // pred_fallthru
      _
    // Predicated region
    $region86: #{vit_forward.1} parent=1 // pred_check
      _
    $region87: #{vit_forward.1} parent=1 // pred_check_branch
      %75 = sbr.rel (0) target = $region89
    $region88: #{vit_forward.1} parent=1 // pred_region
      _
    $region89: #{vit_forward.1} parent=1 // pred_fallthru
      _
    // Predicated region
    $region90: #{vit_forward.1} parent=1 // pred_check
      _
    $region91: #{vit_forward.1} parent=1 // pred_check_branch
      %77 = sbr.rel (0) target = $region93
    $region92: #{vit_forward.1} parent=1 // pred_region
      _
    $region93: #{vit_forward.1} parent=1 // pred_fallthru
      _
    // Predicated region
    $region94: #{vit_forward.1} parent=1 // pred_check
      _
    $region95: #{vit_forward.1} parent=1 // pred_check_branch
      %79 = sbr.rel (0) target = $region97
    $region96: #{vit_forward.1} parent=1 // pred_region
      _
    $region97: #{vit_forward.1} parent=1 // pred_fallthru
      _
    // Predicated region
    $region98: #{vit_forward.1} parent=1 // pred_check
      _
    $region99: #{vit_forward.1} parent=1 // pred_check_branch
      %81 = sbr.rel (0) target = $region101
    $region100: #{vit_forward.1} parent=1 // pred_region
      _
    $region101: #{vit_forward.1} parent=1 // pred_fallthru
      _
    // Predicated region
    $region102: #{vit_forward.1} parent=1 // pred_check
      _
    $region103: #{vit_forward.1} parent=1 // pred_check_branch
      %83 = sbr.rel (0) target = $region105
    $region104: #{vit_forward.1} parent=1 // pred_region
      _
    $region105: #{vit_forward.1} parent=1 // pred_fallthru
      _
    %v85 = vld [vmem:[%s0] sm:$0xff]
    %v86 = vld [vmem:[%s0 + $0x8] sm:$0xff]
    %v87 = vld [vmem:[%s0 + $0x10] sm:$0xff]
    %v88 = vld [vmem:[%s0 + $0x18] sm:$0xff]
    %v89 = vld [vmem:[%s0 + $0x20] sm:$0xff]
    %v90 = vld [vmem:[%s0 + $0x28] sm:$0xff]
    %v91 = vld [vmem:[%s3] sm:$0x7]
    %v92 = vld [vmem:[%s4] sm:$0x7]
    %v93 = vadd.f32 %v85, %v86
    %v94 = vadd.f32 %v93, %v87
    %95 = vadd.xlane.f32.xlu0 %v94
    %v96 = vpop.xlane.xlu0 %95
    %v97 = vadd.f32 %v88, %v89
    %v98 = vadd.f32 %v97, %v90
    %99 = vadd.xlane.f32.xlu0 %v98
    %v100 = vpop.xlane.xlu0 %99
    %v101 = vrcp.pop 384.0
    %v102 = vmul.f32 %v96, %v101
    %v103 = vmul.f32 %v100, %v101
    %v104 = vsub.f32 %v85, %v102
    %v105 = vsub.f32 %v86, %v102
    %v106 = vsub.f32 %v87, %v102
    %v107 = vsub.f32 %v88, %v103
    %v108 = vsub.f32 %v89, %v103
    %v109 = vsub.f32 %v90, %v103
    %v110 = vmul.f32 %v104, %v104
    %v111 = vmul.f32 %v105, %v105
    %v112 = vmul.f32 %v106, %v106
    %v113 = vmul.f32 %v107, %v107
    %v114 = vmul.f32 %v108, %v108
    %v115 = vmul.f32 %v109, %v109
    %v116 = vadd.f32 %v110, %v111
    %v117 = vadd.f32 %v116, %v112
    %118 = vadd.xlane.f32.xlu0 %v117
    %v119 = vpop.xlane.xlu0 %118
    %v120 = vadd.f32 %v113, %v114
    %v121 = vadd.f32 %v120, %v115
    %122 = vadd.xlane.f32.xlu0 %v121
    %v123 = vpop.xlane.xlu0 %122
    %v124 = vmul.f32 %v119, %v101
    %v125 = vmul.f32 %v123, %v101
    %v126 = vadd.f32 %v124, 1e-05
    %v127 = vadd.f32 %v125, 1e-05
    %v128 = vrsqrt.pop %v126
    %v129 = vrsqrt.pop %v127
    %v130 = vmul.f32 %v104, %v128
    %v131 = vmul.f32 %v105, %v128
    %v132 = vmul.f32 %v106, %v128
    %v133 = vmul.f32 %v107, %v129
    %v134 = vmul.f32 %v108, %v129
    %v135 = vmul.f32 %v109, %v129
    %v137 = vlaneseq
    %v138 = vshrl.u32 %v137, 7
    %v139 = vsub.s32 0, %v138
    %v140 = vrot.slane %v91, %v139
    %v141 = vlaneseq
    %v142 = vshrl.u32 %v141, 7
    %v143 = vsub.s32 1, %v142
    %v144 = vrot.slane %v91, %v143
    %v145 = vlaneseq
    %v146 = vshrl.u32 %v145, 7
    %v147 = vsub.s32 2, %v146
    %v148 = vrot.slane %v91, %v147
    %v152 = vmul.f32 %v130, %v140
    %v153 = vmul.f32 %v131, %v144
    %v154 = vmul.f32 %v132, %v148
    %v155 = vmul.f32 %v133, %v140
    %v156 = vmul.f32 %v134, %v144
    %v157 = vmul.f32 %v135, %v148
    %v159 = vlaneseq
    %v160 = vshrl.u32 %v159, 7
    %v161 = vsub.s32 0, %v160
    %v162 = vrot.slane %v92, %v161
    %v163 = vlaneseq
    %v164 = vshrl.u32 %v163, 7
    %v165 = vsub.s32 1, %v164
    %v166 = vrot.slane %v92, %v165
    %v167 = vlaneseq
    %v168 = vshrl.u32 %v167, 7
    %v169 = vsub.s32 2, %v168
    %v170 = vrot.slane %v92, %v169
    %v174 = vadd.f32 %v152, %v162
    %v175 = vadd.f32 %v153, %v166
    %v176 = vadd.f32 %v154, %v170
    %v177 = vadd.f32 %v155, %v162
    %v178 = vadd.f32 %v156, %v166
    %v179 = vadd.f32 %v157, %v170
    %v180 = vpack.c.bf16 %v177, %v174
    %v181 = vpack.c.bf16 %v178, %v175
    %v182 = vpack.c.bf16 %v179, %v176
    %v183 = vld [vmem:[%s5] sm:$0xf]
    %v184 = vld [vmem:[%s5 + $0x4] sm:$0xf]
    %v185 = vld [vmem:[%s5 + $0x8] sm:$0xf]
    %v186 = vld [vmem:[%s5 + $0xc] sm:$0xf]
    %v187 = vld [vmem:[%s5 + $0x10] sm:$0xf]
    %v188 = vld [vmem:[%s5 + $0x14] sm:$0xf]
    %v189 = vld [vmem:[%s5 + $0x18] sm:$0xf]
    %v190 = vld [vmem:[%s5 + $0x1c] sm:$0xf]
    %v191 = vld [vmem:[%s5 + $0x20] sm:$0xf]
    %v192 = vld [vmem:[%s5 + $0x24] sm:$0xf]
    %v193 = vld [vmem:[%s5 + $0x28] sm:$0xf]
    %v194 = vld [vmem:[%s5 + $0x2c] sm:$0xf]
    %v195 = vld [vmem:[%s5 + $0x30] sm:$0xf]
    %v196 = vld [vmem:[%s5 + $0x34] sm:$0xf]
    %v197 = vld [vmem:[%s5 + $0x38] sm:$0xf]
    %v198 = vld [vmem:[%s5 + $0x3c] sm:$0xf]
    %v199 = vld [vmem:[%s5 + $0x40] sm:$0xf]
    %v200 = vld [vmem:[%s5 + $0x44] sm:$0xf]
    %v201 = vld [vmem:[%s5 + $0x48] sm:$0xf]
    %v202 = vld [vmem:[%s5 + $0x4c] sm:$0xf]
    %v203 = vld [vmem:[%s5 + $0x50] sm:$0xf]
    %v204 = vld [vmem:[%s5 + $0x54] sm:$0xf]
    %v205 = vld [vmem:[%s5 + $0x58] sm:$0xf]
    %v206 = vld [vmem:[%s5 + $0x5c] sm:$0xf]
    %v207 = vld [vmem:[%s5 + $0x60] sm:$0xf]
    %v208 = vld [vmem:[%s5 + $0x64] sm:$0xf]
    %v209 = vld [vmem:[%s5 + $0x68] sm:$0xf]
    %v210 = vld [vmem:[%s5 + $0x6c] sm:$0xf]
    %v211 = vld [vmem:[%s5 + $0x70] sm:$0xf]
    %v212 = vld [vmem:[%s5 + $0x74] sm:$0xf]
    %v213 = vld [vmem:[%s5 + $0x78] sm:$0xf]
    %v214 = vld [vmem:[%s5 + $0x7c] sm:$0xf]
    %v215 = vld [vmem:[%s5 + $0x80] sm:$0xf]
    %v216 = vld [vmem:[%s5 + $0x84] sm:$0xf]
    %v217 = vld [vmem:[%s5 + $0x88] sm:$0xf]
    %v218 = vld [vmem:[%s5 + $0x8c] sm:$0xf]
    %v219 = vld [vmem:[%s5 + $0x90] sm:$0xf]
    %v220 = vld [vmem:[%s5 + $0x94] sm:$0xf]
    %v221 = vld [vmem:[%s5 + $0x98] sm:$0xf]
    %v222 = vld [vmem:[%s5 + $0x9c] sm:$0xf]
    %v223 = vld [vmem:[%s5 + $0xa0] sm:$0xf]
    %v224 = vld [vmem:[%s5 + $0xa4] sm:$0xf]
    %v225 = vld [vmem:[%s5 + $0xa8] sm:$0xf]
    %v226 = vld [vmem:[%s5 + $0xac] sm:$0xf]
    %v227 = vld [vmem:[%s5 + $0xb0] sm:$0xf]
    %v228 = vld [vmem:[%s5 + $0xb4] sm:$0xf]
    %v229 = vld [vmem:[%s5 + $0xb8] sm:$0xf]
    %v230 = vld [vmem:[%s5 + $0xbc] sm:$0xf]
    %v231 = vld [vmem:[%s6] sm:$0x1]
    %v233 = vlaneseq
    %v234 = vshrl.u32 %v233, 7
    %v235 = vsub.s32 0, %v234
    %v236 = vrot.slane %v231, %v235
    %v286 = vunpack.c.l.b16 %v183
    %v287 = vunpack.c.l.b16 %v184
    %v288 = vunpack.c.l.b16 %v185
    %v289 = vunpack.c.l.b16 %v186
    %v290 = vunpack.c.l.b16 %v187
    %v291 = vunpack.c.l.b16 %v188
    %v292 = vunpack.c.l.b16 %v189
    %v293 = vunpack.c.l.b16 %v190
    %v294 = vunpack.c.l.b16 %v191
    %v295 = vunpack.c.l.b16 %v192
    %v296 = vunpack.c.l.b16 %v193
    %v297 = vunpack.c.l.b16 %v194
    %v298 = vunpack.c.l.b16 %v195
    %v299 = vunpack.c.l.b16 %v196
    %v300 = vunpack.c.l.b16 %v197
    %v301 = vunpack.c.l.b16 %v198
    %v302 = vunpack.c.l.b16 %v199
    %v303 = vunpack.c.l.b16 %v200
    %v304 = vunpack.c.l.b16 %v201
    %v305 = vunpack.c.l.b16 %v202
    %v306 = vunpack.c.l.b16 %v203
    %v307 = vunpack.c.l.b16 %v204
    %v308 = vunpack.c.l.b16 %v205
    %v309 = vunpack.c.l.b16 %v206
    %v310 = vunpack.c.l.b16 %v207
    %v311 = vunpack.c.l.b16 %v208
    %v312 = vunpack.c.l.b16 %v209
    %v313 = vunpack.c.l.b16 %v210
    %v314 = vunpack.c.l.b16 %v211
    %v315 = vunpack.c.l.b16 %v212
    %v316 = vunpack.c.l.b16 %v213
    %v317 = vunpack.c.l.b16 %v214
    %v318 = vunpack.c.l.b16 %v215
    %v319 = vunpack.c.l.b16 %v216
    %v320 = vunpack.c.l.b16 %v217
    %v321 = vunpack.c.l.b16 %v218
    %v322 = vunpack.c.l.b16 %v219
    %v323 = vunpack.c.l.b16 %v220
    %v324 = vunpack.c.l.b16 %v221
    %v325 = vunpack.c.l.b16 %v222
    %v326 = vunpack.c.l.b16 %v223
    %v327 = vunpack.c.l.b16 %v224
    %v328 = vunpack.c.l.b16 %v225
    %v329 = vunpack.c.l.b16 %v226
    %v330 = vunpack.c.l.b16 %v227
    %v331 = vunpack.c.l.b16 %v228
    %v332 = vunpack.c.l.b16 %v229
    %v333 = vunpack.c.l.b16 %v230
    %v334 = vpack.c.b16 %v287, %v286
    %v335 = vpack.c.b16 %v289, %v288
    %v336 = vpack.c.b16 %v291, %v290
    %v337 = vpack.c.b16 %v293, %v292
    %v338 = vpack.c.b16 %v295, %v294
    %v339 = vpack.c.b16 %v297, %v296
    %v340 = vpack.c.b16 %v299, %v298
    %v341 = vpack.c.b16 %v301, %v300
    %v342 = vpack.c.b16 %v303, %v302
    %v343 = vpack.c.b16 %v305, %v304
    %v344 = vpack.c.b16 %v307, %v306
    %v345 = vpack.c.b16 %v309, %v308
    %v346 = vpack.c.b16 %v311, %v310
    %v347 = vpack.c.b16 %v313, %v312
    %v348 = vpack.c.b16 %v315, %v314
    %v349 = vpack.c.b16 %v317, %v316
    %v350 = vpack.c.b16 %v319, %v318
    %v351 = vpack.c.b16 %v321, %v320
    %v352 = vpack.c.b16 %v323, %v322
    %v353 = vpack.c.b16 %v325, %v324
    %v354 = vpack.c.b16 %v327, %v326
    %v355 = vpack.c.b16 %v329, %v328
    %v356 = vpack.c.b16 %v331, %v330
    %v357 = vpack.c.b16 %v333, %v332
    %382 = vmatprep.subr.bf16.mxu0 0
    %383 = vmatpush1.bf16.msra.mxu0 %v334
    %384 = vmatprep.subr.bf16.mxu0 0
    %385 = vmatpush1.bf16.msra.mxu0 %v335
    %386 = vmatprep.subr.bf16.mxu0 0
    %387 = vmatpush1.bf16.msra.mxu0 %v336
    %388 = vmatprep.subr.bf16.mxu0 0
    %389 = vmatpush1.bf16.msra.mxu0 %v337
    %390 = vmatprep.subr.bf16.mxu0 0
    %391 = vmatpush1.bf16.msra.mxu0 %v338
    %392 = vmatprep.subr.bf16.mxu0 0
    %393 = vmatpush1.bf16.msra.mxu0 %v339
    %394 = vmatprep.subr.bf16.mxu0 0
    %395 = vmatpush1.bf16.msra.mxu0 %v340
    %396 = vmatprep.subr.bf16.mxu0 0
    %397 = vmatpush1.bf16.msra.mxu0 %v341
    %398 = vmatprep.subr.bf16.mxu0 0
    %399 = vmatpush1.bf16.msra.mxu0 %v342
    %400 = vmatprep.subr.bf16.mxu0 0
    %401 = vmatpush1.bf16.msra.mxu0 %v343
    %402 = vmatprep.subr.bf16.mxu0 0
    %403 = vmatpush1.bf16.msra.mxu0 %v344
    %404 = vmatprep.subr.bf16.mxu0 0
    %405 = vmatpush1.bf16.msra.mxu0 %v345
    %406 = vmatprep.subr.bf16.mxu0 0
    %407 = vmatpush1.bf16.msra.mxu0 %v346
    %408 = vmatprep.subr.bf16.mxu0 0
    %409 = vmatpush1.bf16.msra.mxu0 %v347
    %410 = vmatprep.subr.bf16.mxu0 0
    %411 = vmatpush1.bf16.msra.mxu0 %v348
    %412 = vmatprep.subr.bf16.mxu0 0
    %413 = vmatpush1.bf16.msra.mxu0 %v349
    %414 = vmatprep.mubr.bf16.mxu0 %v181
    %415 = vmatmul.mubr.bf16.gmra.mrb[0].mxu0 %v180
    %v416 = vpop.f32.mrb[0].mxu0
    %v417 = vadd.f32 %v236, %v416
    %v418 = vpop.f32.mrb[0].mxu0
    %v419 = vpop.f32.mrb[0].mxu0
    %v420 = vadd.f32 %v236, %v419
    %v421 = vpop.f32.mrb[0].mxu0
    %422 = vdwg.mxu0
    %423 = vmatprep.subr.bf16.mxu0 0
    %424 = vmatpush1.bf16.msra.mxu0 %v350
    %425 = vmatprep.subr.bf16.mxu0 0
    %426 = vmatpush1.bf16.msra.mxu0 %v351
    %427 = vmatprep.subr.bf16.mxu0 0
    %428 = vmatpush1.bf16.msra.mxu0 %v352
    %429 = vmatprep.subr.bf16.mxu0 0
    %430 = vmatpush1.bf16.msra.mxu0 %v353
    %431 = vmatprep.subr.bf16.mxu0 0
    %432 = vmatpush1.bf16.msra.mxu0 %v354
    %433 = vmatprep.subr.bf16.mxu0 0
    %434 = vmatpush1.bf16.msra.mxu0 %v355
    %435 = vmatprep.subr.bf16.mxu0 0
    %436 = vmatpush1.bf16.msra.mxu0 %v356
    %437 = vmatprep.subr.bf16.mxu0 0
    %438 = vmatpush1.bf16.msra.mxu0 %v357
    %439 = vmatprep.subr.bf16.mxu0 0
    %440 = vmatpush1.bf16.msra.mxu0 0
    %441 = vmatprep.subr.bf16.mxu0 0
    %442 = vmatpush1.bf16.msra.mxu0 0
    %443 = vmatprep.subr.bf16.mxu0 0
    %444 = vmatpush1.bf16.msra.mxu0 0
    %445 = vmatprep.subr.bf16.mxu0 0
    %446 = vmatpush1.bf16.msra.mxu0 0
    %447 = vmatprep.subr.bf16.mxu0 0
    %448 = vmatpush1.bf16.msra.mxu0 0
    %449 = vmatprep.subr.bf16.mxu0 0
    %450 = vmatpush1.bf16.msra.mxu0 0
    %451 = vmatprep.subr.bf16.mxu0 0
    %452 = vmatpush1.bf16.msra.mxu0 0
    %453 = vmatprep.subr.bf16.mxu0 0
    %454 = vmatpush1.bf16.msra.mxu0 0
    %455 = vmatprep.mubr.bf16.mxu0 0
    %456 = vmatmul.mubr.bf16.gmra.mrb[0].mxu0 %v182
    %v457 = vpop.f32.mrb[0].mxu0
    %v458 = vadd.f32 %v417, %v457
    %v459 = vpop.f32.mrb[0].mxu0
    %v460 = vpop.f32.mrb[0].mxu0
    %v461 = vadd.f32 %v420, %v460
    %v462 = vpop.f32.mrb[0].mxu0
    %463 = vdwg.mxu0
    %v464 = vld [vmem:[%s7] sm:$0x1]
    %v465 = vld [vmem:[%s8] sm:$0x1]
    %vm466 = vcmask 261120
    %v467 = vsel %vm466, %v458, 0.0
    %468 = vadd.xlane.f32.xlu0 %v467
    %v469 = vpop.xlane.xlu0 %468
    %v470 = vsel %vm466, %v461, 0.0
    %471 = vadd.xlane.f32.xlu0 %v470
    %v472 = vpop.xlane.xlu0 %471
    %v473 = vrcp.pop 32.0
    %v474 = vmul.f32 %v469, %v473
    %v475 = vmul.f32 %v472, %v473
    %v476 = vsub.f32 %v458, %v474
    %v477 = vsub.f32 %v461, %v475
    %v478 = vmul.f32 %v476, %v476
    %v479 = vmul.f32 %v477, %v477
    %v480 = vsel %vm466, %v478, 0.0
    %481 = vadd.xlane.f32.xlu0 %v480
    %v482 = vpop.xlane.xlu0 %481
    %v483 = vsel %vm466, %v479, 0.0
    %484 = vadd.xlane.f32.xlu0 %v483
    %v485 = vpop.xlane.xlu0 %484
    %v486 = vmul.f32 %v482, %v473
    %v487 = vmul.f32 %v485, %v473
    %v488 = vadd.f32 %v486, 1e-05
    %v489 = vadd.f32 %v487, 1e-05
    %v490 = vrsqrt.pop %v488
    %v491 = vrsqrt.pop %v489
    %v492 = vmul.f32 %v476, %v490
    %v493 = vmul.f32 %v477, %v491
    %v495 = vlaneseq
    %v496 = vshrl.u32 %v495, 7
    %v497 = vsub.s32 0, %v496
    %v498 = vrot.slane %v464, %v497
    %v500 = vmul.f32 %v492, %v498
    %v501 = vmul.f32 %v493, %v498
    %v503 = vlaneseq
    %v504 = vshrl.u32 %v503, 7
    %v505 = vsub.s32 0, %v504
    %v506 = vrot.slane %v465, %v505
    %v508 = vadd.f32 %v500, %v506
    %v509 = vadd.f32 %v501, %v506
    %v510 = vld [vmem:[%s1] sm:$0x1]
    %v511 = vld [vmem:[%s2] sm:$0xff]
    %v512 = vld [vmem:[%s2 + $0x8] sm:$0x1]
    %v514 = vrot.slane %v508, 7
    %vm516 = vcmask 1040384
    %v517 = vsel %vm516, %v510, %v514
    %v518 = vadd.f32 %v517, %v511
    %v519 = vadd.f32 %v514, %v512
    %v521 = vrot.slane %v509, 7
    %v523 = vsel %vm516, %v510, %v521
    %v524 = vadd.f32 %v523, %v511
    %v525 = vadd.f32 %v521, %v512
    %v528 = vrot.slane %v524, 7
    %v529 = vrot.slane %v525, 7
    %v530 = vsel %vm516, %v528, %v529
    %v533 = vsel %vm516, %v519, %v528
    %v534 = vld [vmem:[%s9] sm:$0x1]
    %v535 = vld [vmem:[%s10] sm:$0x1]
    %v536 = vsel %vm466, %v518, 0.0
    %537 = vadd.xlane.f32.xlu0 %v536
    %v538 = vpop.xlane.xlu0 %537
    %v539 = vsel %vm466, %v533, 0.0
    %540 = vadd.xlane.f32.xlu0 %v539
    %v541 = vpop.xlane.xlu0 %540
    %vm542 = vcmask 254976
    %v543 = vsel %vm542, %v530, 0.0
    %544 = vadd.xlane.f32.xlu0 %v543
    %v545 = vpop.xlane.xlu0 %544
    %v546 = vmul.f32 %v538, %v473
    %v547 = vmul.f32 %v541, %v473
    %v548 = vmul.f32 %v545, %v473
    %v549 = vsub.f32 %v518, %v546
    %v550 = vsub.f32 %v533, %v547
    %v551 = vsub.f32 %v530, %v548
    %v552 = vmul.f32 %v549, %v549
    %v553 = vmul.f32 %v550, %v550
    %v554 = vmul.f32 %v551, %v551
    %v555 = vsel %vm466, %v552, 0.0
    %556 = vadd.xlane.f32.xlu0 %v555
    %v557 = vpop.xlane.xlu0 %556
    %v558 = vsel %vm466, %v553, 0.0
    %559 = vadd.xlane.f32.xlu0 %v558
    %v560 = vpop.xlane.xlu0 %559
    %v561 = vsel %vm542, %v554, 0.0
    %562 = vadd.xlane.f32.xlu0 %v561
    %v563 = vpop.xlane.xlu0 %562
    %v564 = vmul.f32 %v557, %v473
    %v565 = vmul.f32 %v560, %v473
    %v566 = vmul.f32 %v563, %v473
    %v567 = vadd.f32 %v564, 1e-05
    %v568 = vadd.f32 %v565, 1e-05
    %v569 = vadd.f32 %v566, 1e-05
    %v570 = vrsqrt.pop %v567
    %v571 = vrsqrt.pop %v568
    %v572 = vrsqrt.pop %v569
    %v573 = vmul.f32 %v549, %v570
    %v574 = vmul.f32 %v550, %v571
    %v575 = vmul.f32 %v551, %v572
    %v577 = vlaneseq
    %v578 = vshrl.u32 %v577, 7
    %v579 = vsub.s32 0, %v578
    %v580 = vrot.slane %v534, %v579
    %v582 = vmul.f32 %v573, %v580
    %v583 = vmul.f32 %v574, %v580
    %v584 = vmul.f32 %v575, %v580
    %v586 = vlaneseq
    %v587 = vshrl.u32 %v586, 7
    %v588 = vsub.s32 0, %v587
    %v589 = vrot.slane %v535, %v588
    %v591 = vadd.f32 %v582, %v589
    %v592 = vadd.f32 %v583, %v589
    %v593 = vadd.f32 %v584, %v589
    %v594 = vpack.c.bf16 %v592, %v591
    %v595 = vpack.c.bf16 %v593, %v593
    %v596 = vld [vmem:[%s11] sm:$0xf]
    %v597 = vld [vmem:[%s11 + $0x4] sm:$0xf]
    %v598 = vld [vmem:[%s11 + $0x8] sm:$0xf]
    %v599 = vld [vmem:[%s11 + $0xc] sm:$0xf]
    %v604 = vunpack.c.l.b16 %v596
    %v605 = vunpack.c.l.b16 %v597
    %v606 = vunpack.c.l.b16 %v598
    %v607 = vunpack.c.l.b16 %v599
    %v608 = vpack.c.b16 %v605, %v604
    %v609 = vpack.c.b16 %v607, %v606
    %v613 = vsel %vm466, %v594, 0
    %v616 = vsel %vm466, %v595, 0
    %618 = vmatprep.subr.bf16.mxu0 0
    %619 = vmatpush1.bf16.msra.mxu0 %v608
    %620 = vmatprep.subr.bf16.mxu0 0
    %621 = vmatpush1.bf16.msra.mxu0 %v609
    %622 = vmatprep.subr.bf16.mxu0 0
    %623 = vmatpush1.bf16.msra.mxu0 0
    %624 = vmatprep.subr.bf16.mxu0 0
    %625 = vmatpush1.bf16.msra.mxu0 0
    %626 = vmatprep.subr.bf16.mxu0 0
    %627 = vmatpush1.bf16.msra.mxu0 0
    %628 = vmatprep.subr.bf16.mxu0 0
    %629 = vmatpush1.bf16.msra.mxu0 0
    %630 = vmatprep.subr.bf16.mxu0 0
    %631 = vmatpush1.bf16.msra.mxu0 0
    %632 = vmatprep.subr.bf16.mxu0 0
    %633 = vmatpush1.bf16.msra.mxu0 0
    %634 = vmatprep.subr.bf16.mxu0 0
    %635 = vmatpush1.bf16.msra.mxu0 0
    %636 = vmatprep.subr.bf16.mxu0 0
    %637 = vmatpush1.bf16.msra.mxu0 0
    %638 = vmatprep.subr.bf16.mxu0 0
    %639 = vmatpush1.bf16.msra.mxu0 0
    %640 = vmatprep.subr.bf16.mxu0 0
    %641 = vmatpush1.bf16.msra.mxu0 0
    %642 = vmatprep.subr.bf16.mxu0 0
    %643 = vmatpush1.bf16.msra.mxu0 0
    %644 = vmatprep.subr.bf16.mxu0 0
    %645 = vmatpush1.bf16.msra.mxu0 0
    %646 = vmatprep.subr.bf16.mxu0 0
    %647 = vmatpush1.bf16.msra.mxu0 0
    %648 = vmatprep.subr.bf16.mxu0 0
    %649 = vmatpush1.bf16.msra.mxu0 0
    %650 = vmatprep.mubr.bf16.mxu0 0
    %651 = vmatmul.mubr.bf16.gmra.mrb[0].mxu0 %v613
    %v652 = vpop.f32.mrb[0].mxu0
    %v653 = vadd.f32 0.0, %v652
    %v654 = vpop.f32.mrb[0].mxu0
    %v655 = vpop.f32.mrb[0].mxu0
    %v656 = vadd.f32 0.0, %v655
    %v657 = vpop.f32.mrb[0].mxu0
    %658 = vmatprep.mubr.bf16.mxu0 0
    %659 = vmatmul.mubr.bf16.gmra.mrb[0].mxu0 %v616
    %v660 = vpop.f32.mrb[0].mxu0
    %v661 = vadd.f32 0.0, %v660
    %v662 = vpop.f32.mrb[0].mxu0
    %v663 = vpop.f32.mrb[0].mxu0
    %v664 = vpop.f32.mrb[0].mxu0
    %665 = vdwg.mxu0
    %v666 = vpack.c.bf16 %v656, %v653
    %v667 = vpack.c.bf16 %v661, %v661
    %669 = vrot.lane.b32.xlu0 %v666, 96
    %v670 = vpop.permute.xlu0 %669
    %vm671 = vcmask 130048
    %v673 = vsel %vm671, %v666, 0
    %v676 = vsel %vm671, %v670, 0
    %678 = vmatprep.subr.bf16.mxu0 0
    %679 = vmatpush1.bf16.xpose.msra.mxu0 %v676
    %680 = vmatprep.subr.bf16.mxu0 0
    %681 = vmatpush1.bf16.xpose.msra.mxu0 0
    %682 = vmatprep.subr.bf16.mxu0 0
    %683 = vmatpush1.bf16.xpose.msra.mxu0 0
    %684 = vmatprep.subr.bf16.mxu0 0
    %685 = vmatpush1.bf16.xpose.msra.mxu0 0
    %686 = vmatprep.subr.bf16.mxu0 0
    %687 = vmatpush1.bf16.xpose.msra.mxu0 0
    %688 = vmatprep.subr.bf16.mxu0 0
    %689 = vmatpush1.bf16.xpose.msra.mxu0 0
    %690 = vmatprep.subr.bf16.mxu0 0
    %691 = vmatpush1.bf16.xpose.msra.mxu0 0
    %692 = vmatprep.subr.bf16.mxu0 0
    %693 = vmatpush1.bf16.xpose.msra.mxu0 0
    %694 = vmatprep.subr.bf16.mxu0 0
    %695 = vmatpush1.bf16.xpose.msra.mxu0 0
    %696 = vmatprep.subr.bf16.mxu0 0
    %697 = vmatpush1.bf16.xpose.msra.mxu0 0
    %698 = vmatprep.subr.bf16.mxu0 0
    %699 = vmatpush1.bf16.xpose.msra.mxu0 0
    %700 = vmatprep.subr.bf16.mxu0 0
    %701 = vmatpush1.bf16.xpose.msra.mxu0 0
    %702 = vmatprep.subr.bf16.mxu0 0
    %703 = vmatpush1.bf16.xpose.msra.mxu0 0
    %704 = vmatprep.subr.bf16.mxu0 0
    %705 = vmatpush1.bf16.xpose.msra.mxu0 0
    %706 = vmatprep.subr.bf16.mxu0 0
    %707 = vmatpush1.bf16.xpose.msra.mxu0 0
    %708 = vmatprep.subr.bf16.mxu0 0
    %709 = vmatpush1.bf16.xpose.msra.mxu0 0
    %710 = vmatprep.mubr.bf16.mxu0 0
    %711 = vmatmul.mubr.bf16.gmra.mrb[0].mxu0 %v673
    %v712 = vpop.f32.mrb[0].mxu0
    %v713 = vadd.f32 0.0, %v712
    %v714 = vpop.f32.mrb[0].mxu0
    %v715 = vpop.f32.mrb[0].mxu0
    %v716 = vadd.f32 0.0, %v715
    %v717 = vpop.f32.mrb[0].mxu0
    %718 = vdwg.mxu0
    %vm719 = vcmask 72704
    %v720 = vsel %vm719, %v713, -inf
    %721 = vmax.xlane.f32.xlu0 %v720
    %v722 = vpop.xlane.xlu0 %721
    %vm723 = vcmask 65536
    %v724 = vsel %vm723, %v716, -inf
    %725 = vmax.xlane.f32.xlu0 %v724
    %v726 = vpop.xlane.xlu0 %725
    %v727 = vsub.f32 %v713, %v722
    %v728 = vsub.f32 %v716, %v726
    %v729 = vmul.f32 %v727, 1.442695
    %v730 = vpow.pop %v729
    %v731 = vmul.f32 %v728, 1.442695
    %v732 = vpow.pop %v731
    %v733 = vsel %vm719, %v730, 0.0
    %734 = vadd.xlane.f32.xlu0 %v733
    %v735 = vpop.xlane.xlu0 %734
    %v736 = vsel %vm723, %v732, 0.0
    %737 = vadd.xlane.f32.xlu0 %v736
    %v738 = vpop.xlane.xlu0 %737
    %v739 = vrcp.pop %v735
    %v740 = vrcp.pop %v738
    %v741 = vmul.f32 %v730, %v739
    %v742 = vmul.f32 %v732, %v740
    %v743 = vpack.c.bf16 %v742, %v741
    %744 = vrot.lane.b32.xlu0 %v666, 64
    %v745 = vpop.permute.xlu0 %744
    %v747 = vsel %vm719, %v743, 0
    %vm749 = vcmask 1043456
    %vm750 = vcmask 1044480
    %v751 = vsel %vm749, 4294967295, 65535
    %v752 = vsel %vm750, %v751, 0
    %v754 = vand.u32 %v745, %v752
    %756 = vmatprep.subr.bf16.mxu0 0
    %757 = vmatpush1.bf16.msra.mxu0 %v754
    %758 = vmatprep.subr.bf16.mxu0 0
    %759 = vmatpush1.bf16.msra.mxu0 0
    %760 = vmatprep.subr.bf16.mxu0 0
    %761 = vmatpush1.bf16.msra.mxu0 0
    %762 = vmatprep.subr.bf16.mxu0 0
    %763 = vmatpush1.bf16.msra.mxu0 0
    %764 = vmatprep.subr.bf16.mxu0 0
    %765 = vmatpush1.bf16.msra.mxu0 0
    %766 = vmatprep.subr.bf16.mxu0 0
    %767 = vmatpush1.bf16.msra.mxu0 0
    %768 = vmatprep.subr.bf16.mxu0 0
    %769 = vmatpush1.bf16.msra.mxu0 0
    %770 = vmatprep.subr.bf16.mxu0 0
    %771 = vmatpush1.bf16.msra.mxu0 0
    %772 = vmatprep.subr.bf16.mxu0 0
    %773 = vmatpush1.bf16.msra.mxu0 0
    %774 = vmatprep.subr.bf16.mxu0 0
    %775 = vmatpush1.bf16.msra.mxu0 0
    %776 = vmatprep.subr.bf16.mxu0 0
    %777 = vmatpush1.bf16.msra.mxu0 0
    %778 = vmatprep.subr.bf16.mxu0 0
    %779 = vmatpush1.bf16.msra.mxu0 0
    %780 = vmatprep.subr.bf16.mxu0 0
    %781 = vmatpush1.bf16.msra.mxu0 0
    %782 = vmatprep.subr.bf16.mxu0 0
    %783 = vmatpush1.bf16.msra.mxu0 0
    %784 = vmatprep.subr.bf16.mxu0 0
    %785 = vmatpush1.bf16.msra.mxu0 0
    %786 = vmatprep.subr.bf16.mxu0 0
    %787 = vmatpush1.bf16.msra.mxu0 0
    %788 = vmatprep.mubr.bf16.mxu0 0
    %789 = vmatmul.mubr.bf16.gmra.mrb[0].mxu0 %v747
    %v790 = vpop.f32.mrb[0].mxu0
    %v791 = vadd.f32 0.0, %v790
    %v792 = vpop.f32.mrb[0].mxu0
    %v793 = vpop.f32.mrb[0].mxu0
    %v794 = vadd.f32 0.0, %v793
    %v795 = vpop.f32.mrb[0].mxu0
    %796 = vdwg.mxu0
    %vm797 = vsmask.f32 3328
    %v798 = vshrl.u32 %v666, 16
    %v800 = vrot.slane %v798, 4
    %v801 = vshll.u32 %v666, 16
    %v803 = vrot.slane %v801, 5
    %v804 = vor.u32 %v800, %v803
    %v806 = vshrl.u32 %v667, 16
    %v808 = vrot.slane %v806, 4
    %v809 = vshll.u32 %v667, 16
    %v811 = vrot.slane %v809, 5
    %v812 = vor.u32 %v808, %v811
    %v813 = vsel %vm797, %v804, %v812
    %814 = vrot.lane.b32.xlu0 %v813, 96
    %v815 = vpop.permute.xlu0 %814
    %v817 = vsel %vm671, %v813, 0
    %v820 = vsel %vm671, %v815, 0
    %822 = vmatprep.subr.bf16.mxu0 0
    %823 = vmatpush1.bf16.xpose.msra.mxu0 %v820
    %824 = vmatprep.subr.bf16.mxu0 0
    %825 = vmatpush1.bf16.xpose.msra.mxu0 0
    %826 = vmatprep.subr.bf16.mxu0 0
    %827 = vmatpush1.bf16.xpose.msra.mxu0 0
    %828 = vmatprep.subr.bf16.mxu0 0
    %829 = vmatpush1.bf16.xpose.msra.mxu0 0
    %830 = vmatprep.subr.bf16.mxu0 0
    %831 = vmatpush1.bf16.xpose.msra.mxu0 0
    %832 = vmatprep.subr.bf16.mxu0 0
    %833 = vmatpush1.bf16.xpose.msra.mxu0 0
    %834 = vmatprep.subr.bf16.mxu0 0
    %835 = vmatpush1.bf16.xpose.msra.mxu0 0
    %836 = vmatprep.subr.bf16.mxu0 0
    %837 = vmatpush1.bf16.xpose.msra.mxu0 0
    %838 = vmatprep.subr.bf16.mxu0 0
    %839 = vmatpush1.bf16.xpose.msra.mxu0 0
    %840 = vmatprep.subr.bf16.mxu0 0
    %841 = vmatpush1.bf16.xpose.msra.mxu0 0
    %842 = vmatprep.subr.bf16.mxu0 0
    %843 = vmatpush1.bf16.xpose.msra.mxu0 0
    %844 = vmatprep.subr.bf16.mxu0 0
    %845 = vmatpush1.bf16.xpose.msra.mxu0 0
    %846 = vmatprep.subr.bf16.mxu0 0
    %847 = vmatpush1.bf16.xpose.msra.mxu0 0
    %848 = vmatprep.subr.bf16.mxu0 0
    %849 = vmatpush1.bf16.xpose.msra.mxu0 0
    %850 = vmatprep.subr.bf16.mxu0 0
    %851 = vmatpush1.bf16.xpose.msra.mxu0 0
    %852 = vmatprep.subr.bf16.mxu0 0
    %853 = vmatpush1.bf16.xpose.msra.mxu0 0
    %854 = vmatprep.mubr.bf16.mxu0 0
    %855 = vmatmul.mubr.bf16.gmra.mrb[0].mxu0 %v817
    %v856 = vpop.f32.mrb[0].mxu0
    %v857 = vadd.f32 0.0, %v856
    %v858 = vpop.f32.mrb[0].mxu0
    %v859 = vpop.f32.mrb[0].mxu0
    %v860 = vadd.f32 0.0, %v859
    %v861 = vpop.f32.mrb[0].mxu0
    %862 = vdwg.mxu0
    %v863 = vsel %vm719, %v857, -inf
    %864 = vmax.xlane.f32.xlu0 %v863
    %v865 = vpop.xlane.xlu0 %864
    %v866 = vsel %vm723, %v860, -inf
    %867 = vmax.xlane.f32.xlu0 %v866
    %v868 = vpop.xlane.xlu0 %867
    %v869 = vsub.f32 %v857, %v865
    %v870 = vsub.f32 %v860, %v868
    %v871 = vmul.f32 %v869, 1.442695
    %v872 = vpow.pop %v871
    %v873 = vmul.f32 %v870, 1.442695
    %v874 = vpow.pop %v873
    %v875 = vsel %vm719, %v872, 0.0
    %876 = vadd.xlane.f32.xlu0 %v875
    %v877 = vpop.xlane.xlu0 %876
    %v878 = vsel %vm723, %v874, 0.0
    %879 = vadd.xlane.f32.xlu0 %v878
    %v880 = vpop.xlane.xlu0 %879
    %v881 = vrcp.pop %v877
    %v882 = vrcp.pop %v880
    %v883 = vmul.f32 %v872, %v881
    %v884 = vmul.f32 %v874, %v882
    %v885 = vpack.c.bf16 %v884, %v883
    %886 = vrot.lane.b32.xlu0 %v813, 64
    %v887 = vpop.permute.xlu0 %886
    %v889 = vsel %vm719, %v885, 0
    %v892 = vand.u32 %v887, %v752
    %894 = vmatprep.subr.bf16.mxu0 0
    %895 = vmatpush1.bf16.msra.mxu0 %v892
    %896 = vmatprep.subr.bf16.mxu0 0
    %897 = vmatpush1.bf16.msra.mxu0 0
    %898 = vmatprep.subr.bf16.mxu0 0
    %899 = vmatpush1.bf16.msra.mxu0 0
    %900 = vmatprep.subr.bf16.mxu0 0
    %901 = vmatpush1.bf16.msra.mxu0 0
    %902 = vmatprep.subr.bf16.mxu0 0
    %903 = vmatpush1.bf16.msra.mxu0 0
    %904 = vmatprep.subr.bf16.mxu0 0
    %905 = vmatpush1.bf16.msra.mxu0 0
    %906 = vmatprep.subr.bf16.mxu0 0
    %907 = vmatpush1.bf16.msra.mxu0 0
    %908 = vmatprep.subr.bf16.mxu0 0
    %909 = vmatpush1.bf16.msra.mxu0 0
    %910 = vmatprep.subr.bf16.mxu0 0
    %911 = vmatpush1.bf16.msra.mxu0 0
    %912 = vmatprep.subr.bf16.mxu0 0
    %913 = vmatpush1.bf16.msra.mxu0 0
    %914 = vmatprep.subr.bf16.mxu0 0
    %915 = vmatpush1.bf16.msra.mxu0 0
    %916 = vmatprep.subr.bf16.mxu0 0
    %917 = vmatpush1.bf16.msra.mxu0 0
    %918 = vmatprep.subr.bf16.mxu0 0
    %919 = vmatpush1.bf16.msra.mxu0 0
    %920 = vmatprep.subr.bf16.mxu0 0
    %921 = vmatpush1.bf16.msra.mxu0 0
    %922 = vmatprep.subr.bf16.mxu0 0
    %923 = vmatpush1.bf16.msra.mxu0 0
    %924 = vmatprep.subr.bf16.mxu0 0
    %925 = vmatpush1.bf16.msra.mxu0 0
    %926 = vmatprep.mubr.bf16.mxu0 0
    %927 = vmatmul.mubr.bf16.gmra.mrb[0].mxu0 %v889
    %v928 = vpop.f32.mrb[0].mxu0
    %v929 = vadd.f32 0.0, %v928
    %v930 = vpop.f32.mrb[0].mxu0
    %v931 = vpop.f32.mrb[0].mxu0
    %v932 = vadd.f32 0.0, %v931
    %v933 = vpop.f32.mrb[0].mxu0
    %934 = vdwg.mxu0
    %v937 = vrot.slane %v929, 7
    %v938 = vrot.slane %v932, 7
    %v939 = vsel %vm516, %v937, %v938
    %v942 = vsel %vm516, %v794, %v937
    %943 = vrot.lane.b32.xlu0 %v666, 112
    %v944 = vpop.permute.xlu0 %943
    %945 = vrot.lane.b32.xlu0 %v666, 80
    %v946 = vpop.permute.xlu0 %945
    %v948 = vsel %vm671, %v944, 0
    %v951 = vsel %vm671, %v946, 0
    %953 = vmatprep.subr.bf16.mxu0 0
    %954 = vmatpush1.bf16.xpose.msra.mxu0 %v951
    %955 = vmatprep.subr.bf16.mxu0 0
    %956 = vmatpush1.bf16.xpose.msra.mxu0 0
    %957 = vmatprep.subr.bf16.mxu0 0
    %958 = vmatpush1.bf16.xpose.msra.mxu0 0
    %959 = vmatprep.subr.bf16.mxu0 0
    %960 = vmatpush1.bf16.xpose.msra.mxu0 0
    %961 = vmatprep.subr.bf16.mxu0 0
    %962 = vmatpush1.bf16.xpose.msra.mxu0 0
    %963 = vmatprep.subr.bf16.mxu0 0
    %964 = vmatpush1.bf16.xpose.msra.mxu0 0
    %965 = vmatprep.subr.bf16.mxu0 0
    %966 = vmatpush1.bf16.xpose.msra.mxu0 0
    %967 = vmatprep.subr.bf16.mxu0 0
    %968 = vmatpush1.bf16.xpose.msra.mxu0 0
    %969 = vmatprep.subr.bf16.mxu0 0
    %970 = vmatpush1.bf16.xpose.msra.mxu0 0
    %971 = vmatprep.subr.bf16.mxu0 0
    %972 = vmatpush1.bf16.xpose.msra.mxu0 0
    %973 = vmatprep.subr.bf16.mxu0 0
    %974 = vmatpush1.bf16.xpose.msra.mxu0 0
    %975 = vmatprep.subr.bf16.mxu0 0
    %976 = vmatpush1.bf16.xpose.msra.mxu0 0
    %977 = vmatprep.subr.bf16.mxu0 0
    %978 = vmatpush1.bf16.xpose.msra.mxu0 0
    %979 = vmatprep.subr.bf16.mxu0 0
    %980 = vmatpush1.bf16.xpose.msra.mxu0 0
    %981 = vmatprep.subr.bf16.mxu0 0
    %982 = vmatpush1.bf16.xpose.msra.mxu0 0
    %983 = vmatprep.subr.bf16.mxu0 0
    %984 = vmatpush1.bf16.xpose.msra.mxu0 0
    %985 = vmatprep.mubr.bf16.mxu0 0
    %986 = vmatmul.mubr.bf16.gmra.mrb[0].mxu0 %v948
    %v987 = vpop.f32.mrb[0].mxu0
    %v988 = vadd.f32 0.0, %v987
    %v989 = vpop.f32.mrb[0].mxu0
    %v990 = vpop.f32.mrb[0].mxu0
    %v991 = vadd.f32 0.0, %v990
    %v992 = vpop.f32.mrb[0].mxu0
    %993 = vdwg.mxu0
    %v994 = vsel %vm719, %v988, -inf
    %995 = vmax.xlane.f32.xlu0 %v994
    %v996 = vpop.xlane.xlu0 %995
    %v997 = vsel %vm723, %v991, -inf
    %998 = vmax.xlane.f32.xlu0 %v997
    %v999 = vpop.xlane.xlu0 %998
    %v1000 = vsub.f32 %v988, %v996
    %v1001 = vsub.f32 %v991, %v999
    %v1002 = vmul.f32 %v1000, 1.442695
    %v1003 = vpow.pop %v1002
    %v1004 = vmul.f32 %v1001, 1.442695
    %v1005 = vpow.pop %v1004
    %v1006 = vsel %vm719, %v1003, 0.0
    %1007 = vadd.xlane.f32.xlu0 %v1006
    %v1008 = vpop.xlane.xlu0 %1007
    %v1009 = vsel %vm723, %v1005, 0.0
    %1010 = vadd.xlane.f32.xlu0 %v1009
    %v1011 = vpop.xlane.xlu0 %1010
    %v1012 = vrcp.pop %v1008
    %v1013 = vrcp.pop %v1011
    %v1014 = vmul.f32 %v1003, %v1012
    %v1015 = vmul.f32 %v1005, %v1013
    %v1016 = vpack.c.bf16 %v1015, %v1014
    %1017 = vrot.lane.b32.xlu0 %v666, 48
    %v1018 = vpop.permute.xlu0 %1017
    %v1020 = vsel %vm719, %v1016, 0
    %v1023 = vand.u32 %v1018, %v752
    %1025 = vmatprep.subr.bf16.mxu0 0
    %1026 = vmatpush1.bf16.msra.mxu0 %v1023
    %1027 = vmatprep.subr.bf16.mxu0 0
    %1028 = vmatpush1.bf16.msra.mxu0 0
    %1029 = vmatprep.subr.bf16.mxu0 0
    %1030 = vmatpush1.bf16.msra.mxu0 0
    %1031 = vmatprep.subr.bf16.mxu0 0
    %1032 = vmatpush1.bf16.msra.mxu0 0
    %1033 = vmatprep.subr.bf16.mxu0 0
    %1034 = vmatpush1.bf16.msra.mxu0 0
    %1035 = vmatprep.subr.bf16.mxu0 0
    %1036 = vmatpush1.bf16.msra.mxu0 0
    %1037 = vmatprep.subr.bf16.mxu0 0
    %1038 = vmatpush1.bf16.msra.mxu0 0
    %1039 = vmatprep.subr.bf16.mxu0 0
    %1040 = vmatpush1.bf16.msra.mxu0 0
    %1041 = vmatprep.subr.bf16.mxu0 0
    %1042 = vmatpush1.bf16.msra.mxu0 0
    %1043 = vmatprep.subr.bf16.mxu0 0
    %1044 = vmatpush1.bf16.msra.mxu0 0
    %1045 = vmatprep.subr.bf16.mxu0 0
    %1046 = vmatpush1.bf16.msra.mxu0 0
    %1047 = vmatprep.subr.bf16.mxu0 0
    %1048 = vmatpush1.bf16.msra.mxu0 0
    %1049 = vmatprep.subr.bf16.mxu0 0
    %1050 = vmatpush1.bf16.msra.mxu0 0
    %1051 = vmatprep.subr.bf16.mxu0 0
    %1052 = vmatpush1.bf16.msra.mxu0 0
    %1053 = vmatprep.subr.bf16.mxu0 0
    %1054 = vmatpush1.bf16.msra.mxu0 0
    %1055 = vmatprep.subr.bf16.mxu0 0
    %1056 = vmatpush1.bf16.msra.mxu0 0
    %1057 = vmatprep.mubr.bf16.mxu0 0
    %1058 = vmatmul.mubr.bf16.gmra.mrb[0].mxu0 %v1020
    %v1059 = vpop.f32.mrb[0].mxu0
    %v1060 = vadd.f32 0.0, %v1059
    %v1061 = vpop.f32.mrb[0].mxu0
    %v1062 = vpop.f32.mrb[0].mxu0
    %v1063 = vadd.f32 0.0, %v1062
    %v1064 = vpop.f32.mrb[0].mxu0
    %1065 = vdwg.mxu0
    %1066 = vrot.lane.b32.xlu0 %v813, 112
    %v1067 = vpop.permute.xlu0 %1066
    %1068 = vrot.lane.b32.xlu0 %v813, 80
    %v1069 = vpop.permute.xlu0 %1068
    %v1071 = vsel %vm671, %v1067, 0
    %v1074 = vsel %vm671, %v1069, 0
    %1076 = vmatprep.subr.bf16.mxu0 0
    %1077 = vmatpush1.bf16.xpose.msra.mxu0 %v1074
    %1078 = vmatprep.subr.bf16.mxu0 0
    %1079 = vmatpush1.bf16.xpose.msra.mxu0 0
    %1080 = vmatprep.subr.bf16.mxu0 0
    %1081 = vmatpush1.bf16.xpose.msra.mxu0 0
    %1082 = vmatprep.subr.bf16.mxu0 0
    %1083 = vmatpush1.bf16.xpose.msra.mxu0 0
    %1084 = vmatprep.subr.bf16.mxu0 0
    %1085 = vmatpush1.bf16.xpose.msra.mxu0 0
    %1086 = vmatprep.subr.bf16.mxu0 0
    %1087 = vmatpush1.bf16.xpose.msra.mxu0 0
    %1088 = vmatprep.subr.bf16.mxu0 0
    %1089 = vmatpush1.bf16.xpose.msra.mxu0 0
    %1090 = vmatprep.subr.bf16.mxu0 0
    %1091 = vmatpush1.bf16.xpose.msra.mxu0 0
    %1092 = vmatprep.subr.bf16.mxu0 0
    %1093 = vmatpush1.bf16.xpose.msra.mxu0 0
    %1094 = vmatprep.subr.bf16.mxu0 0
    %1095 = vmatpush1.bf16.xpose.msra.mxu0 0
    %1096 = vmatprep.subr.bf16.mxu0 0
    %1097 = vmatpush1.bf16.xpose.msra.mxu0 0
    %1098 = vmatprep.subr.bf16.mxu0 0
    %1099 = vmatpush1.bf16.xpose.msra.mxu0 0
    %1100 = vmatprep.subr.bf16.mxu0 0
    %1101 = vmatpush1.bf16.xpose.msra.mxu0 0
    %1102 = vmatprep.subr.bf16.mxu0 0
    %1103 = vmatpush1.bf16.xpose.msra.mxu0 0
    %1104 = vmatprep.subr.bf16.mxu0 0
    %1105 = vmatpush1.bf16.xpose.msra.mxu0 0
    %1106 = vmatprep.subr.bf16.mxu0 0
    %1107 = vmatpush1.bf16.xpose.msra.mxu0 0
    %1108 = vmatprep.mubr.bf16.mxu0 0
    %1109 = vmatmul.mubr.bf16.gmra.mrb[0].mxu0 %v1071
    %v1110 = vpop.f32.mrb[0].mxu0
    %v1111 = vadd.f32 0.0, %v1110
    %v1112 = vpop.f32.mrb[0].mxu0
    %v1113 = vpop.f32.mrb[0].mxu0
    %v1114 = vadd.f32 0.0, %v1113
    %v1115 = vpop.f32.mrb[0].mxu0
    %1116 = vdwg.mxu0
    %v1117 = vsel %vm719, %v1111, -inf
    %1118 = vmax.xlane.f32.xlu0 %v1117
    %v1119 = vpop.xlane.xlu0 %1118
    %v1120 = vsel %vm723, %v1114, -inf
    %1121 = vmax.xlane.f32.xlu0 %v1120
    %v1122 = vpop.xlane.xlu0 %1121
    %v1123 = vsub.f32 %v1111, %v1119
    %v1124 = vsub.f32 %v1114, %v1122
    %v1125 = vmul.f32 %v1123, 1.442695
    %v1126 = vpow.pop %v1125
    %v1127 = vmul.f32 %v1124, 1.442695
    %v1128 = vpow.pop %v1127
    %v1129 = vsel %vm719, %v1126, 0.0
    %1130 = vadd.xlane.f32.xlu0 %v1129
    %v1131 = vpop.xlane.xlu0 %1130
    %v1132 = vsel %vm723, %v1128, 0.0
    %1133 = vadd.xlane.f32.xlu0 %v1132
    %v1134 = vpop.xlane.xlu0 %1133
    %v1135 = vrcp.pop %v1131
    %v1136 = vrcp.pop %v1134
    %v1137 = vmul.f32 %v1126, %v1135
    %v1138 = vmul.f32 %v1128, %v1136
    %v1139 = vpack.c.bf16 %v1138, %v1137
    %1140 = vrot.lane.b32.xlu0 %v813, 48
    %v1141 = vpop.permute.xlu0 %1140
    %v1143 = vsel %vm719, %v1139, 0
    %v1146 = vand.u32 %v1141, %v752
    %1148 = vmatprep.subr.bf16.mxu0 0
    %1149 = vmatpush1.bf16.msra.mxu0 %v1146
    %1150 = vmatprep.subr.bf16.mxu0 0
    %1151 = vmatpush1.bf16.msra.mxu0 0
    %1152 = vmatprep.subr.bf16.mxu0 0
    %1153 = vmatpush1.bf16.msra.mxu0 0
    %1154 = vmatprep.subr.bf16.mxu0 0
    %1155 = vmatpush1.bf16.msra.mxu0 0
    %1156 = vmatprep.subr.bf16.mxu0 0
    %1157 = vmatpush1.bf16.msra.mxu0 0
    %1158 = vmatprep.subr.bf16.mxu0 0
    %1159 = vmatpush1.bf16.msra.mxu0 0
    %1160 = vmatprep.subr.bf16.mxu0 0
    %1161 = vmatpush1.bf16.msra.mxu0 0
    %1162 = vmatprep.subr.bf16.mxu0 0
    %1163 = vmatpush1.bf16.msra.mxu0 0
    %1164 = vmatprep.subr.bf16.mxu0 0
    %1165 = vmatpush1.bf16.msra.mxu0 0
    %1166 = vmatprep.subr.bf16.mxu0 0
    %1167 = vmatpush1.bf16.msra.mxu0 0
    %1168 = vmatprep.subr.bf16.mxu0 0
    %1169 = vmatpush1.bf16.msra.mxu0 0
    %1170 = vmatprep.subr.bf16.mxu0 0
    %1171 = vmatpush1.bf16.msra.mxu0 0
    %1172 = vmatprep.subr.bf16.mxu0 0
    %1173 = vmatpush1.bf16.msra.mxu0 0
    %1174 = vmatprep.subr.bf16.mxu0 0
    %1175 = vmatpush1.bf16.msra.mxu0 0
    %1176 = vmatprep.subr.bf16.mxu0 0
    %1177 = vmatpush1.bf16.msra.mxu0 0
    %1178 = vmatprep.subr.bf16.mxu0 0
    %1179 = vmatpush1.bf16.msra.mxu0 0
    %1180 = vmatprep.mubr.bf16.mxu0 0
    %1181 = vmatmul.mubr.bf16.gmra.mrb[0].mxu0 %v1143
    %v1182 = vpop.f32.mrb[0].mxu0
    %v1183 = vadd.f32 0.0, %v1182
    %v1184 = vpop.f32.mrb[0].mxu0
    %v1185 = vpop.f32.mrb[0].mxu0
    %v1186 = vadd.f32 0.0, %v1185
    %v1187 = vpop.f32.mrb[0].mxu0
    %1188 = vdwg.mxu0
    %v1191 = vrot.slane %v1183, 7
    %v1192 = vrot.slane %v1186, 7
    %v1193 = vsel %vm516, %v1191, %v1192
    %v1195 = vsel %vm516, %v1063, %v1191
    %1198 = vrot.lane.b32.xlu0 %v1060, 16
    %v1199 = vpop.permute.xlu0 %1198
    %1200 = vrot.lane.b32.xlu0 %v1195, 16
    %v1201 = vpop.permute.xlu0 %1200
    %1202 = vrot.lane.b32.xlu0 %v1193, 16
    %v1203 = vpop.permute.xlu0 %1202
    %v1207 = vsel %vm671, %v791, %v1199
    %v1208 = vsel %vm671, %v942, %v1201
    %v1209 = vsel %vm671, %v939, %v1203
    %v1210 = vpack.c.bf16 %v1208, %v1207
    %v1211 = vpack.c.bf16 %v1209, %v1209
    %v1212 = vld [vmem:[%s12] sm:$0xf]
    %v1213 = vld [vmem:[%s12 + $0x4] sm:$0xf]
    %v1214 = vld [vmem:[%s12 + $0x8] sm:$0xf]
    %v1215 = vld [vmem:[%s12 + $0xc] sm:$0xf]
    %v1216 = vld [vmem:[%s13] sm:$0x1]
    %v1218 = vlaneseq
    %v1219 = vshrl.u32 %v1218, 7
    %v1220 = vsub.s32 0, %v1219
    %v1221 = vrot.slane %v1216, %v1220
    %v1227 = vunpack.c.l.b16 %v1212
    %v1228 = vunpack.c.l.b16 %v1213
    %v1229 = vunpack.c.l.b16 %v1214
    %v1230 = vunpack.c.l.b16 %v1215
    %v1231 = vpack.c.b16 %v1228, %v1227
    %v1232 = vpack.c.b16 %v1230, %v1229
    %v1236 = vsel %vm466, %v1210, 0
    %v1239 = vsel %vm466, %v1211, 0
    %1241 = vmatprep.subr.bf16.mxu0 0
    %1242 = vmatpush1.bf16.msra.mxu0 %v1231
    %1243 = vmatprep.subr.bf16.mxu0 0
    %1244 = vmatpush1.bf16.msra.mxu0 %v1232
    %1245 = vmatprep.subr.bf16.mxu0 0
    %1246 = vmatpush1.bf16.msra.mxu0 0
    %1247 = vmatprep.subr.bf16.mxu0 0
    %1248 = vmatpush1.bf16.msra.mxu0 0
    %1249 = vmatprep.subr.bf16.mxu0 0
    %1250 = vmatpush1.bf16.msra.mxu0 0
    %1251 = vmatprep.subr.bf16.mxu0 0
    %1252 = vmatpush1.bf16.msra.mxu0 0
    %1253 = vmatprep.subr.bf16.mxu0 0
    %1254 = vmatpush1.bf16.msra.mxu0 0
    %1255 = vmatprep.subr.bf16.mxu0 0
    %1256 = vmatpush1.bf16.msra.mxu0 0
    %1257 = vmatprep.subr.bf16.mxu0 0
    %1258 = vmatpush1.bf16.msra.mxu0 0
    %1259 = vmatprep.subr.bf16.mxu0 0
    %1260 = vmatpush1.bf16.msra.mxu0 0
    %1261 = vmatprep.subr.bf16.mxu0 0
    %1262 = vmatpush1.bf16.msra.mxu0 0
    %1263 = vmatprep.subr.bf16.mxu0 0
    %1264 = vmatpush1.bf16.msra.mxu0 0
    %1265 = vmatprep.subr.bf16.mxu0 0
    %1266 = vmatpush1.bf16.msra.mxu0 0
    %1267 = vmatprep.subr.bf16.mxu0 0
    %1268 = vmatpush1.bf16.msra.mxu0 0
    %1269 = vmatprep.subr.bf16.mxu0 0
    %1270 = vmatpush1.bf16.msra.mxu0 0
    %1271 = vmatprep.subr.bf16.mxu0 0
    %1272 = vmatpush1.bf16.msra.mxu0 0
    %1273 = vmatprep.mubr.bf16.mxu0 0
    %1274 = vmatmul.mubr.bf16.gmra.mrb[0].mxu0 %v1236
    %v1275 = vpop.f32.mrb[0].mxu0
    %v1276 = vadd.f32 %v1221, %v1275
    %v1277 = vpop.f32.mrb[0].mxu0
    %v1278 = vpop.f32.mrb[0].mxu0
    %v1279 = vadd.f32 %v1221, %v1278
    %v1280 = vpop.f32.mrb[0].mxu0
    %1281 = vmatprep.mubr.bf16.mxu0 0
    %1282 = vmatmul.mubr.bf16.gmra.mrb[0].mxu0 %v1239
    %v1283 = vpop.f32.mrb[0].mxu0
    %v1284 = vadd.f32 %v1221, %v1283
    %v1285 = vpop.f32.mrb[0].mxu0
    %v1286 = vpop.f32.mrb[0].mxu0
    %v1287 = vpop.f32.mrb[0].mxu0
    %1288 = vdwg.mxu0
    %v1289 = vadd.f32 %v518, %v1276
    %v1290 = vadd.f32 %v533, %v1279
    %v1291 = vadd.f32 %v530, %v1284
    %v1292 = vld [vmem:[%s14] sm:$0x1]
    %v1293 = vld [vmem:[%s15] sm:$0x1]
    %v1294 = vsel %vm466, %v1289, 0.0
    %1295 = vadd.xlane.f32.xlu0 %v1294
    %v1296 = vpop.xlane.xlu0 %1295
    %v1297 = vsel %vm466, %v1290, 0.0
    %1298 = vadd.xlane.f32.xlu0 %v1297
    %v1299 = vpop.xlane.xlu0 %1298
    %v1300 = vsel %vm542, %v1291, 0.0
    %1301 = vadd.xlane.f32.xlu0 %v1300
    %v1302 = vpop.xlane.xlu0 %1301
    %v1303 = vmul.f32 %v1296, %v473
    %v1304 = vmul.f32 %v1299, %v473
    %v1305 = vmul.f32 %v1302, %v473
    %v1306 = vsub.f32 %v1289, %v1303
    %v1307 = vsub.f32 %v1290, %v1304
    %v1308 = vsub.f32 %v1291, %v1305
    %v1309 = vmul.f32 %v1306, %v1306
    %v1310 = vmul.f32 %v1307, %v1307
    %v1311 = vmul.f32 %v1308, %v1308
    %v1312 = vsel %vm466, %v1309, 0.0
    %1313 = vadd.xlane.f32.xlu0 %v1312
    %v1314 = vpop.xlane.xlu0 %1313
    %v1315 = vsel %vm466, %v1310, 0.0
    %1316 = vadd.xlane.f32.xlu0 %v1315
    %v1317 = vpop.xlane.xlu0 %1316
    %v1318 = vsel %vm542, %v1311, 0.0
    %1319 = vadd.xlane.f32.xlu0 %v1318
    %v1320 = vpop.xlane.xlu0 %1319
    %v1321 = vmul.f32 %v1314, %v473
    %v1322 = vmul.f32 %v1317, %v473
    %v1323 = vmul.f32 %v1320, %v473
    %v1324 = vadd.f32 %v1321, 1e-05
    %v1325 = vadd.f32 %v1322, 1e-05
    %v1326 = vadd.f32 %v1323, 1e-05
    %v1327 = vrsqrt.pop %v1324
    %v1328 = vrsqrt.pop %v1325
    %v1329 = vrsqrt.pop %v1326
    %v1330 = vmul.f32 %v1306, %v1327
    %v1331 = vmul.f32 %v1307, %v1328
    %v1332 = vmul.f32 %v1308, %v1329
    %v1334 = vlaneseq
    %v1335 = vshrl.u32 %v1334, 7
    %v1336 = vsub.s32 0, %v1335
    %v1337 = vrot.slane %v1292, %v1336
    %v1339 = vmul.f32 %v1330, %v1337
    %v1340 = vmul.f32 %v1331, %v1337
    %v1341 = vmul.f32 %v1332, %v1337
    %v1343 = vlaneseq
    %v1344 = vshrl.u32 %v1343, 7
    %v1345 = vsub.s32 0, %v1344
    %v1346 = vrot.slane %v1293, %v1345
    %v1348 = vadd.f32 %v1339, %v1346
    %v1349 = vadd.f32 %v1340, %v1346
    %v1350 = vadd.f32 %v1341, %v1346
    %v1351 = vpack.c.bf16 %v1349, %v1348
    %v1352 = vpack.c.bf16 %v1350, %v1350
    %v1353 = vld [vmem:[%s16] sm:$0xf]
    %v1354 = vld [vmem:[%s16 + $0x4] sm:$0xf]
    %v1355 = vld [vmem:[%s16 + $0x8] sm:$0xf]
    %v1356 = vld [vmem:[%s16 + $0xc] sm:$0xf]
    %v1357 = vld [vmem:[%s17] sm:$0x1]
    %v1359 = vlaneseq
    %v1360 = vshrl.u32 %v1359, 7
    %v1361 = vsub.s32 0, %v1360
    %v1362 = vrot.slane %v1357, %v1361
    %v1368 = vunpack.c.l.b16 %v1353
    %v1369 = vunpack.c.l.b16 %v1354
    %v1370 = vunpack.c.l.b16 %v1355
    %v1371 = vunpack.c.l.b16 %v1356
    %v1372 = vpack.c.b16 %v1369, %v1368
    %v1373 = vpack.c.b16 %v1371, %v1370
    %v1377 = vsel %vm466, %v1351, 0
    %v1380 = vsel %vm466, %v1352, 0
    %1382 = vmatprep.subr.bf16.mxu0 0
    %1383 = vmatpush1.bf16.msra.mxu0 %v1372
    %1384 = vmatprep.subr.bf16.mxu0 0
    %1385 = vmatpush1.bf16.msra.mxu0 %v1373
    %1386 = vmatprep.subr.bf16.mxu0 0
    %1387 = vmatpush1.bf16.msra.mxu0 0
    %1388 = vmatprep.subr.bf16.mxu0 0
    %1389 = vmatpush1.bf16.msra.mxu0 0
    %1390 = vmatprep.subr.bf16.mxu0 0
    %1391 = vmatpush1.bf16.msra.mxu0 0
    %1392 = vmatprep.subr.bf16.mxu0 0
    %1393 = vmatpush1.bf16.msra.mxu0 0
    %1394 = vmatprep.subr.bf16.mxu0 0
    %1395 = vmatpush1.bf16.msra.mxu0 0
    %1396 = vmatprep.subr.bf16.mxu0 0
    %1397 = vmatpush1.bf16.msra.mxu0 0
    %1398 = vmatprep.subr.bf16.mxu0 0
    %1399 = vmatpush1.bf16.msra.mxu0 0
    %1400 = vmatprep.subr.bf16.mxu0 0
    %1401 = vmatpush1.bf16.msra.mxu0 0
    %1402 = vmatprep.subr.bf16.mxu0 0
    %1403 = vmatpush1.bf16.msra.mxu0 0
    %1404 = vmatprep.subr.bf16.mxu0 0
    %1405 = vmatpush1.bf16.msra.mxu0 0
    %1406 = vmatprep.subr.bf16.mxu0 0
    %1407 = vmatpush1.bf16.msra.mxu0 0
    %1408 = vmatprep.subr.bf16.mxu0 0
    %1409 = vmatpush1.bf16.msra.mxu0 0
    %1410 = vmatprep.subr.bf16.mxu0 0
    %1411 = vmatpush1.bf16.msra.mxu0 0
    %1412 = vmatprep.subr.bf16.mxu0 0
    %1413 = vmatpush1.bf16.msra.mxu0 0
    %1414 = vmatprep.mubr.bf16.mxu0 0
    %1415 = vmatmul.mubr.bf16.gmra.mrb[0].mxu0 %v1377
    %v1416 = vpop.f32.mrb[0].mxu0
    %v1417 = vadd.f32 %v1362, %v1416
    %v1418 = vpop.f32.mrb[0].mxu0
    %v1419 = vpop.f32.mrb[0].mxu0
    %v1420 = vadd.f32 %v1362, %v1419
    %v1421 = vpop.f32.mrb[0].mxu0
    %1422 = vmatprep.mubr.bf16.mxu0 0
    %1423 = vmatmul.mubr.bf16.gmra.mrb[0].mxu0 %v1380
    %v1424 = vpop.f32.mrb[0].mxu0
    %v1425 = vadd.f32 %v1362, %v1424
    %v1426 = vpop.f32.mrb[0].mxu0
    %v1427 = vpop.f32.mrb[0].mxu0
    %v1428 = vpop.f32.mrb[0].mxu0
    %1429 = vdwg.mxu0
    %v1430 = vmul.f32 %v1417, %v1417
    %v1431 = vmul.f32 %v1420, %v1420
    %v1432 = vmul.f32 %v1425, %v1425
    %v1433 = vmul.f32 %v1417, %v1430
    %v1434 = vmul.f32 %v1420, %v1431
    %v1435 = vmul.f32 %v1425, %v1432
    %v1436 = vmul.f32 %v1433, 0.044715
    %v1437 = vmul.f32 %v1434, 0.044715
    %v1438 = vmul.f32 %v1435, 0.044715
    %v1439 = vadd.f32 %v1417, %v1436
    %v1440 = vadd.f32 %v1420, %v1437
    %v1441 = vadd.f32 %v1425, %v1438
    %v1442 = vmul.f32 %v1439, 0.7978846
    %v1443 = vmul.f32 %v1440, 0.7978846
    %v1444 = vmul.f32 %v1441, 0.7978846
    %v1445 = vtanh.pop %v1442
    %v1446 = vtanh.pop %v1443
    %v1447 = vtanh.pop %v1444
    %v1448 = vadd.f32 %v1445, 1.0
    %v1449 = vadd.f32 %v1446, 1.0
    %v1450 = vadd.f32 %v1447, 1.0
    %v1451 = vmul.f32 %v1448, 0.5
    %v1452 = vmul.f32 %v1449, 0.5
    %v1453 = vmul.f32 %v1450, 0.5
    %v1454 = vmul.f32 %v1417, %v1451
    %v1455 = vmul.f32 %v1420, %v1452
    %v1456 = vmul.f32 %v1425, %v1453
    %v1457 = vpack.c.bf16 %v1455, %v1454
    %v1458 = vpack.c.bf16 %v1456, %v1456
    %v1459 = vld [vmem:[%s18] sm:$0xf]
    %v1460 = vld [vmem:[%s18 + $0x4] sm:$0xf]
    %v1461 = vld [vmem:[%s18 + $0x8] sm:$0xf]
    %v1462 = vld [vmem:[%s18 + $0xc] sm:$0xf]
    %v1463 = vld [vmem:[%s18 + $0x10] sm:$0xf]
    %v1464 = vld [vmem:[%s18 + $0x14] sm:$0xf]
    %v1465 = vld [vmem:[%s18 + $0x18] sm:$0xf]
    %v1466 = vld [vmem:[%s18 + $0x1c] sm:$0xf]
    %v1467 = vld [vmem:[%s19] sm:$0x1]
    %v1469 = vlaneseq
    %v1470 = vshrl.u32 %v1469, 7
    %v1471 = vsub.s32 0, %v1470
    %v1472 = vrot.slane %v1467, %v1471
    %v1482 = vunpack.c.l.b16 %v1459
    %v1483 = vunpack.c.l.b16 %v1460
    %v1484 = vunpack.c.l.b16 %v1461
    %v1485 = vunpack.c.l.b16 %v1462
    %v1486 = vunpack.c.l.b16 %v1463
    %v1487 = vunpack.c.l.b16 %v1464
    %v1488 = vunpack.c.l.b16 %v1465
    %v1489 = vunpack.c.l.b16 %v1466
    %v1490 = vpack.c.b16 %v1483, %v1482
    %v1491 = vpack.c.b16 %v1485, %v1484
    %v1492 = vpack.c.b16 %v1487, %v1486
    %v1493 = vpack.c.b16 %v1489, %v1488
    %vm1498 = vcmask 523264
    %v1500 = vsel %vm1498, %v1457, 0
    %v1503 = vsel %vm1498, %v1458, 0
    %1505 = vmatprep.subr.bf16.mxu0 0
    %1506 = vmatpush1.bf16.msra.mxu0 %v1490
    %1507 = vmatprep.subr.bf16.mxu0 0
    %1508 = vmatpush1.bf16.msra.mxu0 %v1491
    %1509 = vmatprep.subr.bf16.mxu0 0
    %1510 = vmatpush1.bf16.msra.mxu0 %v1492
    %1511 = vmatprep.subr.bf16.mxu0 0
    %1512 = vmatpush1.bf16.msra.mxu0 %v1493
    %1513 = vmatprep.subr.bf16.mxu0 0
    %1514 = vmatpush1.bf16.msra.mxu0 0
    %1515 = vmatprep.subr.bf16.mxu0 0
    %1516 = vmatpush1.bf16.msra.mxu0 0
    %1517 = vmatprep.subr.bf16.mxu0 0
    %1518 = vmatpush1.bf16.msra.mxu0 0
    %1519 = vmatprep.subr.bf16.mxu0 0
    %1520 = vmatpush1.bf16.msra.mxu0 0
    %1521 = vmatprep.subr.bf16.mxu0 0
    %1522 = vmatpush1.bf16.msra.mxu0 0
    %1523 = vmatprep.subr.bf16.mxu0 0
    %1524 = vmatpush1.bf16.msra.mxu0 0
    %1525 = vmatprep.subr.bf16.mxu0 0
    %1526 = vmatpush1.bf16.msra.mxu0 0
    %1527 = vmatprep.subr.bf16.mxu0 0
    %1528 = vmatpush1.bf16.msra.mxu0 0
    %1529 = vmatprep.subr.bf16.mxu0 0
    %1530 = vmatpush1.bf16.msra.mxu0 0
    %1531 = vmatprep.subr.bf16.mxu0 0
    %1532 = vmatpush1.bf16.msra.mxu0 0
    %1533 = vmatprep.subr.bf16.mxu0 0
    %1534 = vmatpush1.bf16.msra.mxu0 0
    %1535 = vmatprep.subr.bf16.mxu0 0
    %1536 = vmatpush1.bf16.msra.mxu0 0
    %1537 = vmatprep.mubr.bf16.mxu0 0
    %1538 = vmatmul.mubr.bf16.gmra.mrb[0].mxu0 %v1500
    %v1539 = vpop.f32.mrb[0].mxu0
    %v1540 = vadd.f32 %v1472, %v1539
    %v1541 = vpop.f32.mrb[0].mxu0
    %v1542 = vpop.f32.mrb[0].mxu0
    %v1543 = vadd.f32 %v1472, %v1542
    %v1544 = vpop.f32.mrb[0].mxu0
    %1545 = vmatprep.mubr.bf16.mxu0 0
    %1546 = vmatmul.mubr.bf16.gmra.mrb[0].mxu0 %v1503
    %v1547 = vpop.f32.mrb[0].mxu0
    %v1548 = vadd.f32 %v1472, %v1547
    %v1549 = vpop.f32.mrb[0].mxu0
    %v1550 = vpop.f32.mrb[0].mxu0
    %v1551 = vpop.f32.mrb[0].mxu0
    %1552 = vdwg.mxu0
    %v1553 = vadd.f32 %v1289, %v1540
    %v1554 = vadd.f32 %v1290, %v1543
    %v1555 = vadd.f32 %v1291, %v1548
    %s1556 = scalar_lea.vmem %s9, 1
    %v1557 = vld [vmem:[%s1556] sm:$0x1]
    %s1558 = scalar_lea.vmem %s10, 1
    %v1559 = vld [vmem:[%s1558] sm:$0x1]
    %v1560 = vsel %vm466, %v1553, 0.0
    %1561 = vadd.xlane.f32.xlu0 %v1560
    %v1562 = vpop.xlane.xlu0 %1561
    %v1563 = vsel %vm466, %v1554, 0.0
    %1564 = vadd.xlane.f32.xlu0 %v1563
    %v1565 = vpop.xlane.xlu0 %1564
    %v1566 = vsel %vm542, %v1555, 0.0
    %1567 = vadd.xlane.f32.xlu0 %v1566
    %v1568 = vpop.xlane.xlu0 %1567
    %v1569 = vmul.f32 %v1562, %v473
    %v1570 = vmul.f32 %v1565, %v473
    %v1571 = vmul.f32 %v1568, %v473
    %v1572 = vsub.f32 %v1553, %v1569
    %v1573 = vsub.f32 %v1554, %v1570
    %v1574 = vsub.f32 %v1555, %v1571
    %v1575 = vmul.f32 %v1572, %v1572
    %v1576 = vmul.f32 %v1573, %v1573
    %v1577 = vmul.f32 %v1574, %v1574
    %v1578 = vsel %vm466, %v1575, 0.0
    %1579 = vadd.xlane.f32.xlu0 %v1578
    %v1580 = vpop.xlane.xlu0 %1579
    %v1581 = vsel %vm466, %v1576, 0.0
    %1582 = vadd.xlane.f32.xlu0 %v1581
    %v1583 = vpop.xlane.xlu0 %1582
    %v1584 = vsel %vm542, %v1577, 0.0
    %1585 = vadd.xlane.f32.xlu0 %v1584
    %v1586 = vpop.xlane.xlu0 %1585
    %v1587 = vmul.f32 %v1580, %v473
    %v1588 = vmul.f32 %v1583, %v473
    %v1589 = vmul.f32 %v1586, %v473
    %v1590 = vadd.f32 %v1587, 1e-05
    %v1591 = vadd.f32 %v1588, 1e-05
    %v1592 = vadd.f32 %v1589, 1e-05
    %v1593 = vrsqrt.pop %v1590
    %v1594 = vrsqrt.pop %v1591
    %v1595 = vrsqrt.pop %v1592
    %v1596 = vmul.f32 %v1572, %v1593
    %v1597 = vmul.f32 %v1573, %v1594
    %v1598 = vmul.f32 %v1574, %v1595
    %v1600 = vlaneseq
    %v1601 = vshrl.u32 %v1600, 7
    %v1602 = vsub.s32 0, %v1601
    %v1603 = vrot.slane %v1557, %v1602
    %v1605 = vmul.f32 %v1596, %v1603
    %v1606 = vmul.f32 %v1597, %v1603
    %v1607 = vmul.f32 %v1598, %v1603
    %v1609 = vlaneseq
    %v1610 = vshrl.u32 %v1609, 7
    %v1611 = vsub.s32 0, %v1610
    %v1612 = vrot.slane %v1559, %v1611
    %v1614 = vadd.f32 %v1605, %v1612
    %v1615 = vadd.f32 %v1606, %v1612
    %v1616 = vadd.f32 %v1607, %v1612
    %v1617 = vpack.c.bf16 %v1615, %v1614
    %v1618 = vpack.c.bf16 %v1616, %v1616
    %s1619 = scalar_lea.vmem %s11, 16
    %v1620 = vld [vmem:[%s1619] sm:$0xf]
    %v1621 = vld [vmem:[%s1619 + $0x4] sm:$0xf]
    %v1622 = vld [vmem:[%s1619 + $0x8] sm:$0xf]
    %v1623 = vld [vmem:[%s1619 + $0xc] sm:$0xf]
    %v1628 = vunpack.c.l.b16 %v1620
    %v1629 = vunpack.c.l.b16 %v1621
    %v1630 = vunpack.c.l.b16 %v1622
    %v1631 = vunpack.c.l.b16 %v1623
    %v1632 = vpack.c.b16 %v1629, %v1628
    %v1633 = vpack.c.b16 %v1631, %v1630
    %v1637 = vsel %vm466, %v1617, 0
    %v1640 = vsel %vm466, %v1618, 0
    %1642 = vmatprep.subr.bf16.mxu0 0
    %1643 = vmatpush1.bf16.msra.mxu0 %v1632
    %1644 = vmatprep.subr.bf16.mxu0 0
    %1645 = vmatpush1.bf16.msra.mxu0 %v1633
    %1646 = vmatprep.subr.bf16.mxu0 0
    %1647 = vmatpush1.bf16.msra.mxu0 0
    %1648 = vmatprep.subr.bf16.mxu0 0
    %1649 = vmatpush1.bf16.msra.mxu0 0
    %1650 = vmatprep.subr.bf16.mxu0 0
    %1651 = vmatpush1.bf16.msra.mxu0 0
    %1652 = vmatprep.subr.bf16.mxu0 0
    %1653 = vmatpush1.bf16.msra.mxu0 0
    %1654 = vmatprep.subr.bf16.mxu0 0
    %1655 = vmatpush1.bf16.msra.mxu0 0
    %1656 = vmatprep.subr.bf16.mxu0 0
    %1657 = vmatpush1.bf16.msra.mxu0 0
    %1658 = vmatprep.subr.bf16.mxu0 0
    %1659 = vmatpush1.bf16.msra.mxu0 0
    %1660 = vmatprep.subr.bf16.mxu0 0
    %1661 = vmatpush1.bf16.msra.mxu0 0
    %1662 = vmatprep.subr.bf16.mxu0 0
    %1663 = vmatpush1.bf16.msra.mxu0 0
    %1664 = vmatprep.subr.bf16.mxu0 0
    %1665 = vmatpush1.bf16.msra.mxu0 0
    %1666 = vmatprep.subr.bf16.mxu0 0
    %1667 = vmatpush1.bf16.msra.mxu0 0
    %1668 = vmatprep.subr.bf16.mxu0 0
    %1669 = vmatpush1.bf16.msra.mxu0 0
    %1670 = vmatprep.subr.bf16.mxu0 0
    %1671 = vmatpush1.bf16.msra.mxu0 0
    %1672 = vmatprep.subr.bf16.mxu0 0
    %1673 = vmatpush1.bf16.msra.mxu0 0
    %1674 = vmatprep.mubr.bf16.mxu0 0
    %1675 = vmatmul.mubr.bf16.gmra.mrb[0].mxu0 %v1637
    %v1676 = vpop.f32.mrb[0].mxu0
    %v1677 = vadd.f32 0.0, %v1676
    %v1678 = vpop.f32.mrb[0].mxu0
    %v1679 = vpop.f32.mrb[0].mxu0
    %v1680 = vadd.f32 0.0, %v1679
    %v1681 = vpop.f32.mrb[0].mxu0
    %1682 = vmatprep.mubr.bf16.mxu0 0
    %1683 = vmatmul.mubr.bf16.gmra.mrb[0].mxu0 %v1640
    %v1684 = vpop.f32.mrb[0].mxu0
    %v1685 = vadd.f32 0.0, %v1684
    %v1686 = vpop.f32.mrb[0].mxu0
    %v1687 = vpop.f32.mrb[0].mxu0
    %v1688 = vpop.f32.mrb[0].mxu0
    %1689 = vdwg.mxu0
    %v1690 = vpack.c.bf16 %v1680, %v1677
    %v1691 = vpack.c.bf16 %v1685, %v1685
    %1693 = vrot.lane.b32.xlu0 %v1690, 96
    %v1694 = vpop.permute.xlu0 %1693
    %v1696 = vsel %vm671, %v1690, 0
    %v1699 = vsel %vm671, %v1694, 0
    %1701 = vmatprep.subr.bf16.mxu0 0
    %1702 = vmatpush1.bf16.xpose.msra.mxu0 %v1699
    %1703 = vmatprep.subr.bf16.mxu0 0
    %1704 = vmatpush1.bf16.xpose.msra.mxu0 0
    %1705 = vmatprep.subr.bf16.mxu0 0
    %1706 = vmatpush1.bf16.xpose.msra.mxu0 0
    %1707 = vmatprep.subr.bf16.mxu0 0
    %1708 = vmatpush1.bf16.xpose.msra.mxu0 0
    %1709 = vmatprep.subr.bf16.mxu0 0
    %1710 = vmatpush1.bf16.xpose.msra.mxu0 0
    %1711 = vmatprep.subr.bf16.mxu0 0
    %1712 = vmatpush1.bf16.xpose.msra.mxu0 0
    %1713 = vmatprep.subr.bf16.mxu0 0
    %1714 = vmatpush1.bf16.xpose.msra.mxu0 0
    %1715 = vmatprep.subr.bf16.mxu0 0
    %1716 = vmatpush1.bf16.xpose.msra.mxu0 0
    %1717 = vmatprep.subr.bf16.mxu0 0
    %1718 = vmatpush1.bf16.xpose.msra.mxu0 0
    %1719 = vmatprep.subr.bf16.mxu0 0
    %1720 = vmatpush1.bf16.xpose.msra.mxu0 0
    %1721 = vmatprep.subr.bf16.mxu0 0
    %1722 = vmatpush1.bf16.xpose.msra.mxu0 0
    %1723 = vmatprep.subr.bf16.mxu0 0
    %1724 = vmatpush1.bf16.xpose.msra.mxu0 0
    %1725 = vmatprep.subr.bf16.mxu0 0
    %1726 = vmatpush1.bf16.xpose.msra.mxu0 0
    %1727 = vmatprep.subr.bf16.mxu0 0
    %1728 = vmatpush1.bf16.xpose.msra.mxu0 0
    %1729 = vmatprep.subr.bf16.mxu0 0
    %1730 = vmatpush1.bf16.xpose.msra.mxu0 0
    %1731 = vmatprep.subr.bf16.mxu0 0
    %1732 = vmatpush1.bf16.xpose.msra.mxu0 0
    %1733 = vmatprep.mubr.bf16.mxu0 0
    %1734 = vmatmul.mubr.bf16.gmra.mrb[0].mxu0 %v1696
    %v1735 = vpop.f32.mrb[0].mxu0
    %v1736 = vadd.f32 0.0, %v1735
    %v1737 = vpop.f32.mrb[0].mxu0
    %v1738 = vpop.f32.mrb[0].mxu0
    %v1739 = vadd.f32 0.0, %v1738
    %v1740 = vpop.f32.mrb[0].mxu0
    %1741 = vdwg.mxu0
    %v1742 = vsel %vm719, %v1736, -inf
    %1743 = vmax.xlane.f32.xlu0 %v1742
    %v1744 = vpop.xlane.xlu0 %1743
    %v1745 = vsel %vm723, %v1739, -inf
    %1746 = vmax.xlane.f32.xlu0 %v1745
    %v1747 = vpop.xlane.xlu0 %1746
    %v1748 = vsub.f32 %v1736, %v1744
    %v1749 = vsub.f32 %v1739, %v1747
    %v1750 = vmul.f32 %v1748, 1.442695
    %v1751 = vpow.pop %v1750
    %v1752 = vmul.f32 %v1749, 1.442695
    %v1753 = vpow.pop %v1752
    %v1754 = vsel %vm719, %v1751, 0.0
    %1755 = vadd.xlane.f32.xlu0 %v1754
    %v1756 = vpop.xlane.xlu0 %1755
    %v1757 = vsel %vm723, %v1753, 0.0
    %1758 = vadd.xlane.f32.xlu0 %v1757
    %v1759 = vpop.xlane.xlu0 %1758
    %v1760 = vrcp.pop %v1756
    %v1761 = vrcp.pop %v1759
    %v1762 = vmul.f32 %v1751, %v1760
    %v1763 = vmul.f32 %v1753, %v1761
    %v1764 = vpack.c.bf16 %v1763, %v1762
    %1765 = vrot.lane.b32.xlu0 %v1690, 64
    %v1766 = vpop.permute.xlu0 %1765
    %v1768 = vsel %vm719, %v1764, 0
    %v1771 = vand.u32 %v1766, %v752
    %1773 = vmatprep.subr.bf16.mxu0 0
    %1774 = vmatpush1.bf16.msra.mxu0 %v1771
    %1775 = vmatprep.subr.bf16.mxu0 0
    %1776 = vmatpush1.bf16.msra.mxu0 0
    %1777 = vmatprep.subr.bf16.mxu0 0
    %1778 = vmatpush1.bf16.msra.mxu0 0
    %1779 = vmatprep.subr.bf16.mxu0 0
    %1780 = vmatpush1.bf16.msra.mxu0 0
    %1781 = vmatprep.subr.bf16.mxu0 0
    %1782 = vmatpush1.bf16.msra.mxu0 0
    %1783 = vmatprep.subr.bf16.mxu0 0
    %1784 = vmatpush1.bf16.msra.mxu0 0
    %1785 = vmatprep.subr.bf16.mxu0 0
    %1786 = vmatpush1.bf16.msra.mxu0 0
    %1787 = vmatprep.subr.bf16.mxu0 0
    %1788 = vmatpush1.bf16.msra.mxu0 0
    %1789 = vmatprep.subr.bf16.mxu0 0
    %1790 = vmatpush1.bf16.msra.mxu0 0
    %1791 = vmatprep.subr.bf16.mxu0 0
    %1792 = vmatpush1.bf16.msra.mxu0 0
    %1793 = vmatprep.subr.bf16.mxu0 0
    %1794 = vmatpush1.bf16.msra.mxu0 0
    %1795 = vmatprep.subr.bf16.mxu0 0
    %1796 = vmatpush1.bf16.msra.mxu0 0
    %1797 = vmatprep.subr.bf16.mxu0 0
    %1798 = vmatpush1.bf16.msra.mxu0 0
    %1799 = vmatprep.subr.bf16.mxu0 0
    %1800 = vmatpush1.bf16.msra.mxu0 0
    %1801 = vmatprep.subr.bf16.mxu0 0
    %1802 = vmatpush1.bf16.msra.mxu0 0
    %1803 = vmatprep.subr.bf16.mxu0 0
    %1804 = vmatpush1.bf16.msra.mxu0 0
    %1805 = vmatprep.mubr.bf16.mxu0 0
    %1806 = vmatmul.mubr.bf16.gmra.mrb[0].mxu0 %v1768
    %v1807 = vpop.f32.mrb[0].mxu0
    %v1808 = vadd.f32 0.0, %v1807
    %v1809 = vpop.f32.mrb[0].mxu0
    %v1810 = vpop.f32.mrb[0].mxu0
    %v1811 = vadd.f32 0.0, %v1810
    %v1812 = vpop.f32.mrb[0].mxu0
    %1813 = vdwg.mxu0
    %v1814 = vshrl.u32 %v1690, 16
    %v1816 = vrot.slane %v1814, 4
    %v1817 = vshll.u32 %v1690, 16
    %v1819 = vrot.slane %v1817, 5
    %v1820 = vor.u32 %v1816, %v1819
    %v1822 = vshrl.u32 %v1691, 16
    %v1824 = vrot.slane %v1822, 4
    %v1825 = vshll.u32 %v1691, 16
    %v1827 = vrot.slane %v1825, 5
    %v1828 = vor.u32 %v1824, %v1827
    %v1829 = vsel %vm797, %v1820, %v1828
    %1830 = vrot.lane.b32.xlu0 %v1829, 96
    %v1831 = vpop.permute.xlu0 %1830
    %v1833 = vsel %vm671, %v1829, 0
    %v1836 = vsel %vm671, %v1831, 0
    %1838 = vmatprep.subr.bf16.mxu0 0
    %1839 = vmatpush1.bf16.xpose.msra.mxu0 %v1836
    %1840 = vmatprep.subr.bf16.mxu0 0
    %1841 = vmatpush1.bf16.xpose.msra.mxu0 0
    %1842 = vmatprep.subr.bf16.mxu0 0
    %1843 = vmatpush1.bf16.xpose.msra.mxu0 0
    %1844 = vmatprep.subr.bf16.mxu0 0
    %1845 = vmatpush1.bf16.xpose.msra.mxu0 0
    %1846 = vmatprep.subr.bf16.mxu0 0
    %1847 = vmatpush1.bf16.xpose.msra.mxu0 0
    %1848 = vmatprep.subr.bf16.mxu0 0
    %1849 = vmatpush1.bf16.xpose.msra.mxu0 0
    %1850 = vmatprep.subr.bf16.mxu0 0
    %1851 = vmatpush1.bf16.xpose.msra.mxu0 0
    %1852 = vmatprep.subr.bf16.mxu0 0
    %1853 = vmatpush1.bf16.xpose.msra.mxu0 0
    %1854 = vmatprep.subr.bf16.mxu0 0
    %1855 = vmatpush1.bf16.xpose.msra.mxu0 0
    %1856 = vmatprep.subr.bf16.mxu0 0
    %1857 = vmatpush1.bf16.xpose.msra.mxu0 0
    %1858 = vmatprep.subr.bf16.mxu0 0
    %1859 = vmatpush1.bf16.xpose.msra.mxu0 0
    %1860 = vmatprep.subr.bf16.mxu0 0
    %1861 = vmatpush1.bf16.xpose.msra.mxu0 0
    %1862 = vmatprep.subr.bf16.mxu0 0
    %1863 = vmatpush1.bf16.xpose.msra.mxu0 0
    %1864 = vmatprep.subr.bf16.mxu0 0
    %1865 = vmatpush1.bf16.xpose.msra.mxu0 0
    %1866 = vmatprep.subr.bf16.mxu0 0
    %1867 = vmatpush1.bf16.xpose.msra.mxu0 0
    %1868 = vmatprep.subr.bf16.mxu0 0
    %1869 = vmatpush1.bf16.xpose.msra.mxu0 0
    %1870 = vmatprep.mubr.bf16.mxu0 0
    %1871 = vmatmul.mubr.bf16.gmra.mrb[0].mxu0 %v1833
    %v1872 = vpop.f32.mrb[0].mxu0
    %v1873 = vadd.f32 0.0, %v1872
    %v1874 = vpop.f32.mrb[0].mxu0
    %v1875 = vpop.f32.mrb[0].mxu0
    %v1876 = vadd.f32 0.0, %v1875
    %v1877 = vpop.f32.mrb[0].mxu0
    %1878 = vdwg.mxu0
    %v1879 = vsel %vm719, %v1873, -inf
    %1880 = vmax.xlane.f32.xlu0 %v1879
    %v1881 = vpop.xlane.xlu0 %1880
    %v1882 = vsel %vm723, %v1876, -inf
    %1883 = vmax.xlane.f32.xlu0 %v1882
    %v1884 = vpop.xlane.xlu0 %1883
    %v1885 = vsub.f32 %v1873, %v1881
    %v1886 = vsub.f32 %v1876, %v1884
    %v1887 = vmul.f32 %v1885, 1.442695
    %v1888 = vpow.pop %v1887
    %v1889 = vmul.f32 %v1886, 1.442695
    %v1890 = vpow.pop %v1889
    %v1891 = vsel %vm719, %v1888, 0.0
    %1892 = vadd.xlane.f32.xlu0 %v1891
    %v1893 = vpop.xlane.xlu0 %1892
    %v1894 = vsel %vm723, %v1890, 0.0
    %1895 = vadd.xlane.f32.xlu0 %v1894
    %v1896 = vpop.xlane.xlu0 %1895
    %v1897 = vrcp.pop %v1893
    %v1898 = vrcp.pop %v1896
    %v1899 = vmul.f32 %v1888, %v1897
    %v1900 = vmul.f32 %v1890, %v1898
    %v1901 = vpack.c.bf16 %v1900, %v1899
    %1902 = vrot.lane.b32.xlu0 %v1829, 64
    %v1903 = vpop.permute.xlu0 %1902
    %v1905 = vsel %vm719, %v1901, 0
    %v1908 = vand.u32 %v1903, %v752
    %1910 = vmatprep.subr.bf16.mxu0 0
    %1911 = vmatpush1.bf16.msra.mxu0 %v1908
    %1912 = vmatprep.subr.bf16.mxu0 0
    %1913 = vmatpush1.bf16.msra.mxu0 0
    %1914 = vmatprep.subr.bf16.mxu0 0
    %1915 = vmatpush1.bf16.msra.mxu0 0
    %1916 = vmatprep.subr.bf16.mxu0 0
    %1917 = vmatpush1.bf16.msra.mxu0 0
    %1918 = vmatprep.subr.bf16.mxu0 0
    %1919 = vmatpush1.bf16.msra.mxu0 0
    %1920 = vmatprep.subr.bf16.mxu0 0
    %1921 = vmatpush1.bf16.msra.mxu0 0
    %1922 = vmatprep.subr.bf16.mxu0 0
    %1923 = vmatpush1.bf16.msra.mxu0 0
    %1924 = vmatprep.subr.bf16.mxu0 0
    %1925 = vmatpush1.bf16.msra.mxu0 0
    %1926 = vmatprep.subr.bf16.mxu0 0
    %1927 = vmatpush1.bf16.msra.mxu0 0
    %1928 = vmatprep.subr.bf16.mxu0 0
    %1929 = vmatpush1.bf16.msra.mxu0 0
    %1930 = vmatprep.subr.bf16.mxu0 0
    %1931 = vmatpush1.bf16.msra.mxu0 0
    %1932 = vmatprep.subr.bf16.mxu0 0
    %1933 = vmatpush1.bf16.msra.mxu0 0
    %1934 = vmatprep.subr.bf16.mxu0 0
    %1935 = vmatpush1.bf16.msra.mxu0 0
    %1936 = vmatprep.subr.bf16.mxu0 0
    %1937 = vmatpush1.bf16.msra.mxu0 0
    %1938 = vmatprep.subr.bf16.mxu0 0
    %1939 = vmatpush1.bf16.msra.mxu0 0
    %1940 = vmatprep.subr.bf16.mxu0 0
    %1941 = vmatpush1.bf16.msra.mxu0 0
    %1942 = vmatprep.mubr.bf16.mxu0 0
    %1943 = vmatmul.mubr.bf16.gmra.mrb[0].mxu0 %v1905
    %v1944 = vpop.f32.mrb[0].mxu0
    %v1945 = vadd.f32 0.0, %v1944
    %v1946 = vpop.f32.mrb[0].mxu0
    %v1947 = vpop.f32.mrb[0].mxu0
    %v1948 = vadd.f32 0.0, %v1947
    %v1949 = vpop.f32.mrb[0].mxu0
    %1950 = vdwg.mxu0
    %v1953 = vrot.slane %v1945, 7
    %v1954 = vrot.slane %v1948, 7
    %v1955 = vsel %vm516, %v1953, %v1954
    %v1958 = vsel %vm516, %v1811, %v1953
    %1959 = vrot.lane.b32.xlu0 %v1690, 112
    %v1960 = vpop.permute.xlu0 %1959
    %1961 = vrot.lane.b32.xlu0 %v1690, 80
    %v1962 = vpop.permute.xlu0 %1961
    %v1964 = vsel %vm671, %v1960, 0
    %v1967 = vsel %vm671, %v1962, 0
    %1969 = vmatprep.subr.bf16.mxu0 0
    %1970 = vmatpush1.bf16.xpose.msra.mxu0 %v1967
    %1971 = vmatprep.subr.bf16.mxu0 0
    %1972 = vmatpush1.bf16.xpose.msra.mxu0 0
    %1973 = vmatprep.subr.bf16.mxu0 0
    %1974 = vmatpush1.bf16.xpose.msra.mxu0 0
    %1975 = vmatprep.subr.bf16.mxu0 0
    %1976 = vmatpush1.bf16.xpose.msra.mxu0 0
    %1977 = vmatprep.subr.bf16.mxu0 0
    %1978 = vmatpush1.bf16.xpose.msra.mxu0 0
    %1979 = vmatprep.subr.bf16.mxu0 0
    %1980 = vmatpush1.bf16.xpose.msra.mxu0 0
    %1981 = vmatprep.subr.bf16.mxu0 0
    %1982 = vmatpush1.bf16.xpose.msra.mxu0 0
    %1983 = vmatprep.subr.bf16.mxu0 0
    %1984 = vmatpush1.bf16.xpose.msra.mxu0 0
    %1985 = vmatprep.subr.bf16.mxu0 0
    %1986 = vmatpush1.bf16.xpose.msra.mxu0 0
    %1987 = vmatprep.subr.bf16.mxu0 0
    %1988 = vmatpush1.bf16.xpose.msra.mxu0 0
    %1989 = vmatprep.subr.bf16.mxu0 0
    %1990 = vmatpush1.bf16.xpose.msra.mxu0 0
    %1991 = vmatprep.subr.bf16.mxu0 0
    %1992 = vmatpush1.bf16.xpose.msra.mxu0 0
    %1993 = vmatprep.subr.bf16.mxu0 0
    %1994 = vmatpush1.bf16.xpose.msra.mxu0 0
    %1995 = vmatprep.subr.bf16.mxu0 0
    %1996 = vmatpush1.bf16.xpose.msra.mxu0 0
    %1997 = vmatprep.subr.bf16.mxu0 0
    %1998 = vmatpush1.bf16.xpose.msra.mxu0 0
    %1999 = vmatprep.subr.bf16.mxu0 0
    %2000 = vmatpush1.bf16.xpose.msra.mxu0 0
    %2001 = vmatprep.mubr.bf16.mxu0 0
    %2002 = vmatmul.mubr.bf16.gmra.mrb[0].mxu0 %v1964
    %v2003 = vpop.f32.mrb[0].mxu0
    %v2004 = vadd.f32 0.0, %v2003
    %v2005 = vpop.f32.mrb[0].mxu0
    %v2006 = vpop.f32.mrb[0].mxu0
    %v2007 = vadd.f32 0.0, %v2006
    %v2008 = vpop.f32.mrb[0].mxu0
    %2009 = vdwg.mxu0
    %v2010 = vsel %vm719, %v2004, -inf
    %2011 = vmax.xlane.f32.xlu0 %v2010
    %v2012 = vpop.xlane.xlu0 %2011
    %v2013 = vsel %vm723, %v2007, -inf
    %2014 = vmax.xlane.f32.xlu0 %v2013
    %v2015 = vpop.xlane.xlu0 %2014
    %v2016 = vsub.f32 %v2004, %v2012
    %v2017 = vsub.f32 %v2007, %v2015
    %v2018 = vmul.f32 %v2016, 1.442695
    %v2019 = vpow.pop %v2018
    %v2020 = vmul.f32 %v2017, 1.442695
    %v2021 = vpow.pop %v2020
    %v2022 = vsel %vm719, %v2019, 0.0
    %2023 = vadd.xlane.f32.xlu0 %v2022
    %v2024 = vpop.xlane.xlu0 %2023
    %v2025 = vsel %vm723, %v2021, 0.0
    %2026 = vadd.xlane.f32.xlu0 %v2025
    %v2027 = vpop.xlane.xlu0 %2026
    %v2028 = vrcp.pop %v2024
    %v2029 = vrcp.pop %v2027
    %v2030 = vmul.f32 %v2019, %v2028
    %v2031 = vmul.f32 %v2021, %v2029
    %v2032 = vpack.c.bf16 %v2031, %v2030
    %2033 = vrot.lane.b32.xlu0 %v1690, 48
    %v2034 = vpop.permute.xlu0 %2033
    %v2036 = vsel %vm719, %v2032, 0
    %v2039 = vand.u32 %v2034, %v752
    %2041 = vmatprep.subr.bf16.mxu0 0
    %2042 = vmatpush1.bf16.msra.mxu0 %v2039
    %2043 = vmatprep.subr.bf16.mxu0 0
    %2044 = vmatpush1.bf16.msra.mxu0 0
    %2045 = vmatprep.subr.bf16.mxu0 0
    %2046 = vmatpush1.bf16.msra.mxu0 0
    %2047 = vmatprep.subr.bf16.mxu0 0
    %2048 = vmatpush1.bf16.msra.mxu0 0
    %2049 = vmatprep.subr.bf16.mxu0 0
    %2050 = vmatpush1.bf16.msra.mxu0 0
    %2051 = vmatprep.subr.bf16.mxu0 0
    %2052 = vmatpush1.bf16.msra.mxu0 0
    %2053 = vmatprep.subr.bf16.mxu0 0
    %2054 = vmatpush1.bf16.msra.mxu0 0
    %2055 = vmatprep.subr.bf16.mxu0 0
    %2056 = vmatpush1.bf16.msra.mxu0 0
    %2057 = vmatprep.subr.bf16.mxu0 0
    %2058 = vmatpush1.bf16.msra.mxu0 0
    %2059 = vmatprep.subr.bf16.mxu0 0
    %2060 = vmatpush1.bf16.msra.mxu0 0
    %2061 = vmatprep.subr.bf16.mxu0 0
    %2062 = vmatpush1.bf16.msra.mxu0 0
    %2063 = vmatprep.subr.bf16.mxu0 0
    %2064 = vmatpush1.bf16.msra.mxu0 0
    %2065 = vmatprep.subr.bf16.mxu0 0
    %2066 = vmatpush1.bf16.msra.mxu0 0
    %2067 = vmatprep.subr.bf16.mxu0 0
    %2068 = vmatpush1.bf16.msra.mxu0 0
    %2069 = vmatprep.subr.bf16.mxu0 0
    %2070 = vmatpush1.bf16.msra.mxu0 0
    %2071 = vmatprep.subr.bf16.mxu0 0
    %2072 = vmatpush1.bf16.msra.mxu0 0
    %2073 = vmatprep.mubr.bf16.mxu0 0
    %2074 = vmatmul.mubr.bf16.gmra.mrb[0].mxu0 %v2036
    %v2075 = vpop.f32.mrb[0].mxu0
    %v2076 = vadd.f32 0.0, %v2075
    %v2077 = vpop.f32.mrb[0].mxu0
    %v2078 = vpop.f32.mrb[0].mxu0
    %v2079 = vadd.f32 0.0, %v2078
    %v2080 = vpop.f32.mrb[0].mxu0
    %2081 = vdwg.mxu0
    %2082 = vrot.lane.b32.xlu0 %v1829, 112
    %v2083 = vpop.permute.xlu0 %2082
    %2084 = vrot.lane.b32.xlu0 %v1829, 80
    %v2085 = vpop.permute.xlu0 %2084
    %v2087 = vsel %vm671, %v2083, 0
    %v2090 = vsel %vm671, %v2085, 0
    %2092 = vmatprep.subr.bf16.mxu0 0
    %2093 = vmatpush1.bf16.xpose.msra.mxu0 %v2090
    %2094 = vmatprep.subr.bf16.mxu0 0
    %2095 = vmatpush1.bf16.xpose.msra.mxu0 0
    %2096 = vmatprep.subr.bf16.mxu0 0
    %2097 = vmatpush1.bf16.xpose.msra.mxu0 0
    %2098 = vmatprep.subr.bf16.mxu0 0
    %2099 = vmatpush1.bf16.xpose.msra.mxu0 0
    %2100 = vmatprep.subr.bf16.mxu0 0
    %2101 = vmatpush1.bf16.xpose.msra.mxu0 0
    %2102 = vmatprep.subr.bf16.mxu0 0
    %2103 = vmatpush1.bf16.xpose.msra.mxu0 0
    %2104 = vmatprep.subr.bf16.mxu0 0
    %2105 = vmatpush1.bf16.xpose.msra.mxu0 0
    %2106 = vmatprep.subr.bf16.mxu0 0
    %2107 = vmatpush1.bf16.xpose.msra.mxu0 0
    %2108 = vmatprep.subr.bf16.mxu0 0
    %2109 = vmatpush1.bf16.xpose.msra.mxu0 0
    %2110 = vmatprep.subr.bf16.mxu0 0
    %2111 = vmatpush1.bf16.xpose.msra.mxu0 0
    %2112 = vmatprep.subr.bf16.mxu0 0
    %2113 = vmatpush1.bf16.xpose.msra.mxu0 0
    %2114 = vmatprep.subr.bf16.mxu0 0
    %2115 = vmatpush1.bf16.xpose.msra.mxu0 0
    %2116 = vmatprep.subr.bf16.mxu0 0
    %2117 = vmatpush1.bf16.xpose.msra.mxu0 0
    %2118 = vmatprep.subr.bf16.mxu0 0
    %2119 = vmatpush1.bf16.xpose.msra.mxu0 0
    %2120 = vmatprep.subr.bf16.mxu0 0
    %2121 = vmatpush1.bf16.xpose.msra.mxu0 0
    %2122 = vmatprep.subr.bf16.mxu0 0
    %2123 = vmatpush1.bf16.xpose.msra.mxu0 0
    %2124 = vmatprep.mubr.bf16.mxu0 0
    %2125 = vmatmul.mubr.bf16.gmra.mrb[0].mxu0 %v2087
    %v2126 = vpop.f32.mrb[0].mxu0
    %v2127 = vadd.f32 0.0, %v2126
    %v2128 = vpop.f32.mrb[0].mxu0
    %v2129 = vpop.f32.mrb[0].mxu0
    %v2130 = vadd.f32 0.0, %v2129
    %v2131 = vpop.f32.mrb[0].mxu0
    %2132 = vdwg.mxu0
    %v2133 = vsel %vm719, %v2127, -inf
    %2134 = vmax.xlane.f32.xlu0 %v2133
    %v2135 = vpop.xlane.xlu0 %2134
    %v2136 = vsel %vm723, %v2130, -inf
    %2137 = vmax.xlane.f32.xlu0 %v2136
    %v2138 = vpop.xlane.xlu0 %2137
    %v2139 = vsub.f32 %v2127, %v2135
    %v2140 = vsub.f32 %v2130, %v2138
    %v2141 = vmul.f32 %v2139, 1.442695
    %v2142 = vpow.pop %v2141
    %v2143 = vmul.f32 %v2140, 1.442695
    %v2144 = vpow.pop %v2143
    %v2145 = vsel %vm719, %v2142, 0.0
    %2146 = vadd.xlane.f32.xlu0 %v2145
    %v2147 = vpop.xlane.xlu0 %2146
    %v2148 = vsel %vm723, %v2144, 0.0
    %2149 = vadd.xlane.f32.xlu0 %v2148
    %v2150 = vpop.xlane.xlu0 %2149
    %v2151 = vrcp.pop %v2147
    %v2152 = vrcp.pop %v2150
    %v2153 = vmul.f32 %v2142, %v2151
    %v2154 = vmul.f32 %v2144, %v2152
    %v2155 = vpack.c.bf16 %v2154, %v2153
    %2156 = vrot.lane.b32.xlu0 %v1829, 48
    %v2157 = vpop.permute.xlu0 %2156
    %v2159 = vsel %vm719, %v2155, 0
    %v2162 = vand.u32 %v2157, %v752
    %2164 = vmatprep.subr.bf16.mxu0 0
    %2165 = vmatpush1.bf16.msra.mxu0 %v2162
    %2166 = vmatprep.subr.bf16.mxu0 0
    %2167 = vmatpush1.bf16.msra.mxu0 0
    %2168 = vmatprep.subr.bf16.mxu0 0
    %2169 = vmatpush1.bf16.msra.mxu0 0
    %2170 = vmatprep.subr.bf16.mxu0 0
    %2171 = vmatpush1.bf16.msra.mxu0 0
    %2172 = vmatprep.subr.bf16.mxu0 0
    %2173 = vmatpush1.bf16.msra.mxu0 0
    %2174 = vmatprep.subr.bf16.mxu0 0
    %2175 = vmatpush1.bf16.msra.mxu0 0
    %2176 = vmatprep.subr.bf16.mxu0 0
    %2177 = vmatpush1.bf16.msra.mxu0 0
    %2178 = vmatprep.subr.bf16.mxu0 0
    %2179 = vmatpush1.bf16.msra.mxu0 0
    %2180 = vmatprep.subr.bf16.mxu0 0
    %2181 = vmatpush1.bf16.msra.mxu0 0
    %2182 = vmatprep.subr.bf16.mxu0 0
    %2183 = vmatpush1.bf16.msra.mxu0 0
    %2184 = vmatprep.subr.bf16.mxu0 0
    %2185 = vmatpush1.bf16.msra.mxu0 0
    %2186 = vmatprep.subr.bf16.mxu0 0
    %2187 = vmatpush1.bf16.msra.mxu0 0
    %2188 = vmatprep.subr.bf16.mxu0 0
    %2189 = vmatpush1.bf16.msra.mxu0 0
    %2190 = vmatprep.subr.bf16.mxu0 0
    %2191 = vmatpush1.bf16.msra.mxu0 0
    %2192 = vmatprep.subr.bf16.mxu0 0
    %2193 = vmatpush1.bf16.msra.mxu0 0
    %2194 = vmatprep.subr.bf16.mxu0 0
    %2195 = vmatpush1.bf16.msra.mxu0 0
    %2196 = vmatprep.mubr.bf16.mxu0 0
    %2197 = vmatmul.mubr.bf16.gmra.mrb[0].mxu0 %v2159
    %v2198 = vpop.f32.mrb[0].mxu0
    %v2199 = vadd.f32 0.0, %v2198
    %v2200 = vpop.f32.mrb[0].mxu0
    %v2201 = vpop.f32.mrb[0].mxu0
    %v2202 = vadd.f32 0.0, %v2201
    %v2203 = vpop.f32.mrb[0].mxu0
    %2204 = vdwg.mxu0
    %v2207 = vrot.slane %v2199, 7
    %v2208 = vrot.slane %v2202, 7
    %v2209 = vsel %vm516, %v2207, %v2208
    %v2211 = vsel %vm516, %v2079, %v2207
    %2214 = vrot.lane.b32.xlu0 %v2076, 16
    %v2215 = vpop.permute.xlu0 %2214
    %2216 = vrot.lane.b32.xlu0 %v2211, 16
    %v2217 = vpop.permute.xlu0 %2216
    %2218 = vrot.lane.b32.xlu0 %v2209, 16
    %v2219 = vpop.permute.xlu0 %2218
    %v2223 = vsel %vm671, %v1808, %v2215
    %v2224 = vsel %vm671, %v1958, %v2217
    %v2225 = vsel %vm671, %v1955, %v2219
    %v2226 = vpack.c.bf16 %v2224, %v2223
    %v2227 = vpack.c.bf16 %v2225, %v2225
    %s2228 = scalar_lea.vmem %s12, 16
    %v2229 = vld [vmem:[%s2228] sm:$0xf]
    %v2230 = vld [vmem:[%s2228 + $0x4] sm:$0xf]
    %v2231 = vld [vmem:[%s2228 + $0x8] sm:$0xf]
    %v2232 = vld [vmem:[%s2228 + $0xc] sm:$0xf]
    %s2233 = scalar_lea.vmem %s13, 1
    %v2234 = vld [vmem:[%s2233] sm:$0x1]
    %v2236 = vlaneseq
    %v2237 = vshrl.u32 %v2236, 7
    %v2238 = vsub.s32 0, %v2237
    %v2239 = vrot.slane %v2234, %v2238
    %v2245 = vunpack.c.l.b16 %v2229
    %v2246 = vunpack.c.l.b16 %v2230
    %v2247 = vunpack.c.l.b16 %v2231
    %v2248 = vunpack.c.l.b16 %v2232
    %v2249 = vpack.c.b16 %v2246, %v2245
    %v2250 = vpack.c.b16 %v2248, %v2247
    %v2254 = vsel %vm466, %v2226, 0
    %v2257 = vsel %vm466, %v2227, 0
    %2259 = vmatprep.subr.bf16.mxu0 0
    %2260 = vmatpush1.bf16.msra.mxu0 %v2249
    %2261 = vmatprep.subr.bf16.mxu0 0
    %2262 = vmatpush1.bf16.msra.mxu0 %v2250
    %2263 = vmatprep.subr.bf16.mxu0 0
    %2264 = vmatpush1.bf16.msra.mxu0 0
    %2265 = vmatprep.subr.bf16.mxu0 0
    %2266 = vmatpush1.bf16.msra.mxu0 0
    %2267 = vmatprep.subr.bf16.mxu0 0
    %2268 = vmatpush1.bf16.msra.mxu0 0
    %2269 = vmatprep.subr.bf16.mxu0 0
    %2270 = vmatpush1.bf16.msra.mxu0 0
    %2271 = vmatprep.subr.bf16.mxu0 0
    %2272 = vmatpush1.bf16.msra.mxu0 0
    %2273 = vmatprep.subr.bf16.mxu0 0
    %2274 = vmatpush1.bf16.msra.mxu0 0
    %2275 = vmatprep.subr.bf16.mxu0 0
    %2276 = vmatpush1.bf16.msra.mxu0 0
    %2277 = vmatprep.subr.bf16.mxu0 0
    %2278 = vmatpush1.bf16.msra.mxu0 0
    %2279 = vmatprep.subr.bf16.mxu0 0
    %2280 = vmatpush1.bf16.msra.mxu0 0
    %2281 = vmatprep.subr.bf16.mxu0 0
    %2282 = vmatpush1.bf16.msra.mxu0 0
    %2283 = vmatprep.subr.bf16.mxu0 0
    %2284 = vmatpush1.bf16.msra.mxu0 0
    %2285 = vmatprep.subr.bf16.mxu0 0
    %2286 = vmatpush1.bf16.msra.mxu0 0
    %2287 = vmatprep.subr.bf16.mxu0 0
    %2288 = vmatpush1.bf16.msra.mxu0 0
    %2289 = vmatprep.subr.bf16.mxu0 0
    %2290 = vmatpush1.bf16.msra.mxu0 0
    %2291 = vmatprep.mubr.bf16.mxu0 0
    %2292 = vmatmul.mubr.bf16.gmra.mrb[0].mxu0 %v2254
    %v2293 = vpop.f32.mrb[0].mxu0
    %v2294 = vadd.f32 %v2239, %v2293
    %v2295 = vpop.f32.mrb[0].mxu0
    %v2296 = vpop.f32.mrb[0].mxu0
    %v2297 = vadd.f32 %v2239, %v2296
    %v2298 = vpop.f32.mrb[0].mxu0
    %2299 = vmatprep.mubr.bf16.mxu0 0
    %2300 = vmatmul.mubr.bf16.gmra.mrb[0].mxu0 %v2257
    %v2301 = vpop.f32.mrb[0].mxu0
    %v2302 = vadd.f32 %v2239, %v2301
    %v2303 = vpop.f32.mrb[0].mxu0
    %v2304 = vpop.f32.mrb[0].mxu0
    %v2305 = vpop.f32.mrb[0].mxu0
    %2306 = vdwg.mxu0
    %v2307 = vadd.f32 %v1553, %v2294
    %v2308 = vadd.f32 %v1554, %v2297
    %v2309 = vadd.f32 %v1555, %v2302
    %s2310 = scalar_lea.vmem %s14, 1
    %v2311 = vld [vmem:[%s2310] sm:$0x1]
    %s2312 = scalar_lea.vmem %s15, 1
    %v2313 = vld [vmem:[%s2312] sm:$0x1]
    %v2314 = vsel %vm466, %v2307, 0.0
    %2315 = vadd.xlane.f32.xlu0 %v2314
    %v2316 = vpop.xlane.xlu0 %2315
    %v2317 = vsel %vm466, %v2308, 0.0
    %2318 = vadd.xlane.f32.xlu0 %v2317
    %v2319 = vpop.xlane.xlu0 %2318
    %v2320 = vsel %vm542, %v2309, 0.0
    %2321 = vadd.xlane.f32.xlu0 %v2320
    %v2322 = vpop.xlane.xlu0 %2321
    %v2323 = vmul.f32 %v2316, %v473
    %v2324 = vmul.f32 %v2319, %v473
    %v2325 = vmul.f32 %v2322, %v473
    %v2326 = vsub.f32 %v2307, %v2323
    %v2327 = vsub.f32 %v2308, %v2324
    %v2328 = vsub.f32 %v2309, %v2325
    %v2329 = vmul.f32 %v2326, %v2326
    %v2330 = vmul.f32 %v2327, %v2327
    %v2331 = vmul.f32 %v2328, %v2328
    %v2332 = vsel %vm466, %v2329, 0.0
    %2333 = vadd.xlane.f32.xlu0 %v2332
    %v2334 = vpop.xlane.xlu0 %2333
    %v2335 = vsel %vm466, %v2330, 0.0
    %2336 = vadd.xlane.f32.xlu0 %v2335
    %v2337 = vpop.xlane.xlu0 %2336
    %v2338 = vsel %vm542, %v2331, 0.0
    %2339 = vadd.xlane.f32.xlu0 %v2338
    %v2340 = vpop.xlane.xlu0 %2339
    %v2341 = vmul.f32 %v2334, %v473
    %v2342 = vmul.f32 %v2337, %v473
    %v2343 = vmul.f32 %v2340, %v473
    %v2344 = vadd.f32 %v2341, 1e-05
    %v2345 = vadd.f32 %v2342, 1e-05
    %v2346 = vadd.f32 %v2343, 1e-05
    %v2347 = vrsqrt.pop %v2344
    %v2348 = vrsqrt.pop %v2345
    %v2349 = vrsqrt.pop %v2346
    %v2350 = vmul.f32 %v2326, %v2347
    %v2351 = vmul.f32 %v2327, %v2348
    %v2352 = vmul.f32 %v2328, %v2349
    %v2354 = vlaneseq
    %v2355 = vshrl.u32 %v2354, 7
    %v2356 = vsub.s32 0, %v2355
    %v2357 = vrot.slane %v2311, %v2356
    %v2359 = vmul.f32 %v2350, %v2357
    %v2360 = vmul.f32 %v2351, %v2357
    %v2361 = vmul.f32 %v2352, %v2357
    %v2363 = vlaneseq
    %v2364 = vshrl.u32 %v2363, 7
    %v2365 = vsub.s32 0, %v2364
    %v2366 = vrot.slane %v2313, %v2365
    %v2368 = vadd.f32 %v2359, %v2366
    %v2369 = vadd.f32 %v2360, %v2366
    %v2370 = vadd.f32 %v2361, %v2366
    %v2371 = vpack.c.bf16 %v2369, %v2368
    %v2372 = vpack.c.bf16 %v2370, %v2370
    %s2373 = scalar_lea.vmem %s16, 16
    %v2374 = vld [vmem:[%s2373] sm:$0xf]
    %v2375 = vld [vmem:[%s2373 + $0x4] sm:$0xf]
    %v2376 = vld [vmem:[%s2373 + $0x8] sm:$0xf]
    %v2377 = vld [vmem:[%s2373 + $0xc] sm:$0xf]
    %s2378 = scalar_lea.vmem %s17, 1
    %v2379 = vld [vmem:[%s2378] sm:$0x1]
    %v2381 = vlaneseq
    %v2382 = vshrl.u32 %v2381, 7
    %v2383 = vsub.s32 0, %v2382
    %v2384 = vrot.slane %v2379, %v2383
    %v2390 = vunpack.c.l.b16 %v2374
    %v2391 = vunpack.c.l.b16 %v2375
    %v2392 = vunpack.c.l.b16 %v2376
    %v2393 = vunpack.c.l.b16 %v2377
    %v2394 = vpack.c.b16 %v2391, %v2390
    %v2395 = vpack.c.b16 %v2393, %v2392
    %v2399 = vsel %vm466, %v2371, 0
    %v2402 = vsel %vm466, %v2372, 0
    %2404 = vmatprep.subr.bf16.mxu0 0
    %2405 = vmatpush1.bf16.msra.mxu0 %v2394
    %2406 = vmatprep.subr.bf16.mxu0 0
    %2407 = vmatpush1.bf16.msra.mxu0 %v2395
    %2408 = vmatprep.subr.bf16.mxu0 0
    %2409 = vmatpush1.bf16.msra.mxu0 0
    %2410 = vmatprep.subr.bf16.mxu0 0
    %2411 = vmatpush1.bf16.msra.mxu0 0
    %2412 = vmatprep.subr.bf16.mxu0 0
    %2413 = vmatpush1.bf16.msra.mxu0 0
    %2414 = vmatprep.subr.bf16.mxu0 0
    %2415 = vmatpush1.bf16.msra.mxu0 0
    %2416 = vmatprep.subr.bf16.mxu0 0
    %2417 = vmatpush1.bf16.msra.mxu0 0
    %2418 = vmatprep.subr.bf16.mxu0 0
    %2419 = vmatpush1.bf16.msra.mxu0 0
    %2420 = vmatprep.subr.bf16.mxu0 0
    %2421 = vmatpush1.bf16.msra.mxu0 0
    %2422 = vmatprep.subr.bf16.mxu0 0
    %2423 = vmatpush1.bf16.msra.mxu0 0
    %2424 = vmatprep.subr.bf16.mxu0 0
    %2425 = vmatpush1.bf16.msra.mxu0 0
    %2426 = vmatprep.subr.bf16.mxu0 0
    %2427 = vmatpush1.bf16.msra.mxu0 0
    %2428 = vmatprep.subr.bf16.mxu0 0
    %2429 = vmatpush1.bf16.msra.mxu0 0
    %2430 = vmatprep.subr.bf16.mxu0 0
    %2431 = vmatpush1.bf16.msra.mxu0 0
    %2432 = vmatprep.subr.bf16.mxu0 0
    %2433 = vmatpush1.bf16.msra.mxu0 0
    %2434 = vmatprep.subr.bf16.mxu0 0
    %2435 = vmatpush1.bf16.msra.mxu0 0
    %2436 = vmatprep.mubr.bf16.mxu0 0
    %2437 = vmatmul.mubr.bf16.gmra.mrb[0].mxu0 %v2399
    %v2438 = vpop.f32.mrb[0].mxu0
    %v2439 = vadd.f32 %v2384, %v2438
    %v2440 = vpop.f32.mrb[0].mxu0
    %v2441 = vpop.f32.mrb[0].mxu0
    %v2442 = vadd.f32 %v2384, %v2441
    %v2443 = vpop.f32.mrb[0].mxu0
    %2444 = vmatprep.mubr.bf16.mxu0 0
    %2445 = vmatmul.mubr.bf16.gmra.mrb[0].mxu0 %v2402
    %v2446 = vpop.f32.mrb[0].mxu0
    %v2447 = vadd.f32 %v2384, %v2446
    %v2448 = vpop.f32.mrb[0].mxu0
    %v2449 = vpop.f32.mrb[0].mxu0
    %v2450 = vpop.f32.mrb[0].mxu0
    %2451 = vdwg.mxu0
    %v2452 = vmul.f32 %v2439, %v2439
    %v2453 = vmul.f32 %v2442, %v2442
    %v2454 = vmul.f32 %v2447, %v2447
    %v2455 = vmul.f32 %v2439, %v2452
    %v2456 = vmul.f32 %v2442, %v2453
    %v2457 = vmul.f32 %v2447, %v2454
    %v2458 = vmul.f32 %v2455, 0.044715
    %v2459 = vmul.f32 %v2456, 0.044715
    %v2460 = vmul.f32 %v2457, 0.044715
    %v2461 = vadd.f32 %v2439, %v2458
    %v2462 = vadd.f32 %v2442, %v2459
    %v2463 = vadd.f32 %v2447, %v2460
    %v2464 = vmul.f32 %v2461, 0.7978846
    %v2465 = vmul.f32 %v2462, 0.7978846
    %v2466 = vmul.f32 %v2463, 0.7978846
    %v2467 = vtanh.pop %v2464
    %v2468 = vtanh.pop %v2465
    %v2469 = vtanh.pop %v2466
    %v2470 = vadd.f32 %v2467, 1.0
    %v2471 = vadd.f32 %v2468, 1.0
    %v2472 = vadd.f32 %v2469, 1.0
    %v2473 = vmul.f32 %v2470, 0.5
    %v2474 = vmul.f32 %v2471, 0.5
    %v2475 = vmul.f32 %v2472, 0.5
    %v2476 = vmul.f32 %v2439, %v2473
    %v2477 = vmul.f32 %v2442, %v2474
    %v2478 = vmul.f32 %v2447, %v2475
    %v2479 = vpack.c.bf16 %v2477, %v2476
    %v2480 = vpack.c.bf16 %v2478, %v2478
    %s2481 = scalar_lea.vmem %s18, 32
    %v2482 = vld [vmem:[%s2481] sm:$0xf]
    %v2483 = vld [vmem:[%s2481 + $0x4] sm:$0xf]
    %v2484 = vld [vmem:[%s2481 + $0x8] sm:$0xf]
    %v2485 = vld [vmem:[%s2481 + $0xc] sm:$0xf]
    %v2486 = vld [vmem:[%s2481 + $0x10] sm:$0xf]
    %v2487 = vld [vmem:[%s2481 + $0x14] sm:$0xf]
    %v2488 = vld [vmem:[%s2481 + $0x18] sm:$0xf]
    %v2489 = vld [vmem:[%s2481 + $0x1c] sm:$0xf]
    %s2490 = scalar_lea.vmem %s19, 1
    %v2491 = vld [vmem:[%s2490] sm:$0x1]
    %v2493 = vlaneseq
    %v2494 = vshrl.u32 %v2493, 7
    %v2495 = vsub.s32 0, %v2494
    %v2496 = vrot.slane %v2491, %v2495
    %v2506 = vunpack.c.l.b16 %v2482
    %v2507 = vunpack.c.l.b16 %v2483
    %v2508 = vunpack.c.l.b16 %v2484
    %v2509 = vunpack.c.l.b16 %v2485
    %v2510 = vunpack.c.l.b16 %v2486
    %v2511 = vunpack.c.l.b16 %v2487
    %v2512 = vunpack.c.l.b16 %v2488
    %v2513 = vunpack.c.l.b16 %v2489
    %v2514 = vpack.c.b16 %v2507, %v2506
    %v2515 = vpack.c.b16 %v2509, %v2508
    %v2516 = vpack.c.b16 %v2511, %v2510
    %v2517 = vpack.c.b16 %v2513, %v2512
    %v2523 = vsel %vm1498, %v2479, 0
    %v2526 = vsel %vm1498, %v2480, 0
    %2528 = vmatprep.subr.bf16.mxu0 0
    %2529 = vmatpush1.bf16.msra.mxu0 %v2514
    %2530 = vmatprep.subr.bf16.mxu0 0
    %2531 = vmatpush1.bf16.msra.mxu0 %v2515
    %2532 = vmatprep.subr.bf16.mxu0 0
    %2533 = vmatpush1.bf16.msra.mxu0 %v2516
    %2534 = vmatprep.subr.bf16.mxu0 0
    %2535 = vmatpush1.bf16.msra.mxu0 %v2517
    %2536 = vmatprep.subr.bf16.mxu0 0
    %2537 = vmatpush1.bf16.msra.mxu0 0
    %2538 = vmatprep.subr.bf16.mxu0 0
    %2539 = vmatpush1.bf16.msra.mxu0 0
    %2540 = vmatprep.subr.bf16.mxu0 0
    %2541 = vmatpush1.bf16.msra.mxu0 0
    %2542 = vmatprep.subr.bf16.mxu0 0
    %2543 = vmatpush1.bf16.msra.mxu0 0
    %2544 = vmatprep.subr.bf16.mxu0 0
    %2545 = vmatpush1.bf16.msra.mxu0 0
    %2546 = vmatprep.subr.bf16.mxu0 0
    %2547 = vmatpush1.bf16.msra.mxu0 0
    %2548 = vmatprep.subr.bf16.mxu0 0
    %2549 = vmatpush1.bf16.msra.mxu0 0
    %2550 = vmatprep.subr.bf16.mxu0 0
    %2551 = vmatpush1.bf16.msra.mxu0 0
    %2552 = vmatprep.subr.bf16.mxu0 0
    %2553 = vmatpush1.bf16.msra.mxu0 0
    %2554 = vmatprep.subr.bf16.mxu0 0
    %2555 = vmatpush1.bf16.msra.mxu0 0
    %2556 = vmatprep.subr.bf16.mxu0 0
    %2557 = vmatpush1.bf16.msra.mxu0 0
    %2558 = vmatprep.subr.bf16.mxu0 0
    %2559 = vmatpush1.bf16.msra.mxu0 0
    %2560 = vmatprep.mubr.bf16.mxu0 0
    %2561 = vmatmul.mubr.bf16.gmra.mrb[0].mxu0 %v2523
    %v2562 = vpop.f32.mrb[0].mxu0
    %v2563 = vadd.f32 %v2496, %v2562
    %v2564 = vpop.f32.mrb[0].mxu0
    %v2565 = vpop.f32.mrb[0].mxu0
    %v2566 = vadd.f32 %v2496, %v2565
    %v2567 = vpop.f32.mrb[0].mxu0
    %2568 = vmatprep.mubr.bf16.mxu0 0
    %2569 = vmatmul.mubr.bf16.gmra.mrb[0].mxu0 %v2526
    %v2570 = vpop.f32.mrb[0].mxu0
    %v2571 = vpop.f32.mrb[0].mxu0
    %v2572 = vpop.f32.mrb[0].mxu0
    %v2573 = vpop.f32.mrb[0].mxu0
    %2574 = vdwg.mxu0
    %v2575 = vadd.f32 %v2307, %v2563
    %v2576 = vadd.f32 %v2308, %v2566
    %v2577 = vld [vmem:[%s20] sm:$0x1]
    %v2578 = vld [vmem:[%s21] sm:$0x1]
    %v2579 = vsel %vm466, %v2575, 0.0
    %2580 = vadd.xlane.f32.xlu0 %v2579
    %v2581 = vpop.xlane.xlu0 %2580
    %v2582 = vsel %vm466, %v2576, 0.0
    %2583 = vadd.xlane.f32.xlu0 %v2582
    %v2584 = vpop.xlane.xlu0 %2583
    %v2585 = vmul.f32 %v2581, %v473
    %v2586 = vmul.f32 %v2584, %v473
    %v2587 = vsub.f32 %v2575, %v2585
    %v2588 = vsub.f32 %v2576, %v2586
    %v2589 = vmul.f32 %v2587, %v2587
    %v2590 = vmul.f32 %v2588, %v2588
    %v2591 = vsel %vm466, %v2589, 0.0
    %2592 = vadd.xlane.f32.xlu0 %v2591
    %v2593 = vpop.xlane.xlu0 %2592
    %v2594 = vsel %vm466, %v2590, 0.0
    %2595 = vadd.xlane.f32.xlu0 %v2594
    %v2596 = vpop.xlane.xlu0 %2595
    %v2597 = vmul.f32 %v2593, %v473
    %v2598 = vmul.f32 %v2596, %v473
    %v2599 = vadd.f32 %v2597, 1e-05
    %v2600 = vadd.f32 %v2598, 1e-05
    %v2601 = vrsqrt.pop %v2599
    %v2602 = vrsqrt.pop %v2600
    %v2603 = vmul.f32 %v2587, %v2601
    %v2604 = vmul.f32 %v2588, %v2602
    %v2606 = vlaneseq
    %v2607 = vshrl.u32 %v2606, 7
    %v2608 = vsub.s32 0, %v2607
    %v2609 = vrot.slane %v2577, %v2608
    %v2611 = vmul.f32 %v2603, %v2609
    %v2612 = vmul.f32 %v2604, %v2609
    %v2614 = vlaneseq
    %v2615 = vshrl.u32 %v2614, 7
    %v2616 = vsub.s32 0, %v2615
    %v2617 = vrot.slane %v2578, %v2616
    %v2619 = vadd.f32 %v2611, %v2617
    %v2620 = vadd.f32 %v2612, %v2617
    %v2621 = vsel %vm516, %v2619, %v2620
    %v2622 = vld [vmem:[%s22] sm:$0x1]
    %v2623 = vld [vmem:[%s23] sm:$0x1]
    %v2624 = vsel %vm542, %v2621, 0.0
    %2625 = vadd.xlane.f32.xlu0 %v2624
    %v2626 = vpop.xlane.xlu0 %2625
    %v2627 = vmul.f32 %v2626, %v473
    %v2628 = vsub.f32 %v2621, %v2627
    %v2629 = vmul.f32 %v2628, %v2628
    %v2630 = vsel %vm542, %v2629, 0.0
    %2631 = vadd.xlane.f32.xlu0 %v2630
    %v2632 = vpop.xlane.xlu0 %2631
    %v2633 = vmul.f32 %v2632, %v473
    %v2634 = vadd.f32 %v2633, 1e-05
    %v2635 = vrsqrt.pop %v2634
    %v2636 = vmul.f32 %v2628, %v2635
    %v2638 = vlaneseq
    %v2639 = vshrl.u32 %v2638, 7
    %v2640 = vsub.s32 0, %v2639
    %v2641 = vrot.slane %v2622, %v2640
    %v2643 = vmul.f32 %v2636, %v2641
    %v2645 = vlaneseq
    %v2646 = vshrl.u32 %v2645, 7
    %v2647 = vsub.s32 0, %v2646
    %v2648 = vrot.slane %v2623, %v2647
    %v2650 = vadd.f32 %v2643, %v2648
    %v2651 = vpack.c.bf16 %v2650, %v2650
    %v2652 = vld [vmem:[%s24] sm:$0xf]
    %v2653 = vld [vmem:[%s24 + $0x4] sm:$0xf]
    %v2654 = vld [vmem:[%s24 + $0x8] sm:$0xf]
    %v2655 = vld [vmem:[%s24 + $0xc] sm:$0xf]
    %v2656 = vld [vmem:[%s25] sm:$0x1]
    %v2658 = vlaneseq
    %v2659 = vshrl.u32 %v2658, 7
    %v2660 = vsub.s32 0, %v2659
    %v2661 = vrot.slane %v2656, %v2660
    %v2667 = vunpack.c.l.b16 %v2652
    %v2668 = vunpack.c.l.b16 %v2653
    %v2669 = vunpack.c.l.b16 %v2654
    %v2670 = vunpack.c.l.b16 %v2655
    %v2671 = vpack.c.b16 %v2668, %v2667
    %v2672 = vpack.c.b16 %v2670, %v2669
    %v2676 = vsel %vm466, %v2651, 0
    %2678 = vmatprep.subr.bf16.mxu0 0
    %2679 = vmatpush1.bf16.msra.mxu0 %v2671
    %2680 = vmatprep.subr.bf16.mxu0 0
    %2681 = vmatpush1.bf16.msra.mxu0 %v2672
    %2682 = vmatprep.subr.bf16.mxu0 0
    %2683 = vmatpush1.bf16.msra.mxu0 0
    %2684 = vmatprep.subr.bf16.mxu0 0
    %2685 = vmatpush1.bf16.msra.mxu0 0
    %2686 = vmatprep.subr.bf16.mxu0 0
    %2687 = vmatpush1.bf16.msra.mxu0 0
    %2688 = vmatprep.subr.bf16.mxu0 0
    %2689 = vmatpush1.bf16.msra.mxu0 0
    %2690 = vmatprep.subr.bf16.mxu0 0
    %2691 = vmatpush1.bf16.msra.mxu0 0
    %2692 = vmatprep.subr.bf16.mxu0 0
    %2693 = vmatpush1.bf16.msra.mxu0 0
    %2694 = vmatprep.subr.bf16.mxu0 0
    %2695 = vmatpush1.bf16.msra.mxu0 0
    %2696 = vmatprep.subr.bf16.mxu0 0
    %2697 = vmatpush1.bf16.msra.mxu0 0
    %2698 = vmatprep.subr.bf16.mxu0 0
    %2699 = vmatpush1.bf16.msra.mxu0 0
    %2700 = vmatprep.subr.bf16.mxu0 0
    %2701 = vmatpush1.bf16.msra.mxu0 0
    %2702 = vmatprep.subr.bf16.mxu0 0
    %2703 = vmatpush1.bf16.msra.mxu0 0
    %2704 = vmatprep.subr.bf16.mxu0 0
    %2705 = vmatpush1.bf16.msra.mxu0 0
    %2706 = vmatprep.subr.bf16.mxu0 0
    %2707 = vmatpush1.bf16.msra.mxu0 0
    %2708 = vmatprep.subr.bf16.mxu0 0
    %2709 = vmatpush1.bf16.msra.mxu0 0
    %2710 = vmatprep.mubr.bf16.mxu0 0
    %2711 = vmatmul.mubr.bf16.gmra.mrb[0].mxu0 %v2676
    %v2712 = vpop.f32.mrb[0].mxu0
    %v2713 = vadd.f32 %v2661, %v2712
    %v2714 = vpop.f32.mrb[0].mxu0
    %v2715 = vpop.f32.mrb[0].mxu0
    %v2716 = vpop.f32.mrb[0].mxu0
    %2717 = vdwg.mxu0
    %v2720 = vunpack.c.l.s4 1966171168
    %v2721 = vunpack.c.0.s8 %v2720
    %v2722 = vlaneseq
    %v2723 = vshrl.u32 %v2722, 7
    %v2724 = vsub.s32 %v2721, %v2723
    %v2725 = vrot.slane %v2713, %v2724
    %v2726 = vcombine.high %v2725, %v2725
    %v2728 = vunpack.c.l.s4 1966171168
    %v2729 = vunpack.c.0.s8 %v2728
    %v2730 = vlaneseq
    %v2731 = vshrl.u32 %v2730, 7
    %v2732 = vsub.s32 %v2729, %v2731
    %v2733 = vrot.slane %v2725, %v2732
    %v2735 = vunpack.c.l.s4 1966171168
    %v2736 = vunpack.c.0.s8 %v2735
    %v2737 = vlaneseq
    %v2738 = vshrl.u32 %v2737, 7
    %v2739 = vsub.s32 %v2736, %v2738
    %v2740 = vrot.slane %v2726, %v2739
    %2743 = vst [vmem:[#allocation2] sm:$0x1] %v2733
    %2744 = vst [vmem:[#allocation2 + $0x1] sm:$0x1] %v2740
    // Predicated region
    $region106: #{vit_forward.1} parent=1 // pred_check
      _
    $region107: #{vit_forward.1} parent=1 // pred_check_branch
      %2746 = sbr.rel (0) target = $region109
    $region108: #{vit_forward.1} parent=1 // pred_region
      %s2748 = ssub.s32 32, 32
      %2749 = vsyncadd [#allocation3], %s2748
      %s2750 = sshll.u32 [#allocation2], 4
      %s2751 = int_to_ptr.vmem [resolvable:$true] %s2750
      %2756 = dma.vmem_to_hbm [thread:$0]  %s2751, 32, %s26, [#allocation3], 16, 16, 1
    $region109: #{vit_forward.1} parent=1 // pred_fallthru
      _
    // Predicated region
    $region110: #{vit_forward.1} parent=1 // pred_check
      _
    $region111: #{vit_forward.1} parent=1 // pred_check_branch
      %2758 = sbr.rel (0) target = $region113
    $region112: #{vit_forward.1} parent=1 // pred_region
      %2759 = dma.done [#allocation3], 32
    $region113: #{vit_forward.1} parent=1 // pred_fallthru
      _
    %2760 = vsyncpa [#allocation3], 1

</llo_original>
